<compile_context>
chip_gen: v5e
topology: v5e:2x2
jax: 0.10.0
libtpu: 0.0.40
codegen_flags: <defaults>
</compile_context>

<pallas_src>
import functools
import math

import jax
import jax.numpy as jnp
from jax import lax
from jax.experimental import pallas as pl
from jax.experimental.pallas import tpu as pltpu

LN_EPS = 1e-7
_GELU_C = math.sqrt(2.0 / math.pi)
_NEG_INF = -1e30   # exp(-1e30 - max) == 0, identical softmax to finfo.min masking


def _layernorm(x, g, b, eps=LN_EPS):
    mu = jnp.mean(x, axis=-1, keepdims=True)
    var = jnp.mean(jnp.square(x - mu), axis=-1, keepdims=True)
    return (x - mu) * lax.rsqrt(var + eps) * g + b


def _gelu_new(x):
    return 0.5 * x * (1.0 + jnp.tanh(_GELU_C * (x + 0.044715 * x * x * x)))


def anygpt_block_kernel(x_ref, mask_ref, ln1g_ref, ln1b_ref,
                        wqkv_ref, wo_ref, bo_ref,
                        ln2g_ref, ln2b_ref,
                        wfc_ref, bfc_ref, wpr_ref, bpr_ref,
                        out_ref, *, num_heads):
    bt, T, H = x_ref.shape
    M = bt * T
    hd = H // num_heads

    x = x_ref[...].reshape(M, H)          # fp32, layout-preserving merge of leading dims
    mask_bias = mask_ref[...]             # (M, M) fp32: 0 where attended, -1e30 otherwise

    # ---- AnyGPTAttentionOnly, pre-LN: residual = LN1(x), attention runs on raw x ----
    ln1 = _layernorm(x, ln1g_ref[0], ln1b_ref[0])

    # fused QKV projection: bf16 operands, fp32 accumulation
    x16 = x.astype(jnp.bfloat16)
    qkv = jnp.dot(x16, wqkv_ref[...], preferred_element_type=jnp.float32)   # (M, 3H)
    q16 = qkv[:, 0 * H:1 * H].astype(jnp.bfloat16)
    k16 = qkv[:, 1 * H:2 * H].astype(jnp.bfloat16)
    v16 = qkv[:, 2 * H:3 * H].astype(jnp.bfloat16)

    # per-head attention with the out-projection fused into the head loop
    attn = jnp.zeros((M, H), jnp.float32)
    for h in range(num_heads):            # static, small head count
        lo = h * hd
        qh = q16[:, lo:lo + hd]
        kh = k16[:, lo:lo + hd]
        vh = v16[:, lo:lo + hd]
        # GPT-Neo: fp32 scores, NO 1/sqrt(head_dim) scaling; block-causal mask bias
        s = jnp.dot(qh, kh.T, preferred_element_type=jnp.float32) + mask_bias
        s = s - jnp.max(s, axis=-1, keepdims=True)
        p = jnp.exp(s)
        p = p * pl.reciprocal(jnp.sum(p, axis=-1, keepdims=True), approx=True)
        pv = jnp.dot(p.astype(jnp.bfloat16), vh, preferred_element_type=jnp.float32)
        attn = attn + jnp.dot(pv.astype(jnp.bfloat16), wo_ref[lo:lo + hd, :],
                              preferred_element_type=jnp.float32)
    h1 = attn + bo_ref[0] + ln1           # residual is LN1(x), per source

    # ---- AnyGPTMLPOnly, pre-LN ----
    ln2 = _layernorm(h1, ln2g_ref[0], ln2b_ref[0])
    inter = jnp.dot(ln2.astype(jnp.bfloat16), wfc_ref[...],
                    preferred_element_type=jnp.float32) + bfc_ref[0]
    inter = _gelu_new(inter)
    mlp_out = jnp.dot(inter.astype(jnp.bfloat16), wpr_ref[...],
                      preferred_element_type=jnp.float32) + bpr_ref[0]

    out_ref[...] = (h1 + mlp_out).reshape(bt, T, H).astype(out_ref.dtype)


def anygpt_attention_and_mlp(x, params, num_heads, block_batch):
    B, T, H = x.shape
    I = params["w_fc"].shape[1]
    bt = block_batch
    assert B % bt == 0, "block_batch must divide batch"
    M = bt * T

    # host-side weight prep: fused QKV, bf16 matmul weights
    wqkv = jnp.concatenate(
        [params["w_q"], params["w_k"], params["w_v"]], axis=1).astype(jnp.bfloat16)
    wo = params["w_o"].astype(jnp.bfloat16)
    wfc = params["w_fc"].astype(jnp.bfloat16)
    wpr = params["w_proj"].astype(jnp.bfloat16)

    # block-diagonal causal mask (0 / -1e30), hoisted out of the kernel
    idx = jnp.arange(M)
    same_seq = (idx[:, None] // T) == (idx[None, :] // T)
    causal = idx[None, :] <= idx[:, None]
    mask_bias = jnp.where(same_seq & causal, 0.0, _NEG_INF).astype(jnp.float32)

    kern = functools.partial(anygpt_block_kernel, num_heads=num_heads)

    def rep(shape):
        return pl.BlockSpec(shape, lambda g: (0,) * len(shape))

    in_specs = [
        pl.BlockSpec((bt, T, H), lambda g: (g, 0, 0)),  # x
        rep((M, M)),                                    # mask bias
        rep((1, H)), rep((1, H)),                       # ln1 gamma, beta
        rep((H, 3 * H)),                                # fused w_qkv (bf16)
        rep((H, H)), rep((1, H)),                       # w_o (bf16), b_o
        rep((1, H)), rep((1, H)),                       # ln2 gamma, beta
        rep((H, I)), rep((1, I)),                       # w_fc (bf16), b_fc
        rep((I, H)), rep((1, H)),                       # w_proj (bf16), b_proj
    ]

    return pl.pallas_call(
        kern,
        out_shape=jax.ShapeDtypeStruct((B, T, H), x.dtype),
        grid_spec=pltpu.PrefetchScalarGridSpec(
            num_scalar_prefetch=0,
            grid=(B // bt,),
            in_specs=in_specs,
            out_specs=pl.BlockSpec((bt, T, H), lambda g: (g, 0, 0)),
        ),
        compiler_params=pltpu.CompilerParams(
            dimension_semantics=("parallel",),
            vmem_limit_bytes=32 * 1024 * 1024,
        ),
    )(x, mask_bias, params["ln1_g"], params["ln1_b"],
      wqkv, wo, params["b_o"],
      params["ln2_g"], params["ln2_b"],
      wfc, params["b_fc"], wpr, params["b_proj"])


# ----------------------- pure-JAX fp32 reference (correctness check) -----------------------
def reference_forward(x, p, num_heads):
    B, T, H = x.shape
    hd = H // num_heads

    def ln(v, g, b):
        mu = jnp.mean(v, axis=-1, keepdims=True)
        var = jnp.mean(jnp.square(v - mu), axis=-1, keepdims=True)
        return (v - mu) / jnp.sqrt(var + LN_EPS) * g + b

    ln1 = ln(x, p["ln1_g"][0], p["ln1_b"][0])
    q = x @ p["w_q"]
    k = x @ p["w_k"]
    v = x @ p["w_v"]
    q = q.reshape(B, T, num_heads, hd).transpose(0, 2, 1, 3)
    k = k.reshape(B, T, num_heads, hd).transpose(0, 2, 1, 3)
    v = v.reshape(B, T, num_heads, hd).transpose(0, 2, 1, 3)
    s = jnp.einsum("bhqd,bhkd->bhqk", q, k)
    causal = jnp.tril(jnp.ones((T, T), bool))
    s = jnp.where(causal, s, jnp.finfo(jnp.float32).min)
    pw = jax.nn.softmax(s, axis=-1)
    o = jnp.einsum("bhqk,bhkd->bhqd", pw, v).transpose(0, 2, 1, 3).reshape(B, T, H)
    attn_out = o @ p["w_o"] + p["b_o"][0]
    h1 = attn_out + ln1
    ln2 = ln(h1, p["ln2_g"][0], p["ln2_b"][0])
    inter = ln2 @ p["w_fc"] + p["b_fc"][0]
    inter = 0.5 * inter * (1.0 + jnp.tanh(_GELU_C * (inter + 0.044715 * inter ** 3)))
    mlp_out = inter @ p["w_proj"] + p["b_proj"][0]
    return h1 + mlp_out


if __name__ == "__main__":
    # Small config consistent with AnyGPTConfig: hidden = num_heads * 32
    B, T = 16, 16
    NUM_HEADS = 4
    H = NUM_HEADS * 32          # 128
    I = 4 * H                   # 512
    BT = 8                      # sequences per grid step -> M=128 rows, grid=(2,)

    key = jax.random.PRNGKey(0)
    ks = jax.random.split(key, 10)

    def w(k, shape):
        return 0.02 * jax.random.normal(k, shape, jnp.float32)

    params = {
        "ln1_g": jnp.ones((1, H), jnp.float32),
        "ln1_b": jnp.zeros((1, H), jnp.float32),
        "w_q": w(ks[0], (H, H)),
        "w_k": w(ks[1], (H, H)),
        "w_v": w(ks[2], (H, H)),
        "w_o": w(ks[3], (H, H)),
        "b_o": w(ks[4], (1, H)),
        "ln2_g": jnp.ones((1, H), jnp.float32),
        "ln2_b": jnp.zeros((1, H), jnp.float32),
        "w_fc": w(ks[5], (H, I)),
        "b_fc": w(ks[6], (1, I)),
        "w_proj": w(ks[7], (I, H)),
        "b_proj": w(ks[8], (1, H)),
    }

    x = jax.random.normal(ks[9], (B, T, H), jnp.float32)

    out = anygpt_attention_and_mlp(x, params, NUM_HEADS, block_batch=BT)
    out = jax.block_until_ready(out)

    ref = reference_forward(x, params, NUM_HEADS)
    assert out.shape == (B, T, H)
    # tolerance loosened for bf16 matmul operands (fp32 accumulation) + approx reciprocal
    assert jnp.allclose(out, ref, atol=2e-2, rtol=2e-2), "mismatch vs reference"

    print("KERNEL_OK")
</pallas_src>

<mosaic_0001>
module attributes {stable_mosaic.version = 11 : i64} {
  func.func @anygpt_block_kernel(%arg0: i32, %arg1: memref<8x16x128xf32, #tpu.memory_space<vmem>>, %arg2: memref<128x128xf32, #tpu.memory_space<vmem>>, %arg3: memref<1x128xf32, #tpu.memory_space<vmem>>, %arg4: memref<1x128xf32, #tpu.memory_space<vmem>>, %arg5: memref<128x384xbf16, #tpu.memory_space<vmem>>, %arg6: memref<128x128xbf16, #tpu.memory_space<vmem>>, %arg7: memref<1x128xf32, #tpu.memory_space<vmem>>, %arg8: memref<1x128xf32, #tpu.memory_space<vmem>>, %arg9: memref<1x128xf32, #tpu.memory_space<vmem>>, %arg10: memref<128x512xbf16, #tpu.memory_space<vmem>>, %arg11: memref<1x512xf32, #tpu.memory_space<vmem>>, %arg12: memref<512x128xbf16, #tpu.memory_space<vmem>>, %arg13: memref<1x128xf32, #tpu.memory_space<vmem>>, %arg14: memref<8x16x128xf32, #tpu.memory_space<vmem>>) attributes {dimension_semantics = [#tpu.dimension_semantics<parallel>], iteration_bounds = array<i64: 2>, scalar_prefetch = 0 : i64, scratch_operands = 0 : i64, tpu.core_type = #tpu.core_type<tc>, window_params = [{transform_indices = @transform_0, window_bounds = array<i64: 8, 16, 128>}, {pipeline_mode = #tpu.pipeline_mode<synchronous>, transform_indices = @transform_1, window_bounds = array<i64: 128, 128>}, {pipeline_mode = #tpu.pipeline_mode<synchronous>, transform_indices = @transform_2, window_bounds = array<i64: 1, 128>}, {pipeline_mode = #tpu.pipeline_mode<synchronous>, transform_indices = @transform_3, window_bounds = array<i64: 1, 128>}, {pipeline_mode = #tpu.pipeline_mode<synchronous>, transform_indices = @transform_4, window_bounds = array<i64: 128, 384>}, {pipeline_mode = #tpu.pipeline_mode<synchronous>, transform_indices = @transform_5, window_bounds = array<i64: 128, 128>}, {pipeline_mode = #tpu.pipeline_mode<synchronous>, transform_indices = @transform_6, window_bounds = array<i64: 1, 128>}, {pipeline_mode = #tpu.pipeline_mode<synchronous>, transform_indices = @transform_7, window_bounds = array<i64: 1, 128>}, {pipeline_mode = #tpu.pipeline_mode<synchronous>, transform_indices = @transform_8, window_bounds = array<i64: 1, 128>}, {pipeline_mode = #tpu.pipeline_mode<synchronous>, transform_indices = @transform_9, window_bounds = array<i64: 128, 512>}, {pipeline_mode = #tpu.pipeline_mode<synchronous>, transform_indices = @transform_10, window_bounds = array<i64: 1, 512>}, {pipeline_mode = #tpu.pipeline_mode<synchronous>, transform_indices = @transform_11, window_bounds = array<i64: 512, 128>}, {pipeline_mode = #tpu.pipeline_mode<synchronous>, transform_indices = @transform_12, window_bounds = array<i64: 1, 128>}, {transform_indices = @transform_13, window_bounds = array<i64: 8, 16, 128>}]} {
    %c0 = arith.constant 0 : index
    %c0_0 = arith.constant 0 : index
    %c0_1 = arith.constant 0 : index
    %0 = vector.load %arg1[%c0, %c0_0, %c0_1] : memref<8x16x128xf32, #tpu.memory_space<vmem>>, vector<8x16x128xf32>
    %1 = vector.shape_cast %0 : vector<8x16x128xf32> to vector<128x128xf32>
    %c0_2 = arith.constant 0 : index
    %c0_3 = arith.constant 0 : index
    %2 = vector.load %arg2[%c0_2, %c0_3] : memref<128x128xf32, #tpu.memory_space<vmem>>, vector<128x128xf32>
    %c0_4 = arith.constant 0 : index
    %c0_5 = arith.constant 0 : index
    %3 = vector.load %arg3[%c0_4, %c0_5] : memref<1x128xf32, #tpu.memory_space<vmem>>, vector<1x128xf32>
    %4 = vector.shape_cast %3 : vector<1x128xf32> to vector<128xf32>
    %c0_6 = arith.constant 0 : index
    %c0_7 = arith.constant 0 : index
    %5 = vector.load %arg4[%c0_6, %c0_7] : memref<1x128xf32, #tpu.memory_space<vmem>>, vector<1x128xf32>
    %6 = vector.shape_cast %5 : vector<1x128xf32> to vector<128xf32>
    %cst = arith.constant dense<0.000000e+00> : vector<128xf32>
    %7 = vector.multi_reduction <add>, %1, %cst [1] : vector<128x128xf32> to vector<128xf32>
    %8 = vector.shape_cast %7 : vector<128xf32> to vector<128x1xf32>
    %cst_8 = arith.constant 1.280000e+02 : f32
    %9 = vector.broadcast %cst_8 : f32 to vector<128x1xf32>
    %10 = arith.divf %8, %9 : vector<128x1xf32>
    %11 = vector.broadcast %10 : vector<128x1xf32> to vector<128x128xf32>
    %12 = arith.subf %1, %11 : vector<128x128xf32>
    %13 = arith.mulf %12, %12 : vector<128x128xf32>
    %cst_9 = arith.constant dense<0.000000e+00> : vector<128xf32>
    %14 = vector.multi_reduction <add>, %13, %cst_9 [1] : vector<128x128xf32> to vector<128xf32>
    %15 = vector.shape_cast %14 : vector<128xf32> to vector<128x1xf32>
    %cst_10 = arith.constant 1.280000e+02 : f32
    %16 = vector.broadcast %cst_10 : f32 to vector<128x1xf32>
    %17 = arith.divf %15, %16 : vector<128x1xf32>
    %18 = vector.broadcast %10 : vector<128x1xf32> to vector<128x128xf32>
    %19 = arith.subf %1, %18 : vector<128x128xf32>
    %cst_11 = arith.constant 1.000000e-07 : f32
    %20 = vector.broadcast %cst_11 : f32 to vector<128x1xf32>
    %21 = arith.addf %17, %20 : vector<128x1xf32>
    %22 = math.rsqrt %21 : vector<128x1xf32>
    %23 = vector.broadcast %22 : vector<128x1xf32> to vector<128x128xf32>
    %24 = arith.mulf %19, %23 : vector<128x128xf32>
    %25 = vector.shape_cast %4 : vector<128xf32> to vector<1x128xf32>
    %26 = vector.broadcast %25 : vector<1x128xf32> to vector<128x128xf32>
    %27 = arith.mulf %24, %26 : vector<128x128xf32>
    %28 = vector.shape_cast %6 : vector<128xf32> to vector<1x128xf32>
    %29 = vector.broadcast %28 : vector<1x128xf32> to vector<128x128xf32>
    %30 = arith.addf %27, %29 : vector<128x128xf32>
    %31 = arith.truncf %1 : vector<128x128xf32> to vector<128x128xbf16>
    %c0_12 = arith.constant 0 : index
    %c0_13 = arith.constant 0 : index
    %32 = vector.load %arg5[%c0_12, %c0_13] : memref<128x384xbf16, #tpu.memory_space<vmem>>, vector<128x384xbf16>
    %cst_14 = arith.constant dense<0.000000e+00> : vector<128x384xf32>
    %33 = tpu.matmul %31, %32, %cst_14 {dimension_numbers = #tpu.dot_dimension_numbers<[1], [0], [0], [1], [0, 0, 1, 1], [], []>} : vector<128x128xbf16>, vector<128x384xbf16>, vector<128x384xf32> -> vector<128x384xf32>
    %34 = vector.extract_strided_slice %33 {offsets = [0, 0], sizes = [128, 128], strides = [1, 1]} : vector<128x384xf32> to vector<128x128xf32>
    %35 = arith.truncf %34 : vector<128x128xf32> to vector<128x128xbf16>
    %36 = vector.extract_strided_slice %33 {offsets = [0, 128], sizes = [128, 128], strides = [1, 1]} : vector<128x384xf32> to vector<128x128xf32>
    %37 = arith.truncf %36 : vector<128x128xf32> to vector<128x128xbf16>
    %38 = vector.extract_strided_slice %33 {offsets = [0, 256], sizes = [128, 128], strides = [1, 1]} : vector<128x384xf32> to vector<128x128xf32>
    %39 = arith.truncf %38 : vector<128x128xf32> to vector<128x128xbf16>
    %cst_15 = arith.constant 0.000000e+00 : f32
    %40 = vector.broadcast %cst_15 : f32 to vector<128x128xf32>
    %41 = vector.extract_strided_slice %35 {offsets = [0, 0], sizes = [128, 32], strides = [1, 1]} : vector<128x128xbf16> to vector<128x32xbf16>
    %42 = vector.extract_strided_slice %37 {offsets = [0, 0], sizes = [128, 32], strides = [1, 1]} : vector<128x128xbf16> to vector<128x32xbf16>
    %43 = vector.extract_strided_slice %39 {offsets = [0, 0], sizes = [128, 32], strides = [1, 1]} : vector<128x128xbf16> to vector<128x32xbf16>
    %44 = tpu.transpose %42, [1, 0] : vector<128x32xbf16> -> vector<32x128xbf16>
    %cst_16 = arith.constant dense<0.000000e+00> : vector<128x128xf32>
    %45 = tpu.matmul %41, %44, %cst_16 {dimension_numbers = #tpu.dot_dimension_numbers<[1], [0], [0], [1], [0, 0, 1, 1], [], []>} : vector<128x32xbf16>, vector<32x128xbf16>, vector<128x128xf32> -> vector<128x128xf32>
    %46 = arith.addf %45, %2 : vector<128x128xf32>
    %cst_17 = arith.constant dense<0xFF800000> : vector<128xf32>
    %47 = vector.multi_reduction <maximumf>, %46, %cst_17 [1] : vector<128x128xf32> to vector<128xf32>
    %48 = vector.shape_cast %47 : vector<128xf32> to vector<128x1xf32>
    %49 = vector.broadcast %48 : vector<128x1xf32> to vector<128x128xf32>
    %50 = arith.subf %46, %49 : vector<128x128xf32>
    %51 = math.exp %50 : vector<128x128xf32>
    %cst_18 = arith.constant dense<0.000000e+00> : vector<128xf32>
    %52 = vector.multi_reduction <add>, %51, %cst_18 [1] : vector<128x128xf32> to vector<128xf32>
    %53 = vector.shape_cast %52 : vector<128xf32> to vector<128x1xf32>
    %54 = tpu.reciprocal %53 {approx = true} : vector<128x1xf32> -> vector<128x1xf32>
    %55 = vector.broadcast %54 : vector<128x1xf32> to vector<128x128xf32>
    %56 = arith.mulf %51, %55 : vector<128x128xf32>
    %57 = arith.truncf %56 : vector<128x128xf32> to vector<128x128xbf16>
    %cst_19 = arith.constant dense<0.000000e+00> : vector<128x32xf32>
    %58 = tpu.matmul %57, %43, %cst_19 {dimension_numbers = #tpu.dot_dimension_numbers<[1], [0], [0], [1], [0, 0, 1, 1], [], []>} : vector<128x128xbf16>, vector<128x32xbf16>, vector<128x32xf32> -> vector<128x32xf32>
    %59 = arith.truncf %58 : vector<128x32xf32> to vector<128x32xbf16>
    %c0_20 = arith.constant 0 : index
    %c0_21 = arith.constant 0 : index
    %60 = vector.load %arg6[%c0_20, %c0_21] : memref<128x128xbf16, #tpu.memory_space<vmem>>, vector<32x128xbf16>
    %cst_22 = arith.constant dense<0.000000e+00> : vector<128x128xf32>
    %61 = tpu.matmul %59, %60, %cst_22 {dimension_numbers = #tpu.dot_dimension_numbers<[1], [0], [0], [1], [0, 0, 1, 1], [], []>} : vector<128x32xbf16>, vector<32x128xbf16>, vector<128x128xf32> -> vector<128x128xf32>
    %62 = arith.addf %40, %61 : vector<128x128xf32>
    %63 = vector.extract_strided_slice %35 {offsets = [0, 32], sizes = [128, 32], strides = [1, 1]} : vector<128x128xbf16> to vector<128x32xbf16>
    %64 = vector.extract_strided_slice %37 {offsets = [0, 32], sizes = [128, 32], strides = [1, 1]} : vector<128x128xbf16> to vector<128x32xbf16>
    %65 = vector.extract_strided_slice %39 {offsets = [0, 32], sizes = [128, 32], strides = [1, 1]} : vector<128x128xbf16> to vector<128x32xbf16>
    %66 = tpu.transpose %64, [1, 0] : vector<128x32xbf16> -> vector<32x128xbf16>
    %cst_23 = arith.constant dense<0.000000e+00> : vector<128x128xf32>
    %67 = tpu.matmul %63, %66, %cst_23 {dimension_numbers = #tpu.dot_dimension_numbers<[1], [0], [0], [1], [0, 0, 1, 1], [], []>} : vector<128x32xbf16>, vector<32x128xbf16>, vector<128x128xf32> -> vector<128x128xf32>
    %68 = arith.addf %67, %2 : vector<128x128xf32>
    %cst_24 = arith.constant dense<0xFF800000> : vector<128xf32>
    %69 = vector.multi_reduction <maximumf>, %68, %cst_24 [1] : vector<128x128xf32> to vector<128xf32>
    %70 = vector.shape_cast %69 : vector<128xf32> to vector<128x1xf32>
    %71 = vector.broadcast %70 : vector<128x1xf32> to vector<128x128xf32>
    %72 = arith.subf %68, %71 : vector<128x128xf32>
    %73 = math.exp %72 : vector<128x128xf32>
    %cst_25 = arith.constant dense<0.000000e+00> : vector<128xf32>
    %74 = vector.multi_reduction <add>, %73, %cst_25 [1] : vector<128x128xf32> to vector<128xf32>
    %75 = vector.shape_cast %74 : vector<128xf32> to vector<128x1xf32>
    %76 = tpu.reciprocal %75 {approx = true} : vector<128x1xf32> -> vector<128x1xf32>
    %77 = vector.broadcast %76 : vector<128x1xf32> to vector<128x128xf32>
    %78 = arith.mulf %73, %77 : vector<128x128xf32>
    %79 = arith.truncf %78 : vector<128x128xf32> to vector<128x128xbf16>
    %cst_26 = arith.constant dense<0.000000e+00> : vector<128x32xf32>
    %80 = tpu.matmul %79, %65, %cst_26 {dimension_numbers = #tpu.dot_dimension_numbers<[1], [0], [0], [1], [0, 0, 1, 1], [], []>} : vector<128x128xbf16>, vector<128x32xbf16>, vector<128x32xf32> -> vector<128x32xf32>
    %81 = arith.truncf %80 : vector<128x32xf32> to vector<128x32xbf16>
    %c32 = arith.constant 32 : index
    %c0_27 = arith.constant 0 : index
    %82 = vector.load %arg6[%c32, %c0_27] : memref<128x128xbf16, #tpu.memory_space<vmem>>, vector<32x128xbf16>
    %cst_28 = arith.constant dense<0.000000e+00> : vector<128x128xf32>
    %83 = tpu.matmul %81, %82, %cst_28 {dimension_numbers = #tpu.dot_dimension_numbers<[1], [0], [0], [1], [0, 0, 1, 1], [], []>} : vector<128x32xbf16>, vector<32x128xbf16>, vector<128x128xf32> -> vector<128x128xf32>
    %84 = arith.addf %62, %83 : vector<128x128xf32>
    %85 = vector.extract_strided_slice %35 {offsets = [0, 64], sizes = [128, 32], strides = [1, 1]} : vector<128x128xbf16> to vector<128x32xbf16>
    %86 = vector.extract_strided_slice %37 {offsets = [0, 64], sizes = [128, 32], strides = [1, 1]} : vector<128x128xbf16> to vector<128x32xbf16>
    %87 = vector.extract_strided_slice %39 {offsets = [0, 64], sizes = [128, 32], strides = [1, 1]} : vector<128x128xbf16> to vector<128x32xbf16>
    %88 = tpu.transpose %86, [1, 0] : vector<128x32xbf16> -> vector<32x128xbf16>
    %cst_29 = arith.constant dense<0.000000e+00> : vector<128x128xf32>
    %89 = tpu.matmul %85, %88, %cst_29 {dimension_numbers = #tpu.dot_dimension_numbers<[1], [0], [0], [1], [0, 0, 1, 1], [], []>} : vector<128x32xbf16>, vector<32x128xbf16>, vector<128x128xf32> -> vector<128x128xf32>
    %90 = arith.addf %89, %2 : vector<128x128xf32>
    %cst_30 = arith.constant dense<0xFF800000> : vector<128xf32>
    %91 = vector.multi_reduction <maximumf>, %90, %cst_30 [1] : vector<128x128xf32> to vector<128xf32>
    %92 = vector.shape_cast %91 : vector<128xf32> to vector<128x1xf32>
    %93 = vector.broadcast %92 : vector<128x1xf32> to vector<128x128xf32>
    %94 = arith.subf %90, %93 : vector<128x128xf32>
    %95 = math.exp %94 : vector<128x128xf32>
    %cst_31 = arith.constant dense<0.000000e+00> : vector<128xf32>
    %96 = vector.multi_reduction <add>, %95, %cst_31 [1] : vector<128x128xf32> to vector<128xf32>
    %97 = vector.shape_cast %96 : vector<128xf32> to vector<128x1xf32>
    %98 = tpu.reciprocal %97 {approx = true} : vector<128x1xf32> -> vector<128x1xf32>
    %99 = vector.broadcast %98 : vector<128x1xf32> to vector<128x128xf32>
    %100 = arith.mulf %95, %99 : vector<128x128xf32>
    %101 = arith.truncf %100 : vector<128x128xf32> to vector<128x128xbf16>
    %cst_32 = arith.constant dense<0.000000e+00> : vector<128x32xf32>
    %102 = tpu.matmul %101, %87, %cst_32 {dimension_numbers = #tpu.dot_dimension_numbers<[1], [0], [0], [1], [0, 0, 1, 1], [], []>} : vector<128x128xbf16>, vector<128x32xbf16>, vector<128x32xf32> -> vector<128x32xf32>
    %103 = arith.truncf %102 : vector<128x32xf32> to vector<128x32xbf16>
    %c64 = arith.constant 64 : index
    %c0_33 = arith.constant 0 : index
    %104 = vector.load %arg6[%c64, %c0_33] : memref<128x128xbf16, #tpu.memory_space<vmem>>, vector<32x128xbf16>
    %cst_34 = arith.constant dense<0.000000e+00> : vector<128x128xf32>
    %105 = tpu.matmul %103, %104, %cst_34 {dimension_numbers = #tpu.dot_dimension_numbers<[1], [0], [0], [1], [0, 0, 1, 1], [], []>} : vector<128x32xbf16>, vector<32x128xbf16>, vector<128x128xf32> -> vector<128x128xf32>
    %106 = arith.addf %84, %105 : vector<128x128xf32>
    %107 = vector.extract_strided_slice %35 {offsets = [0, 96], sizes = [128, 32], strides = [1, 1]} : vector<128x128xbf16> to vector<128x32xbf16>
    %108 = vector.extract_strided_slice %37 {offsets = [0, 96], sizes = [128, 32], strides = [1, 1]} : vector<128x128xbf16> to vector<128x32xbf16>
    %109 = vector.extract_strided_slice %39 {offsets = [0, 96], sizes = [128, 32], strides = [1, 1]} : vector<128x128xbf16> to vector<128x32xbf16>
    %110 = tpu.transpose %108, [1, 0] : vector<128x32xbf16> -> vector<32x128xbf16>
    %cst_35 = arith.constant dense<0.000000e+00> : vector<128x128xf32>
    %111 = tpu.matmul %107, %110, %cst_35 {dimension_numbers = #tpu.dot_dimension_numbers<[1], [0], [0], [1], [0, 0, 1, 1], [], []>} : vector<128x32xbf16>, vector<32x128xbf16>, vector<128x128xf32> -> vector<128x128xf32>
    %112 = arith.addf %111, %2 : vector<128x128xf32>
    %cst_36 = arith.constant dense<0xFF800000> : vector<128xf32>
    %113 = vector.multi_reduction <maximumf>, %112, %cst_36 [1] : vector<128x128xf32> to vector<128xf32>
    %114 = vector.shape_cast %113 : vector<128xf32> to vector<128x1xf32>
    %115 = vector.broadcast %114 : vector<128x1xf32> to vector<128x128xf32>
    %116 = arith.subf %112, %115 : vector<128x128xf32>
    %117 = math.exp %116 : vector<128x128xf32>
    %cst_37 = arith.constant dense<0.000000e+00> : vector<128xf32>
    %118 = vector.multi_reduction <add>, %117, %cst_37 [1] : vector<128x128xf32> to vector<128xf32>
    %119 = vector.shape_cast %118 : vector<128xf32> to vector<128x1xf32>
    %120 = tpu.reciprocal %119 {approx = true} : vector<128x1xf32> -> vector<128x1xf32>
    %121 = vector.broadcast %120 : vector<128x1xf32> to vector<128x128xf32>
    %122 = arith.mulf %117, %121 : vector<128x128xf32>
    %123 = arith.truncf %122 : vector<128x128xf32> to vector<128x128xbf16>
    %cst_38 = arith.constant dense<0.000000e+00> : vector<128x32xf32>
    %124 = tpu.matmul %123, %109, %cst_38 {dimension_numbers = #tpu.dot_dimension_numbers<[1], [0], [0], [1], [0, 0, 1, 1], [], []>} : vector<128x128xbf16>, vector<128x32xbf16>, vector<128x32xf32> -> vector<128x32xf32>
    %125 = arith.truncf %124 : vector<128x32xf32> to vector<128x32xbf16>
    %c96 = arith.constant 96 : index
    %c0_39 = arith.constant 0 : index
    %126 = vector.load %arg6[%c96, %c0_39] : memref<128x128xbf16, #tpu.memory_space<vmem>>, vector<32x128xbf16>
    %cst_40 = arith.constant dense<0.000000e+00> : vector<128x128xf32>
    %127 = tpu.matmul %125, %126, %cst_40 {dimension_numbers = #tpu.dot_dimension_numbers<[1], [0], [0], [1], [0, 0, 1, 1], [], []>} : vector<128x32xbf16>, vector<32x128xbf16>, vector<128x128xf32> -> vector<128x128xf32>
    %128 = arith.addf %106, %127 : vector<128x128xf32>
    %c0_41 = arith.constant 0 : index
    %c0_42 = arith.constant 0 : index
    %129 = vector.load %arg7[%c0_41, %c0_42] : memref<1x128xf32, #tpu.memory_space<vmem>>, vector<1x128xf32>
    %130 = vector.shape_cast %129 : vector<1x128xf32> to vector<128xf32>
    %131 = vector.shape_cast %130 : vector<128xf32> to vector<1x128xf32>
    %132 = vector.broadcast %131 : vector<1x128xf32> to vector<128x128xf32>
    %133 = arith.addf %128, %132 : vector<128x128xf32>
    %134 = arith.addf %133, %30 : vector<128x128xf32>
    %c0_43 = arith.constant 0 : index
    %c0_44 = arith.constant 0 : index
    %135 = vector.load %arg8[%c0_43, %c0_44] : memref<1x128xf32, #tpu.memory_space<vmem>>, vector<1x128xf32>
    %136 = vector.shape_cast %135 : vector<1x128xf32> to vector<128xf32>
    %c0_45 = arith.constant 0 : index
    %c0_46 = arith.constant 0 : index
    %137 = vector.load %arg9[%c0_45, %c0_46] : memref<1x128xf32, #tpu.memory_space<vmem>>, vector<1x128xf32>
    %138 = vector.shape_cast %137 : vector<1x128xf32> to vector<128xf32>
    %cst_47 = arith.constant dense<0.000000e+00> : vector<128xf32>
    %139 = vector.multi_reduction <add>, %134, %cst_47 [1] : vector<128x128xf32> to vector<128xf32>
    %140 = vector.shape_cast %139 : vector<128xf32> to vector<128x1xf32>
    %cst_48 = arith.constant 1.280000e+02 : f32
    %141 = vector.broadcast %cst_48 : f32 to vector<128x1xf32>
    %142 = arith.divf %140, %141 : vector<128x1xf32>
    %143 = vector.broadcast %142 : vector<128x1xf32> to vector<128x128xf32>
    %144 = arith.subf %134, %143 : vector<128x128xf32>
    %145 = arith.mulf %144, %144 : vector<128x128xf32>
    %cst_49 = arith.constant dense<0.000000e+00> : vector<128xf32>
    %146 = vector.multi_reduction <add>, %145, %cst_49 [1] : vector<128x128xf32> to vector<128xf32>
    %147 = vector.shape_cast %146 : vector<128xf32> to vector<128x1xf32>
    %cst_50 = arith.constant 1.280000e+02 : f32
    %148 = vector.broadcast %cst_50 : f32 to vector<128x1xf32>
    %149 = arith.divf %147, %148 : vector<128x1xf32>
    %150 = vector.broadcast %142 : vector<128x1xf32> to vector<128x128xf32>
    %151 = arith.subf %134, %150 : vector<128x128xf32>
    %cst_51 = arith.constant 1.000000e-07 : f32
    %152 = vector.broadcast %cst_51 : f32 to vector<128x1xf32>
    %153 = arith.addf %149, %152 : vector<128x1xf32>
    %154 = math.rsqrt %153 : vector<128x1xf32>
    %155 = vector.broadcast %154 : vector<128x1xf32> to vector<128x128xf32>
    %156 = arith.mulf %151, %155 : vector<128x128xf32>
    %157 = vector.shape_cast %136 : vector<128xf32> to vector<1x128xf32>
    %158 = vector.broadcast %157 : vector<1x128xf32> to vector<128x128xf32>
    %159 = arith.mulf %156, %158 : vector<128x128xf32>
    %160 = vector.shape_cast %138 : vector<128xf32> to vector<1x128xf32>
    %161 = vector.broadcast %160 : vector<1x128xf32> to vector<128x128xf32>
    %162 = arith.addf %159, %161 : vector<128x128xf32>
    %163 = arith.truncf %162 : vector<128x128xf32> to vector<128x128xbf16>
    %c0_52 = arith.constant 0 : index
    %c0_53 = arith.constant 0 : index
    %164 = vector.load %arg10[%c0_52, %c0_53] : memref<128x512xbf16, #tpu.memory_space<vmem>>, vector<128x512xbf16>
    %cst_54 = arith.constant dense<0.000000e+00> : vector<128x512xf32>
    %165 = tpu.matmul %163, %164, %cst_54 {dimension_numbers = #tpu.dot_dimension_numbers<[1], [0], [0], [1], [0, 0, 1, 1], [], []>} : vector<128x128xbf16>, vector<128x512xbf16>, vector<128x512xf32> -> vector<128x512xf32>
    %c0_55 = arith.constant 0 : index
    %c0_56 = arith.constant 0 : index
    %166 = vector.load %arg11[%c0_55, %c0_56] : memref<1x512xf32, #tpu.memory_space<vmem>>, vector<1x512xf32>
    %167 = vector.shape_cast %166 : vector<1x512xf32> to vector<512xf32>
    %168 = vector.shape_cast %167 : vector<512xf32> to vector<1x512xf32>
    %169 = vector.broadcast %168 : vector<1x512xf32> to vector<128x512xf32>
    %170 = arith.addf %165, %169 : vector<128x512xf32>
    %cst_57 = arith.constant 5.000000e-01 : f32
    %171 = vector.broadcast %cst_57 : f32 to vector<128x512xf32>
    %172 = arith.mulf %171, %170 : vector<128x512xf32>
    %cst_58 = arith.constant 4.471500e-02 : f32
    %173 = vector.broadcast %cst_58 : f32 to vector<128x512xf32>
    %174 = arith.mulf %173, %170 : vector<128x512xf32>
    %175 = arith.mulf %174, %170 : vector<128x512xf32>
    %176 = arith.mulf %175, %170 : vector<128x512xf32>
    %177 = arith.addf %170, %176 : vector<128x512xf32>
    %cst_59 = arith.constant 0.797884583 : f32
    %178 = vector.broadcast %cst_59 : f32 to vector<128x512xf32>
    %179 = arith.mulf %178, %177 : vector<128x512xf32>
    %180 = math.tanh %179 : vector<128x512xf32>
    %cst_60 = arith.constant 1.000000e+00 : f32
    %181 = vector.broadcast %cst_60 : f32 to vector<128x512xf32>
    %182 = arith.addf %181, %180 : vector<128x512xf32>
    %183 = arith.mulf %172, %182 : vector<128x512xf32>
    %184 = arith.truncf %183 : vector<128x512xf32> to vector<128x512xbf16>
    %c0_61 = arith.constant 0 : index
    %c0_62 = arith.constant 0 : index
    %185 = vector.load %arg12[%c0_61, %c0_62] : memref<512x128xbf16, #tpu.memory_space<vmem>>, vector<512x128xbf16>
    %cst_63 = arith.constant dense<0.000000e+00> : vector<128x128xf32>
    %186 = tpu.matmul %184, %185, %cst_63 {dimension_numbers = #tpu.dot_dimension_numbers<[1], [0], [0], [1], [0, 0, 1, 1], [], []>} : vector<128x512xbf16>, vector<512x128xbf16>, vector<128x128xf32> -> vector<128x128xf32>
    %c0_64 = arith.constant 0 : index
    %c0_65 = arith.constant 0 : index
    %187 = vector.load %arg13[%c0_64, %c0_65] : memref<1x128xf32, #tpu.memory_space<vmem>>, vector<1x128xf32>
    %188 = vector.shape_cast %187 : vector<1x128xf32> to vector<128xf32>
    %189 = vector.shape_cast %188 : vector<128xf32> to vector<1x128xf32>
    %190 = vector.broadcast %189 : vector<1x128xf32> to vector<128x128xf32>
    %191 = arith.addf %186, %190 : vector<128x128xf32>
    %192 = arith.addf %134, %191 : vector<128x128xf32>
    %193 = vector.shape_cast %192 : vector<128x128xf32> to vector<8x16x128xf32>
    %c0_66 = arith.constant 0 : index
    %c0_67 = arith.constant 0 : index
    %c0_68 = arith.constant 0 : index
    %194 = vector.load %arg14[%c0_66, %c0_67, %c0_68] : memref<8x16x128xf32, #tpu.memory_space<vmem>>, vector<8x16x128xf32>
    tpu.vector_store %arg14[%c0_66, %c0_67, %c0_68], %193 {strides = array<i32>} : memref<8x16x128xf32, #tpu.memory_space<vmem>>, vector<8x16x128xf32>,
    return
  }
  func.func @transform_0(%arg0: i32) -> (i32, i32, i32) {
    %c0_i32 = arith.constant 0 : i32
    %c0_i32_0 = arith.constant 0 : i32
    %c0_i32_1 = arith.constant 0 : i32
    return %arg0, %c0_i32, %c0_i32_0 : i32, i32, i32
  }
  func.func @transform_1(%arg0: i32) -> (i32, i32) {
    %c0_i32 = arith.constant 0 : i32
    %c0_i32_0 = arith.constant 0 : i32
    %c0_i32_1 = arith.constant 0 : i32
    return %c0_i32, %c0_i32_0 : i32, i32
  }
  func.func @transform_2(%arg0: i32) -> (i32, i32) {
    %c0_i32 = arith.constant 0 : i32
    %c0_i32_0 = arith.constant 0 : i32
    %c0_i32_1 = arith.constant 0 : i32
    return %c0_i32, %c0_i32_0 : i32, i32
  }
  func.func @transform_3(%arg0: i32) -> (i32, i32) {
    %c0_i32 = arith.constant 0 : i32
    %c0_i32_0 = arith.constant 0 : i32
    %c0_i32_1 = arith.constant 0 : i32
    return %c0_i32, %c0_i32_0 : i32, i32
  }
  func.func @transform_4(%arg0: i32) -> (i32, i32) {
    %c0_i32 = arith.constant 0 : i32
    %c0_i32_0 = arith.constant 0 : i32
    %c0_i32_1 = arith.constant 0 : i32
    return %c0_i32, %c0_i32_0 : i32, i32
  }
  func.func @transform_5(%arg0: i32) -> (i32, i32) {
    %c0_i32 = arith.constant 0 : i32
    %c0_i32_0 = arith.constant 0 : i32
    %c0_i32_1 = arith.constant 0 : i32
    return %c0_i32, %c0_i32_0 : i32, i32
  }
  func.func @transform_6(%arg0: i32) -> (i32, i32) {
    %c0_i32 = arith.constant 0 : i32
    %c0_i32_0 = arith.constant 0 : i32
    %c0_i32_1 = arith.constant 0 : i32
    return %c0_i32, %c0_i32_0 : i32, i32
  }
  func.func @transform_7(%arg0: i32) -> (i32, i32) {
    %c0_i32 = arith.constant 0 : i32
    %c0_i32_0 = arith.constant 0 : i32
    %c0_i32_1 = arith.constant 0 : i32
    return %c0_i32, %c0_i32_0 : i32, i32
  }
  func.func @transform_8(%arg0: i32) -> (i32, i32) {
    %c0_i32 = arith.constant 0 : i32
    %c0_i32_0 = arith.constant 0 : i32
    %c0_i32_1 = arith.constant 0 : i32
    return %c0_i32, %c0_i32_0 : i32, i32
  }
  func.func @transform_9(%arg0: i32) -> (i32, i32) {
    %c0_i32 = arith.constant 0 : i32
    %c0_i32_0 = arith.constant 0 : i32
    %c0_i32_1 = arith.constant 0 : i32
    return %c0_i32, %c0_i32_0 : i32, i32
  }
  func.func @transform_10(%arg0: i32) -> (i32, i32) {
    %c0_i32 = arith.constant 0 : i32
    %c0_i32_0 = arith.constant 0 : i32
    %c0_i32_1 = arith.constant 0 : i32
    return %c0_i32, %c0_i32_0 : i32, i32
  }
  func.func @transform_11(%arg0: i32) -> (i32, i32) {
    %c0_i32 = arith.constant 0 : i32
    %c0_i32_0 = arith.constant 0 : i32
    %c0_i32_1 = arith.constant 0 : i32
    return %c0_i32, %c0_i32_0 : i32, i32
  }
  func.func @transform_12(%arg0: i32) -> (i32, i32) {
    %c0_i32 = arith.constant 0 : i32
    %c0_i32_0 = arith.constant 0 : i32
    %c0_i32_1 = arith.constant 0 : i32
    return %c0_i32, %c0_i32_0 : i32, i32
  }
  func.func @transform_13(%arg0: i32) -> (i32, i32, i32) {
    %c0_i32 = arith.constant 0 : i32
    %c0_i32_0 = arith.constant 0 : i32
    %c0_i32_1 = arith.constant 0 : i32
    return %arg0, %c0_i32, %c0_i32_0 : i32, i32, i32
  }
}

</mosaic_0001>

<llo_original>
// kernel: tpu_custom_call.1
$region0: #{tpu_custom_call.1}
  #allocation0 [shape = 'u32[]', space=smem, size = 0x4, offset = 0x4, fixed_abs, tag = 'smem constant byte address 0x4 - core index']
  #allocation1 [shape = 'u32[72,128]{1,0:T(1,128)}', space=vmem, size = 0x9000, scoped, tag = 'internal scratch']
  %s0 = inlined_call_operand.hbm [shape: f32[16,16,128], index: 0, kind: input, shape index: {}]
  %s1 = inlined_call_operand.hbm [shape: f32[128,128], index: 1, kind: input, shape index: {}]
  %s2 = inlined_call_operand.vmem [shape: f32[1,128], index: 2, kind: input, shape index: {}]
  %s3 = inlined_call_operand.vmem [shape: f32[1,128], index: 3, kind: input, shape index: {}]
  %s4 = inlined_call_operand.hbm [shape: bf16[128,384], index: 4, kind: input, shape index: {}]
  %s5 = inlined_call_operand.hbm [shape: bf16[128,128], index: 5, kind: input, shape index: {}]
  %s6 = inlined_call_operand.vmem [shape: f32[1,128], index: 6, kind: input, shape index: {}]
  %s7 = inlined_call_operand.hbm [shape: f32[1,128], index: 7, kind: input, shape index: {}]
  %s8 = inlined_call_operand.hbm [shape: f32[1,128], index: 8, kind: input, shape index: {}]
  %s9 = inlined_call_operand.hbm [shape: bf16[128,512], index: 9, kind: input, shape index: {}]
  %s10 = inlined_call_operand.vmem [shape: f32[1,512], index: 10, kind: input, shape index: {}]
  %s11 = inlined_call_operand.hbm [shape: bf16[512,128], index: 11, kind: input, shape index: {}]
  %s12 = inlined_call_operand.vmem [shape: f32[1,128], index: 12, kind: input, shape index: {}]
  %s13 = inlined_call_operand.hbm [shape: f32[16,16,128], index: 13, kind: output, shape index: {}]
  %s14 = sld [smem:[#allocation0]]
  $region117: #{tpu_custom_call.1} parent=0
    _
  %s16 = ssub.s32 1, %s14
  %s17 = scalar_select 0, %s16, %s14
  $region1: #{tpu_custom_call.1} parent=0
    #allocation2 [shape = 'u8[131072]{0}', space=vmem, size = 0x20000, scoped, tag = 'input window, operand 0']
    #allocation3 [shape = 's32[2]{0}', space=sflag, size = 0x8, scoped, tag = 'scoped memory for tpu_custom_call.1']
    #allocation4 [shape = 's32[2]{0}', space=sflag, size = 0x8, scoped, tag = 'scoped memory for tpu_custom_call.1']
    #allocation5 [shape = 'u8[65536]{0}', space=vmem, size = 0x10000, scoped, tag = 'input window, operand 1, single buffered']
    #allocation6 [shape = 's32[1]{0}', space=sflag, size = 0x4, scoped, tag = 'scoped memory for tpu_custom_call.1']
    #allocation7 [shape = 'u8[98304]{0}', space=vmem, size = 0x18000, scoped, tag = 'input window, operand 4, single buffered']
    #allocation8 [shape = 'u8[32768]{0}', space=vmem, size = 0x8000, scoped, tag = 'input window, operand 5, single buffered']
    #allocation9 [shape = 's32[1]{0}', space=sflag, size = 0x4, scoped, tag = 'scoped memory for tpu_custom_call.1']
    #allocation10 [shape = 'u8[512]{0}', space=vmem, size = 0x400, scoped, tag = 'input window, operand 7, single buffered']
    #allocation11 [shape = 'u8[512]{0}', space=vmem, size = 0x400, scoped, tag = 'input window, operand 8, single buffered']
    #allocation12 [shape = 's32[1]{0}', space=sflag, size = 0x4, scoped, tag = 'scoped memory for tpu_custom_call.1']
    #allocation13 [shape = 'u8[131072]{0}', space=vmem, size = 0x20000, scoped, tag = 'input window, operand 9, single buffered']
    #allocation14 [shape = 'u8[131072]{0}', space=vmem, size = 0x20000, scoped, tag = 'input window, operand 11, single buffered']
    #allocation15 [shape = 's32[1]{0}', space=sflag, size = 0x4, scoped, tag = 'scoped memory for tpu_custom_call.1']
    #allocation16 [shape = 'u8[131072]{0}', space=vmem, size = 0x20000, scoped, tag = 'output window, operand 0']
    %18 = vsyncpa [#allocation3], 0
    %s19 = scalar_lea.sflag [#allocation3], 1
    %20 = vsyncpa %s19, 0
    %21 = vsyncpa [#allocation6], 0
    %22 = vsyncpa [#allocation9], 0
    %23 = vsyncpa [#allocation12], 0
    %24 = vsyncpa [#allocation15], 0
    %25 = vsyncpa [#allocation4], 0
    %s26 = scalar_lea.sflag [#allocation4], 1
    %27 = vsyncpa %s26, 0
    loop: start=0, step=1, limit=4
    $region2: #{tpu_custom_call.1} parent=1 // loop_pre_header
      _
    $region3: #{tpu_custom_call.1} parent=1 // loop_header
      %s29 = sphi 0, %s33
      %p30 = scmp.ge.s32.totalorder %s29, 4
      %s39 = sphi 0, %s41
      %s42 = sphi 0, %s39
      %s43 = sphi 0, %s42
      %s59 = sphi 0, %s43
      %s63 = sphi 0, %s63
      %s65 = sphi 0, %s63
      %s66 = sphi 0, %s65
      %s80 = sphi 0, %s66
      %s84 = sphi 0, %s84
      %s86 = sphi 0, %s84
      %s87 = sphi 0, %s86
      %s101 = sphi 0, %s87
      %s105 = sphi 0, %s105
      %s107 = sphi 0, %s105
      %s108 = sphi 0, %s107
      %s122 = sphi 0, %s108
      %s126 = sphi 0, %s126
      %s128 = sphi 0, %s126
      %s129 = sphi 0, %s128
      %s143 = sphi 0, %s129
      %s147 = sphi 0, %s147
      %s149 = sphi 0, %s147
      %s150 = sphi 0, %s149
      %s164 = sphi 0, %s150
      %s168 = sphi 0, %s168
      %s170 = sphi 0, %s168
      %s171 = sphi 0, %s170
      %s185 = sphi 0, %s171
      %s189 = sphi 0, %s189
      %s191 = sphi 0, %s189
      %s192 = sphi 0, %s191
      %s206 = sphi 0, %s192
      %s210 = sphi 0, %s210
      %s212 = sphi 0, %s210
      %s213 = sphi 0, %s212
      %s227 = sphi 0, %s213
      %s231 = sphi 0, %s231
      %s233 = sphi 0, %s231
      %s234 = sphi 0, %s233
      %s248 = sphi 0, %s234
      %s252 = sphi 0, %s252
      %s254 = sphi 0, %s252
      %s255 = sphi 0, %s254
      %s269 = sphi 0, %s255
      %s273 = sphi 0, %s273
      %s275 = sphi 0, %s273
      %s276 = sphi 0, %s275
      %s290 = sphi 0, %s276
      %s294 = sphi 0, %s294
      %s296 = sphi 0, %s294
      %s297 = sphi 0, %s296
      %s311 = sphi 0, %s297
      %s317 = sphi 0, %s319
      %s320 = sphi 0, %s317
      %s321 = sphi 0, %s320
      %s337 = sphi 0, %s321
    $region4: #{tpu_custom_call.1} parent=1 // loop_header_branch
      %32 = sbr.rel (%p30) target = $region8
    $region5: #{tpu_custom_call.1} parent=1 // loop_body
      %s34 = ssub.s32 %s29, 1
      %s35 = ssub.s32 %s29, 2
      %s36 = sadd.s32 %s29, 1
      %s37 = ssub.s32 %s29, %s36
      %p38 = scmp.eq.s32.totalorder %s37, 0
      %s40 = sadd.s32 %s39, 1
      %s41 = scalar_select %p38, %s39, %s40
      %p44 = pneg %p38
      %p45 = scmp.eq.s32.totalorder %s29, 1
      %p46 = por %p44, %p45
      %p47 = scmp.ne.s32.totalorder %s39, %s42
      %p48 = scmp.eq.s32.totalorder %s29, 0
      %p49 = por %p47, %p48
      %p50 = scmp.ne.s32.totalorder %s39, %s42
      %p51 = scmp.eq.s32.totalorder %s34, 1
      %p52 = por %p50, %p51
      %p53 = scmp.ne.s32.totalorder %s42, %s43
      %p54 = scmp.eq.s32.totalorder %s34, 0
      %p55 = por %p53, %p54
      %p56 = scmp.ne.s32.totalorder %s42, %s43
      %p57 = scmp.eq.s32.totalorder %s35, 1
      %p58 = por %p56, %p57
      %p60 = scmp.ne.s32.totalorder %s43, %s59
      %p61 = scmp.eq.s32.totalorder %s35, 0
      %p62 = por %p60, %p61
      %s64 = sadd.s32 %s63, 1
      %p67 = scmp.eq.s32.totalorder %s29, 1
      %p68 = scmp.ne.s32.totalorder %s63, %s65
      %p69 = scmp.eq.s32.totalorder %s29, 0
      %p70 = por %p68, %p69
      %p71 = scmp.ne.s32.totalorder %s63, %s65
      %p72 = scmp.eq.s32.totalorder %s34, 1
      %p73 = por %p71, %p72
      %p74 = scmp.ne.s32.totalorder %s65, %s66
      %p75 = scmp.eq.s32.totalorder %s34, 0
      %p76 = por %p74, %p75
      %p77 = scmp.ne.s32.totalorder %s65, %s66
      %p78 = scmp.eq.s32.totalorder %s35, 1
      %p79 = por %p77, %p78
      %p81 = scmp.ne.s32.totalorder %s66, %s80
      %p82 = scmp.eq.s32.totalorder %s35, 0
      %p83 = por %p81, %p82
      %s85 = sadd.s32 %s84, 1
      %p88 = scmp.eq.s32.totalorder %s29, 1
      %p89 = scmp.ne.s32.totalorder %s84, %s86
      %p90 = scmp.eq.s32.totalorder %s29, 0
      %p91 = por %p89, %p90
      %p92 = scmp.ne.s32.totalorder %s84, %s86
      %p93 = scmp.eq.s32.totalorder %s34, 1
      %p94 = por %p92, %p93
      %p95 = scmp.ne.s32.totalorder %s86, %s87
      %p96 = scmp.eq.s32.totalorder %s34, 0
      %p97 = por %p95, %p96
      %p98 = scmp.ne.s32.totalorder %s86, %s87
      %p99 = scmp.eq.s32.totalorder %s35, 1
      %p100 = por %p98, %p99
      %p102 = scmp.ne.s32.totalorder %s87, %s101
      %p103 = scmp.eq.s32.totalorder %s35, 0
      %p104 = por %p102, %p103
      %s106 = sadd.s32 %s105, 1
      %p109 = scmp.eq.s32.totalorder %s29, 1
      %p110 = scmp.ne.s32.totalorder %s105, %s107
      %p111 = scmp.eq.s32.totalorder %s29, 0
      %p112 = por %p110, %p111
      %p113 = scmp.ne.s32.totalorder %s105, %s107
      %p114 = scmp.eq.s32.totalorder %s34, 1
      %p115 = por %p113, %p114
      %p116 = scmp.ne.s32.totalorder %s107, %s108
      %p117 = scmp.eq.s32.totalorder %s34, 0
      %p118 = por %p116, %p117
      %p119 = scmp.ne.s32.totalorder %s107, %s108
      %p120 = scmp.eq.s32.totalorder %s35, 1
      %p121 = por %p119, %p120
      %p123 = scmp.ne.s32.totalorder %s108, %s122
      %p124 = scmp.eq.s32.totalorder %s35, 0
      %p125 = por %p123, %p124
      %s127 = sadd.s32 %s126, 1
      %p130 = scmp.eq.s32.totalorder %s29, 1
      %p131 = scmp.ne.s32.totalorder %s126, %s128
      %p132 = scmp.eq.s32.totalorder %s29, 0
      %p133 = por %p131, %p132
      %p134 = scmp.ne.s32.totalorder %s126, %s128
      %p135 = scmp.eq.s32.totalorder %s34, 1
      %p136 = por %p134, %p135
      %p137 = scmp.ne.s32.totalorder %s128, %s129
      %p138 = scmp.eq.s32.totalorder %s34, 0
      %p139 = por %p137, %p138
      %p140 = scmp.ne.s32.totalorder %s128, %s129
      %p141 = scmp.eq.s32.totalorder %s35, 1
      %p142 = por %p140, %p141
      %p144 = scmp.ne.s32.totalorder %s129, %s143
      %p145 = scmp.eq.s32.totalorder %s35, 0
      %p146 = por %p144, %p145
      %s148 = sadd.s32 %s147, 1
      %p151 = scmp.eq.s32.totalorder %s29, 1
      %p152 = scmp.ne.s32.totalorder %s147, %s149
      %p153 = scmp.eq.s32.totalorder %s29, 0
      %p154 = por %p152, %p153
      %p155 = scmp.ne.s32.totalorder %s147, %s149
      %p156 = scmp.eq.s32.totalorder %s34, 1
      %p157 = por %p155, %p156
      %p158 = scmp.ne.s32.totalorder %s149, %s150
      %p159 = scmp.eq.s32.totalorder %s34, 0
      %p160 = por %p158, %p159
      %p161 = scmp.ne.s32.totalorder %s149, %s150
      %p162 = scmp.eq.s32.totalorder %s35, 1
      %p163 = por %p161, %p162
      %p165 = scmp.ne.s32.totalorder %s150, %s164
      %p166 = scmp.eq.s32.totalorder %s35, 0
      %p167 = por %p165, %p166
      %s169 = sadd.s32 %s168, 1
      %p172 = scmp.eq.s32.totalorder %s29, 1
      %p173 = scmp.ne.s32.totalorder %s168, %s170
      %p174 = scmp.eq.s32.totalorder %s29, 0
      %p175 = por %p173, %p174
      %p176 = scmp.ne.s32.totalorder %s168, %s170
      %p177 = scmp.eq.s32.totalorder %s34, 1
      %p178 = por %p176, %p177
      %p179 = scmp.ne.s32.totalorder %s170, %s171
      %p180 = scmp.eq.s32.totalorder %s34, 0
      %p181 = por %p179, %p180
      %p182 = scmp.ne.s32.totalorder %s170, %s171
      %p183 = scmp.eq.s32.totalorder %s35, 1
      %p184 = por %p182, %p183
      %p186 = scmp.ne.s32.totalorder %s171, %s185
      %p187 = scmp.eq.s32.totalorder %s35, 0
      %p188 = por %p186, %p187
      %s190 = sadd.s32 %s189, 1
      %p193 = scmp.eq.s32.totalorder %s29, 1
      %p194 = scmp.ne.s32.totalorder %s189, %s191
      %p195 = scmp.eq.s32.totalorder %s29, 0
      %p196 = por %p194, %p195
      %p197 = scmp.ne.s32.totalorder %s189, %s191
      %p198 = scmp.eq.s32.totalorder %s34, 1
      %p199 = por %p197, %p198
      %p200 = scmp.ne.s32.totalorder %s191, %s192
      %p201 = scmp.eq.s32.totalorder %s34, 0
      %p202 = por %p200, %p201
      %p203 = scmp.ne.s32.totalorder %s191, %s192
      %p204 = scmp.eq.s32.totalorder %s35, 1
      %p205 = por %p203, %p204
      %p207 = scmp.ne.s32.totalorder %s192, %s206
      %p208 = scmp.eq.s32.totalorder %s35, 0
      %p209 = por %p207, %p208
      %s211 = sadd.s32 %s210, 1
      %p214 = scmp.eq.s32.totalorder %s29, 1
      %p215 = scmp.ne.s32.totalorder %s210, %s212
      %p216 = scmp.eq.s32.totalorder %s29, 0
      %p217 = por %p215, %p216
      %p218 = scmp.ne.s32.totalorder %s210, %s212
      %p219 = scmp.eq.s32.totalorder %s34, 1
      %p220 = por %p218, %p219
      %p221 = scmp.ne.s32.totalorder %s212, %s213
      %p222 = scmp.eq.s32.totalorder %s34, 0
      %p223 = por %p221, %p222
      %p224 = scmp.ne.s32.totalorder %s212, %s213
      %p225 = scmp.eq.s32.totalorder %s35, 1
      %p226 = por %p224, %p225
      %p228 = scmp.ne.s32.totalorder %s213, %s227
      %p229 = scmp.eq.s32.totalorder %s35, 0
      %p230 = por %p228, %p229
      %s232 = sadd.s32 %s231, 1
      %p235 = scmp.eq.s32.totalorder %s29, 1
      %p236 = scmp.ne.s32.totalorder %s231, %s233
      %p237 = scmp.eq.s32.totalorder %s29, 0
      %p238 = por %p236, %p237
      %p239 = scmp.ne.s32.totalorder %s231, %s233
      %p240 = scmp.eq.s32.totalorder %s34, 1
      %p241 = por %p239, %p240
      %p242 = scmp.ne.s32.totalorder %s233, %s234
      %p243 = scmp.eq.s32.totalorder %s34, 0
      %p244 = por %p242, %p243
      %p245 = scmp.ne.s32.totalorder %s233, %s234
      %p246 = scmp.eq.s32.totalorder %s35, 1
      %p247 = por %p245, %p246
      %p249 = scmp.ne.s32.totalorder %s234, %s248
      %p250 = scmp.eq.s32.totalorder %s35, 0
      %p251 = por %p249, %p250
      %s253 = sadd.s32 %s252, 1
      %p256 = scmp.eq.s32.totalorder %s29, 1
      %p257 = scmp.ne.s32.totalorder %s252, %s254
      %p258 = scmp.eq.s32.totalorder %s29, 0
      %p259 = por %p257, %p258
      %p260 = scmp.ne.s32.totalorder %s252, %s254
      %p261 = scmp.eq.s32.totalorder %s34, 1
      %p262 = por %p260, %p261
      %p263 = scmp.ne.s32.totalorder %s254, %s255
      %p264 = scmp.eq.s32.totalorder %s34, 0
      %p265 = por %p263, %p264
      %p266 = scmp.ne.s32.totalorder %s254, %s255
      %p267 = scmp.eq.s32.totalorder %s35, 1
      %p268 = por %p266, %p267
      %p270 = scmp.ne.s32.totalorder %s255, %s269
      %p271 = scmp.eq.s32.totalorder %s35, 0
      %p272 = por %p270, %p271
      %s274 = sadd.s32 %s273, 1
      %p277 = scmp.eq.s32.totalorder %s29, 1
      %p278 = scmp.ne.s32.totalorder %s273, %s275
      %p279 = scmp.eq.s32.totalorder %s29, 0
      %p280 = por %p278, %p279
      %p281 = scmp.ne.s32.totalorder %s273, %s275
      %p282 = scmp.eq.s32.totalorder %s34, 1
      %p283 = por %p281, %p282
      %p284 = scmp.ne.s32.totalorder %s275, %s276
      %p285 = scmp.eq.s32.totalorder %s34, 0
      %p286 = por %p284, %p285
      %p287 = scmp.ne.s32.totalorder %s275, %s276
      %p288 = scmp.eq.s32.totalorder %s35, 1
      %p289 = por %p287, %p288
      %p291 = scmp.ne.s32.totalorder %s276, %s290
      %p292 = scmp.eq.s32.totalorder %s35, 0
      %p293 = por %p291, %p292
      %s295 = sadd.s32 %s294, 1
      %p298 = scmp.eq.s32.totalorder %s29, 1
      %p299 = scmp.ne.s32.totalorder %s294, %s296
      %p300 = scmp.eq.s32.totalorder %s29, 0
      %p301 = por %p299, %p300
      %p302 = scmp.ne.s32.totalorder %s294, %s296
      %p303 = scmp.eq.s32.totalorder %s34, 1
      %p304 = por %p302, %p303
      %p305 = scmp.ne.s32.totalorder %s296, %s297
      %p306 = scmp.eq.s32.totalorder %s34, 0
      %p307 = por %p305, %p306
      %p308 = scmp.ne.s32.totalorder %s296, %s297
      %p309 = scmp.eq.s32.totalorder %s35, 1
      %p310 = por %p308, %p309
      %p312 = scmp.ne.s32.totalorder %s297, %s311
      %p313 = scmp.eq.s32.totalorder %s35, 0
      %p314 = por %p312, %p313
      %s315 = ssub.s32 %s29, %s36
      %p316 = scmp.eq.s32.totalorder %s315, 0
      %s318 = sadd.s32 %s317, 1
      %s319 = scalar_select %p316, %s317, %s318
      %p322 = pneg %p316
      %p323 = scmp.eq.s32.totalorder %s29, 1
      %p324 = por %p322, %p323
      %p325 = scmp.ne.s32.totalorder %s317, %s320
      %p326 = scmp.eq.s32.totalorder %s29, 0
      %p327 = por %p325, %p326
      %p328 = scmp.ne.s32.totalorder %s317, %s320
      %p329 = scmp.eq.s32.totalorder %s34, 1
      %p330 = por %p328, %p329
      %p331 = scmp.ne.s32.totalorder %s320, %s321
      %p332 = scmp.eq.s32.totalorder %s34, 0
      %p333 = por %p331, %p332
      %p334 = scmp.ne.s32.totalorder %s320, %s321
      %p335 = scmp.eq.s32.totalorder %s35, 1
      %p336 = por %p334, %p335
      %p338 = scmp.ne.s32.totalorder %s321, %s337
      %p339 = scmp.eq.s32.totalorder %s35, 0
      %p340 = por %p338, %p339
      %p341 = scmp.le.s32.totalorder 1, %s29
      %p342 = scmp.lt.s32.totalorder %s29, 3
      %p343 = pnand %p341, %p342
      %p344 = pneg %p343
      // Predicated region
      $region9: #{tpu_custom_call.1} parent=5 // pred_check
        _
      $region10: #{tpu_custom_call.1} parent=5 // pred_check_branch
        %346 = sbr.rel (%p343) target = $region12
      $region11: #{tpu_custom_call.1} parent=5 // pred_region
        %s347 = ssub.s32 %s29, 1
        // Predicated region
        $region13: #{tpu_custom_call.1} parent=11 // pred_check
          %p348 = pneg %p76
        $region14: #{tpu_custom_call.1} parent=11 // pred_check_branch
          %350 = sbr.rel (%p348) target = $region16
        $region15: #{tpu_custom_call.1} parent=11 // pred_region
          %352 = vsyncadd [#allocation6], 0
          %s353 = sshll.u32 %s1, 4
          %s354 = int_to_ptr.hbm [resolvable:$true] %s353
          %s355 = sshll.u32 [#allocation5], 4
          %s356 = int_to_ptr.vmem [resolvable:$true] %s355
          %361 = dma.hbm_to_vmem [thread:$0]  %s354, 2048, %s356, [#allocation6], 128, 128, 8
        $region16: #{tpu_custom_call.1} parent=11 // pred_fallthru
          _
        // Predicated region
        $region17: #{tpu_custom_call.1} parent=11 // pred_check
          %p362 = pneg %p97
        $region18: #{tpu_custom_call.1} parent=11 // pred_check_branch
          %364 = sbr.rel (%p362) target = $region20
        $region19: #{tpu_custom_call.1} parent=11 // pred_region
          _
        $region20: #{tpu_custom_call.1} parent=11 // pred_fallthru
          _
        // Predicated region
        $region21: #{tpu_custom_call.1} parent=11 // pred_check
          %p365 = pneg %p118
        $region22: #{tpu_custom_call.1} parent=11 // pred_check_branch
          %367 = sbr.rel (%p365) target = $region24
        $region23: #{tpu_custom_call.1} parent=11 // pred_region
          _
        $region24: #{tpu_custom_call.1} parent=11 // pred_fallthru
          _
        // Predicated region
        $region25: #{tpu_custom_call.1} parent=11 // pred_check
          %p368 = pneg %p139
        $region26: #{tpu_custom_call.1} parent=11 // pred_check_branch
          %370 = sbr.rel (%p368) target = $region28
        $region27: #{tpu_custom_call.1} parent=11 // pred_region
          %372 = vsyncadd [#allocation6], 0
          %s373 = sshll.u32 %s4, 4
          %s374 = int_to_ptr.hbm [resolvable:$true] %s373
          %s375 = sshll.u32 [#allocation7], 4
          %s376 = int_to_ptr.vmem [resolvable:$true] %s375
          %381 = dma.hbm_to_vmem [thread:$0]  %s374, 3072, %s376, [#allocation6], 192, 192, 12
        $region28: #{tpu_custom_call.1} parent=11 // pred_fallthru
          _
        // Predicated region
        $region29: #{tpu_custom_call.1} parent=11 // pred_check
          %p382 = pneg %p160
        $region30: #{tpu_custom_call.1} parent=11 // pred_check_branch
          %384 = sbr.rel (%p382) target = $region32
        $region31: #{tpu_custom_call.1} parent=11 // pred_region
          %386 = vsyncadd [#allocation9], 0
          %s387 = sshll.u32 %s5, 4
          %s388 = int_to_ptr.hbm [resolvable:$true] %s387
          %s389 = sshll.u32 [#allocation8], 4
          %s390 = int_to_ptr.vmem [resolvable:$true] %s389
          %395 = dma.hbm_to_vmem [thread:$0]  %s388, 1024, %s390, [#allocation9], 64, 64, 4
        $region32: #{tpu_custom_call.1} parent=11 // pred_fallthru
          _
        // Predicated region
        $region33: #{tpu_custom_call.1} parent=11 // pred_check
          %p396 = pneg %p181
        $region34: #{tpu_custom_call.1} parent=11 // pred_check_branch
          %398 = sbr.rel (%p396) target = $region36
        $region35: #{tpu_custom_call.1} parent=11 // pred_region
          _
        $region36: #{tpu_custom_call.1} parent=11 // pred_fallthru
          _
        // Predicated region
        $region37: #{tpu_custom_call.1} parent=11 // pred_check
          %p399 = pneg %p202
        $region38: #{tpu_custom_call.1} parent=11 // pred_check_branch
          %401 = sbr.rel (%p399) target = $region40
        $region39: #{tpu_custom_call.1} parent=11 // pred_region
          %403 = vsyncadd [#allocation9], 0
          %s405 = sshll.u32 %s7, 4
          %s406 = int_to_ptr.hbm [resolvable:$true] %s405
          %s407 = sshll.u32 [#allocation10], 4
          %s408 = int_to_ptr.vmem [resolvable:$true] %s407
          %410 = dma.hbm_to_vmem [thread:$0]  %s406, 16, %s408, [#allocation9]
        $region40: #{tpu_custom_call.1} parent=11 // pred_fallthru
          _
        // Predicated region
        $region41: #{tpu_custom_call.1} parent=11 // pred_check
          %p411 = pneg %p223
        $region42: #{tpu_custom_call.1} parent=11 // pred_check_branch
          %413 = sbr.rel (%p411) target = $region44
        $region43: #{tpu_custom_call.1} parent=11 // pred_region
          %415 = vsyncadd [#allocation12], 0
          %s417 = sshll.u32 %s8, 4
          %s418 = int_to_ptr.hbm [resolvable:$true] %s417
          %s419 = sshll.u32 [#allocation11], 4
          %s420 = int_to_ptr.vmem [resolvable:$true] %s419
          %422 = dma.hbm_to_vmem [thread:$0]  %s418, 16, %s420, [#allocation12]
        $region44: #{tpu_custom_call.1} parent=11 // pred_fallthru
          _
        // Predicated region
        $region45: #{tpu_custom_call.1} parent=11 // pred_check
          %p423 = pneg %p244
        $region46: #{tpu_custom_call.1} parent=11 // pred_check_branch
          %425 = sbr.rel (%p423) target = $region48
        $region47: #{tpu_custom_call.1} parent=11 // pred_region
          %427 = vsyncadd [#allocation12], 0
          %s428 = sshll.u32 %s9, 4
          %s429 = int_to_ptr.hbm [resolvable:$true] %s428
          %s430 = sshll.u32 [#allocation13], 4
          %s431 = int_to_ptr.vmem [resolvable:$true] %s430
          %436 = dma.hbm_to_vmem [thread:$0]  %s429, 4096, %s431, [#allocation12], 256, 256, 16
        $region48: #{tpu_custom_call.1} parent=11 // pred_fallthru
          _
        // Predicated region
        $region49: #{tpu_custom_call.1} parent=11 // pred_check
          %p437 = pneg %p265
        $region50: #{tpu_custom_call.1} parent=11 // pred_check_branch
          %439 = sbr.rel (%p437) target = $region52
        $region51: #{tpu_custom_call.1} parent=11 // pred_region
          _
        $region52: #{tpu_custom_call.1} parent=11 // pred_fallthru
          _
        // Predicated region
        $region53: #{tpu_custom_call.1} parent=11 // pred_check
          %p440 = pneg %p286
        $region54: #{tpu_custom_call.1} parent=11 // pred_check_branch
          %442 = sbr.rel (%p440) target = $region56
        $region55: #{tpu_custom_call.1} parent=11 // pred_region
          %444 = vsyncadd [#allocation15], 0
          %s445 = sshll.u32 %s11, 4
          %s446 = int_to_ptr.hbm [resolvable:$true] %s445
          %s447 = sshll.u32 [#allocation14], 4
          %s448 = int_to_ptr.vmem [resolvable:$true] %s447
          %453 = dma.hbm_to_vmem [thread:$0]  %s446, 4096, %s448, [#allocation15], 64, 64, 4
        $region56: #{tpu_custom_call.1} parent=11 // pred_fallthru
          _
        // Predicated region
        $region57: #{tpu_custom_call.1} parent=11 // pred_check
          %p454 = pneg %p307
        $region58: #{tpu_custom_call.1} parent=11 // pred_check_branch
          %456 = sbr.rel (%p454) target = $region60
        $region59: #{tpu_custom_call.1} parent=11 // pred_region
          _
        $region60: #{tpu_custom_call.1} parent=11 // pred_fallthru
          _
      $region12: #{tpu_custom_call.1} parent=5 // pred_fallthru
        _
      %p457 = scmp.lt.s32.totalorder %s29, 2
      // Predicated region
      $region61: #{tpu_custom_call.1} parent=5 // pred_check
        %p458 = pneg %p457
      $region62: #{tpu_custom_call.1} parent=5 // pred_check_branch
        %460 = sbr.rel (%p458) target = $region64
      $region63: #{tpu_custom_call.1} parent=5 // pred_region
        // Predicated region
        $region65: #{tpu_custom_call.1} parent=63 // pred_check
          %p461 = pneg %p49
        $region66: #{tpu_custom_call.1} parent=63 // pred_check_branch
          %463 = sbr.rel (%p461) target = $region68
        $region67: #{tpu_custom_call.1} parent=63 // pred_region
          %s464 = sand.u32 %s39, 1
          %s465 = scalar_lea.sflag [#allocation3], %s464
          %s466 = sand.u32 %s39, 1
          %s467 = smul.addr %s466, 128
          %s468 = scalar_lea.vmem [#allocation2], %s467
          %s469 = smul.u32 8, %s29
          %471 = vsyncadd %s465, 0
          %s472 = smul.addr %s469, 2
          %s473 = smul.addr %s472, 8
          %s474 = scalar_lea.hbm %s0, %s473
          %s475 = sshll.u32 %s474, 4
          %s476 = int_to_ptr.hbm [resolvable:$true] %s475
          %s477 = sshll.u32 %s468, 4
          %s478 = int_to_ptr.vmem [resolvable:$true] %s477
          %483 = dma.hbm_to_vmem [thread:$0]  %s476, 2048, %s478, %s465, 128, 128, 8
        $region68: #{tpu_custom_call.1} parent=63 // pred_fallthru
          _
      $region64: #{tpu_custom_call.1} parent=5 // pred_fallthru
        _
      %p484 = scmp.le.s32.totalorder 1, %s29
      %p485 = scmp.lt.s32.totalorder %s29, 3
      %p486 = pnand %p484, %p485
      %p487 = pneg %p486
      // Predicated region
      $region69: #{tpu_custom_call.1} parent=5 // pred_check
        _
      $region70: #{tpu_custom_call.1} parent=5 // pred_check_branch
        %489 = sbr.rel (%p486) target = $region72
      $region71: #{tpu_custom_call.1} parent=5 // pred_region
        %s490 = ssub.s32 %s29, 1
        %s491 = sand.u32 %s42, 1
        %s492 = scalar_lea.sflag [#allocation3], %s491
        %s493 = sand.u32 %s42, 1
        %s494 = smul.addr %s493, 128
        %s495 = scalar_lea.vmem [#allocation2], %s494
        // Predicated region
        $region73: #{tpu_custom_call.1} parent=71 // pred_check
          %p496 = pneg %p55
        $region74: #{tpu_custom_call.1} parent=71 // pred_check_branch
          %498 = sbr.rel (%p496) target = $region76
        $region75: #{tpu_custom_call.1} parent=71 // pred_region
          %500 = dma.done %s492, 2048
        $region76: #{tpu_custom_call.1} parent=71 // pred_fallthru
          _
        // Predicated region
        $region77: #{tpu_custom_call.1} parent=71 // pred_check
          %p501 = pneg %p76
        $region78: #{tpu_custom_call.1} parent=71 // pred_check_branch
          %503 = sbr.rel (%p501) target = $region80
        $region79: #{tpu_custom_call.1} parent=71 // pred_region
          %505 = dma.done [#allocation6], 2048
        $region80: #{tpu_custom_call.1} parent=71 // pred_fallthru
          _
        // Predicated region
        $region81: #{tpu_custom_call.1} parent=71 // pred_check
          %p506 = pneg %p139
        $region82: #{tpu_custom_call.1} parent=71 // pred_check_branch
          %508 = sbr.rel (%p506) target = $region84
        $region83: #{tpu_custom_call.1} parent=71 // pred_region
          %510 = dma.done [#allocation6], 3072
        $region84: #{tpu_custom_call.1} parent=71 // pred_fallthru
          _
        // Predicated region
        $region85: #{tpu_custom_call.1} parent=71 // pred_check
          %p511 = pneg %p160
        $region86: #{tpu_custom_call.1} parent=71 // pred_check_branch
          %513 = sbr.rel (%p511) target = $region88
        $region87: #{tpu_custom_call.1} parent=71 // pred_region
          %515 = dma.done [#allocation9], 1024
        $region88: #{tpu_custom_call.1} parent=71 // pred_fallthru
          _
        // Predicated region
        $region89: #{tpu_custom_call.1} parent=71 // pred_check
          %p516 = pneg %p202
        $region90: #{tpu_custom_call.1} parent=71 // pred_check_branch
          %518 = sbr.rel (%p516) target = $region92
        $region91: #{tpu_custom_call.1} parent=71 // pred_region
          %520 = dma.done [#allocation9], 16
        $region92: #{tpu_custom_call.1} parent=71 // pred_fallthru
          _
        // Predicated region
        $region93: #{tpu_custom_call.1} parent=71 // pred_check
          %p521 = pneg %p223
        $region94: #{tpu_custom_call.1} parent=71 // pred_check_branch
          %523 = sbr.rel (%p521) target = $region96
        $region95: #{tpu_custom_call.1} parent=71 // pred_region
          %525 = dma.done [#allocation12], 16
        $region96: #{tpu_custom_call.1} parent=71 // pred_fallthru
          _
        // Predicated region
        $region97: #{tpu_custom_call.1} parent=71 // pred_check
          %p526 = pneg %p244
        $region98: #{tpu_custom_call.1} parent=71 // pred_check_branch
          %528 = sbr.rel (%p526) target = $region100
        $region99: #{tpu_custom_call.1} parent=71 // pred_region
          %530 = dma.done [#allocation12], 4096
        $region100: #{tpu_custom_call.1} parent=71 // pred_fallthru
          _
        // Predicated region
        $region101: #{tpu_custom_call.1} parent=71 // pred_check
          %p531 = pneg %p286
        $region102: #{tpu_custom_call.1} parent=71 // pred_check_branch
          %533 = sbr.rel (%p531) target = $region104
        $region103: #{tpu_custom_call.1} parent=71 // pred_region
          %535 = dma.done [#allocation15], 4096
        $region104: #{tpu_custom_call.1} parent=71 // pred_fallthru
          _
        %s536 = sand.u32 %s42, 1
        %s537 = scalar_lea.sflag [#allocation3], %s536
        %s538 = sand.u32 %s42, 1
        %s539 = smul.addr %s538, 128
        %s540 = scalar_lea.vmem [#allocation2], %s539
        %p541 = pneg %p55
        %p542 = pneg %p52
        %p543 = pneg %p76
        %p544 = pneg %p73
        %p545 = pneg %p97
        %p546 = pneg %p94
        %p547 = pneg %p118
        %p548 = pneg %p115
        %p549 = pneg %p139
        %p550 = pneg %p136
        %p551 = pneg %p160
        %p552 = pneg %p157
        %p553 = pneg %p181
        %p554 = pneg %p178
        %p555 = pneg %p202
        %p556 = pneg %p199
        %p557 = pneg %p223
        %p558 = pneg %p220
        %p559 = pneg %p244
        %p560 = pneg %p241
        %p561 = pneg %p265
        %p562 = pneg %p262
        %p563 = pneg %p286
        %p564 = pneg %p283
        %p565 = pneg %p307
        %p566 = pneg %p304
        %p567 = pneg %p333
        %p568 = pneg %p330
        %s569 = sand.u32 %s320, 1
        %s570 = scalar_lea.sflag [#allocation4], %s569
        %s571 = sand.u32 %s320, 1
        %s572 = smul.addr %s571, 128
        %s573 = scalar_lea.vmem [#allocation16], %s572
        %s574 = smul.u32 8, %s34
        %s575 = smul.u32 8, %s34
        %v577 = vld [vmem:[%s495] sm:$0xff]
        %v578 = vld [vmem:[%s495 + $0x8] sm:$0xff]
        %v579 = vld [vmem:[%s495 + $0x10] sm:$0xff]
        %v580 = vld [vmem:[%s495 + $0x18] sm:$0xff]
        %v581 = vld [vmem:[%s495 + $0x20] sm:$0xff]
        %v582 = vld [vmem:[%s495 + $0x28] sm:$0xff]
        %v583 = vld [vmem:[%s495 + $0x30] sm:$0xff]
        %v584 = vld [vmem:[%s495 + $0x38] sm:$0xff]
        %v585 = vld [vmem:[%s495 + $0x40] sm:$0xff]
        %v586 = vld [vmem:[%s495 + $0x48] sm:$0xff]
        %v587 = vld [vmem:[%s495 + $0x50] sm:$0xff]
        %v588 = vld [vmem:[%s495 + $0x58] sm:$0xff]
        %v589 = vld [vmem:[%s495 + $0x60] sm:$0xff]
        %v590 = vld [vmem:[%s495 + $0x68] sm:$0xff]
        %v591 = vld [vmem:[%s495 + $0x70] sm:$0xff]
        %v592 = vld [vmem:[%s495 + $0x78] sm:$0xff]
        %v593 = vld [vmem:[#allocation5] sm:$0xff]
        %v594 = vld [vmem:[#allocation5 + $0x8] sm:$0xff]
        %v595 = vld [vmem:[#allocation5 + $0x10] sm:$0xff]
        %v596 = vld [vmem:[#allocation5 + $0x18] sm:$0xff]
        %v597 = vld [vmem:[#allocation5 + $0x20] sm:$0xff]
        %v598 = vld [vmem:[#allocation5 + $0x28] sm:$0xff]
        %v599 = vld [vmem:[#allocation5 + $0x30] sm:$0xff]
        %v600 = vld [vmem:[#allocation5 + $0x38] sm:$0xff]
        %v601 = vld [vmem:[#allocation5 + $0x40] sm:$0xff]
        %v602 = vld [vmem:[#allocation5 + $0x48] sm:$0xff]
        %v603 = vld [vmem:[#allocation5 + $0x50] sm:$0xff]
        %v604 = vld [vmem:[#allocation5 + $0x58] sm:$0xff]
        %v605 = vld [vmem:[#allocation5 + $0x60] sm:$0xff]
        %v606 = vld [vmem:[#allocation5 + $0x68] sm:$0xff]
        %v607 = vld [vmem:[#allocation5 + $0x70] sm:$0xff]
        %v608 = vld [vmem:[#allocation5 + $0x78] sm:$0xff]
        %v609 = vld [vmem:[%s2] sm:$0x1]
        %v610 = vld [vmem:[%s3] sm:$0x1]
        %611 = vadd.xlane.f32.xlu0 %v577
        %v612 = vpop.xlane.xlu0 %611
        %613 = vadd.xlane.f32.xlu0 %v578
        %v614 = vpop.xlane.xlu0 %613
        %615 = vadd.xlane.f32.xlu0 %v579
        %v616 = vpop.xlane.xlu0 %615
        %617 = vadd.xlane.f32.xlu0 %v580
        %v618 = vpop.xlane.xlu0 %617
        %619 = vadd.xlane.f32.xlu0 %v581
        %v620 = vpop.xlane.xlu0 %619
        %621 = vadd.xlane.f32.xlu0 %v582
        %v622 = vpop.xlane.xlu0 %621
        %623 = vadd.xlane.f32.xlu0 %v583
        %v624 = vpop.xlane.xlu0 %623
        %625 = vadd.xlane.f32.xlu0 %v584
        %v626 = vpop.xlane.xlu0 %625
        %627 = vadd.xlane.f32.xlu0 %v585
        %v628 = vpop.xlane.xlu0 %627
        %629 = vadd.xlane.f32.xlu0 %v586
        %v630 = vpop.xlane.xlu0 %629
        %631 = vadd.xlane.f32.xlu0 %v587
        %v632 = vpop.xlane.xlu0 %631
        %633 = vadd.xlane.f32.xlu0 %v588
        %v634 = vpop.xlane.xlu0 %633
        %635 = vadd.xlane.f32.xlu0 %v589
        %v636 = vpop.xlane.xlu0 %635
        %637 = vadd.xlane.f32.xlu0 %v590
        %v638 = vpop.xlane.xlu0 %637
        %639 = vadd.xlane.f32.xlu0 %v591
        %v640 = vpop.xlane.xlu0 %639
        %641 = vadd.xlane.f32.xlu0 %v592
        %v642 = vpop.xlane.xlu0 %641
        %v643 = vrcp.pop 128.0
        %v644 = vmul.f32 128.0, %v643
        %v645 = vsub.f32 1.0, %v644
        %v646 = vmul.f32 %v643, %v645
        %v647 = vadd.f32 %v643, %v646
        %vm648 = vweird.f32 %v643
        %v649 = vsel %vm648, %v643, %v647
        %v650 = vmul.f32 %v612, %v649
        %v651 = vmul.f32 %v614, %v649
        %v652 = vmul.f32 %v616, %v649
        %v653 = vmul.f32 %v618, %v649
        %v654 = vmul.f32 %v620, %v649
        %v655 = vmul.f32 %v622, %v649
        %v656 = vmul.f32 %v624, %v649
        %v657 = vmul.f32 %v626, %v649
        %v658 = vmul.f32 %v628, %v649
        %v659 = vmul.f32 %v630, %v649
        %v660 = vmul.f32 %v632, %v649
        %v661 = vmul.f32 %v634, %v649
        %v662 = vmul.f32 %v636, %v649
        %v663 = vmul.f32 %v638, %v649
        %v664 = vmul.f32 %v640, %v649
        %v665 = vmul.f32 %v642, %v649
        %v666 = vsub.f32 %v577, %v650
        %v667 = vsub.f32 %v578, %v651
        %v668 = vsub.f32 %v579, %v652
        %v669 = vsub.f32 %v580, %v653
        %v670 = vsub.f32 %v581, %v654
        %v671 = vsub.f32 %v582, %v655
        %v672 = vsub.f32 %v583, %v656
        %v673 = vsub.f32 %v584, %v657
        %v674 = vsub.f32 %v585, %v658
        %v675 = vsub.f32 %v586, %v659
        %v676 = vsub.f32 %v587, %v660
        %v677 = vsub.f32 %v588, %v661
        %v678 = vsub.f32 %v589, %v662
        %v679 = vsub.f32 %v590, %v663
        %v680 = vsub.f32 %v591, %v664
        %v681 = vsub.f32 %v592, %v665
        %v682 = vmul.f32 %v666, %v666
        %v683 = vmul.f32 %v667, %v667
        %v684 = vmul.f32 %v668, %v668
        %v685 = vmul.f32 %v669, %v669
        %v686 = vmul.f32 %v670, %v670
        %v687 = vmul.f32 %v671, %v671
        %v688 = vmul.f32 %v672, %v672
        %v689 = vmul.f32 %v673, %v673
        %v690 = vmul.f32 %v674, %v674
        %v691 = vmul.f32 %v675, %v675
        %v692 = vmul.f32 %v676, %v676
        %v693 = vmul.f32 %v677, %v677
        %v694 = vmul.f32 %v678, %v678
        %v695 = vmul.f32 %v679, %v679
        %v696 = vmul.f32 %v680, %v680
        %v697 = vmul.f32 %v681, %v681
        %698 = vadd.xlane.f32.xlu0 %v682
        %v699 = vpop.xlane.xlu0 %698
        %700 = vadd.xlane.f32.xlu0 %v683
        %v701 = vpop.xlane.xlu0 %700
        %702 = vadd.xlane.f32.xlu0 %v684
        %v703 = vpop.xlane.xlu0 %702
        %704 = vadd.xlane.f32.xlu0 %v685
        %v705 = vpop.xlane.xlu0 %704
        %706 = vadd.xlane.f32.xlu0 %v686
        %v707 = vpop.xlane.xlu0 %706
        %708 = vadd.xlane.f32.xlu0 %v687
        %v709 = vpop.xlane.xlu0 %708
        %710 = vadd.xlane.f32.xlu0 %v688
        %v711 = vpop.xlane.xlu0 %710
        %712 = vadd.xlane.f32.xlu0 %v689
        %v713 = vpop.xlane.xlu0 %712
        %714 = vadd.xlane.f32.xlu0 %v690
        %v715 = vpop.xlane.xlu0 %714
        %716 = vadd.xlane.f32.xlu0 %v691
        %v717 = vpop.xlane.xlu0 %716
        %718 = vadd.xlane.f32.xlu0 %v692
        %v719 = vpop.xlane.xlu0 %718
        %720 = vadd.xlane.f32.xlu0 %v693
        %v721 = vpop.xlane.xlu0 %720
        %722 = vadd.xlane.f32.xlu0 %v694
        %v723 = vpop.xlane.xlu0 %722
        %724 = vadd.xlane.f32.xlu0 %v695
        %v725 = vpop.xlane.xlu0 %724
        %726 = vadd.xlane.f32.xlu0 %v696
        %v727 = vpop.xlane.xlu0 %726
        %728 = vadd.xlane.f32.xlu0 %v697
        %v729 = vpop.xlane.xlu0 %728
        %v730 = vmul.f32 %v699, %v649
        %v731 = vmul.f32 %v701, %v649
        %v732 = vmul.f32 %v703, %v649
        %v733 = vmul.f32 %v705, %v649
        %v734 = vmul.f32 %v707, %v649
        %v735 = vmul.f32 %v709, %v649
        %v736 = vmul.f32 %v711, %v649
        %v737 = vmul.f32 %v713, %v649
        %v738 = vmul.f32 %v715, %v649
        %v739 = vmul.f32 %v717, %v649
        %v740 = vmul.f32 %v719, %v649
        %v741 = vmul.f32 %v721, %v649
        %v742 = vmul.f32 %v723, %v649
        %v743 = vmul.f32 %v725, %v649
        %v744 = vmul.f32 %v727, %v649
        %v745 = vmul.f32 %v729, %v649
        %v746 = vadd.f32 %v730, 1e-07
        %v747 = vadd.f32 %v731, 1e-07
        %v748 = vadd.f32 %v732, 1e-07
        %v749 = vadd.f32 %v733, 1e-07
        %v750 = vadd.f32 %v734, 1e-07
        %v751 = vadd.f32 %v735, 1e-07
        %v752 = vadd.f32 %v736, 1e-07
        %v753 = vadd.f32 %v737, 1e-07
        %v754 = vadd.f32 %v738, 1e-07
        %v755 = vadd.f32 %v739, 1e-07
        %v756 = vadd.f32 %v740, 1e-07
        %v757 = vadd.f32 %v741, 1e-07
        %v758 = vadd.f32 %v742, 1e-07
        %v759 = vadd.f32 %v743, 1e-07
        %v760 = vadd.f32 %v744, 1e-07
        %v761 = vadd.f32 %v745, 1e-07
        %v762 = vrsqrt.pop %v746
        %v763 = vmul.f32 %v762, %v746
        %v764 = vmul.f32 %v763, %v762
        %v765 = vmul.f32 0.5, %v764
        %v766 = vsub.f32 1.5, %v765
        %v767 = vmul.f32 %v762, %v766
        %vm768 = vweird.f32 %v746
        %vm769 = vweird.f32 %v762
        %vm770 = vmor %vm768, %vm769
        %v771 = vsel %vm770, %v762, %v767
        %v772 = vrsqrt.pop %v747
        %v773 = vmul.f32 %v772, %v747
        %v774 = vmul.f32 %v773, %v772
        %v775 = vmul.f32 0.5, %v774
        %v776 = vsub.f32 1.5, %v775
        %v777 = vmul.f32 %v772, %v776
        %vm778 = vweird.f32 %v747
        %vm779 = vweird.f32 %v772
        %vm780 = vmor %vm778, %vm779
        %v781 = vsel %vm780, %v772, %v777
        %v782 = vrsqrt.pop %v748
        %v783 = vmul.f32 %v782, %v748
        %v784 = vmul.f32 %v783, %v782
        %v785 = vmul.f32 0.5, %v784
        %v786 = vsub.f32 1.5, %v785
        %v787 = vmul.f32 %v782, %v786
        %vm788 = vweird.f32 %v748
        %vm789 = vweird.f32 %v782
        %vm790 = vmor %vm788, %vm789
        %v791 = vsel %vm790, %v782, %v787
        %v792 = vrsqrt.pop %v749
        %v793 = vmul.f32 %v792, %v749
        %v794 = vmul.f32 %v793, %v792
        %v795 = vmul.f32 0.5, %v794
        %v796 = vsub.f32 1.5, %v795
        %v797 = vmul.f32 %v792, %v796
        %vm798 = vweird.f32 %v749
        %vm799 = vweird.f32 %v792
        %vm800 = vmor %vm798, %vm799
        %v801 = vsel %vm800, %v792, %v797
        %v802 = vrsqrt.pop %v750
        %v803 = vmul.f32 %v802, %v750
        %v804 = vmul.f32 %v803, %v802
        %v805 = vmul.f32 0.5, %v804
        %v806 = vsub.f32 1.5, %v805
        %v807 = vmul.f32 %v802, %v806
        %vm808 = vweird.f32 %v750
        %vm809 = vweird.f32 %v802
        %vm810 = vmor %vm808, %vm809
        %v811 = vsel %vm810, %v802, %v807
        %v812 = vrsqrt.pop %v751
        %v813 = vmul.f32 %v812, %v751
        %v814 = vmul.f32 %v813, %v812
        %v815 = vmul.f32 0.5, %v814
        %v816 = vsub.f32 1.5, %v815
        %v817 = vmul.f32 %v812, %v816
        %vm818 = vweird.f32 %v751
        %vm819 = vweird.f32 %v812
        %vm820 = vmor %vm818, %vm819
        %v821 = vsel %vm820, %v812, %v817
        %v822 = vrsqrt.pop %v752
        %v823 = vmul.f32 %v822, %v752
        %v824 = vmul.f32 %v823, %v822
        %v825 = vmul.f32 0.5, %v824
        %v826 = vsub.f32 1.5, %v825
        %v827 = vmul.f32 %v822, %v826
        %vm828 = vweird.f32 %v752
        %vm829 = vweird.f32 %v822
        %vm830 = vmor %vm828, %vm829
        %v831 = vsel %vm830, %v822, %v827
        %v832 = vrsqrt.pop %v753
        %v833 = vmul.f32 %v832, %v753
        %v834 = vmul.f32 %v833, %v832
        %v835 = vmul.f32 0.5, %v834
        %v836 = vsub.f32 1.5, %v835
        %v837 = vmul.f32 %v832, %v836
        %vm838 = vweird.f32 %v753
        %vm839 = vweird.f32 %v832
        %vm840 = vmor %vm838, %vm839
        %v841 = vsel %vm840, %v832, %v837
        %v842 = vrsqrt.pop %v754
        %v843 = vmul.f32 %v842, %v754
        %v844 = vmul.f32 %v843, %v842
        %v845 = vmul.f32 0.5, %v844
        %v846 = vsub.f32 1.5, %v845
        %v847 = vmul.f32 %v842, %v846
        %vm848 = vweird.f32 %v754
        %vm849 = vweird.f32 %v842
        %vm850 = vmor %vm848, %vm849
        %v851 = vsel %vm850, %v842, %v847
        %v852 = vrsqrt.pop %v755
        %v853 = vmul.f32 %v852, %v755
        %v854 = vmul.f32 %v853, %v852
        %v855 = vmul.f32 0.5, %v854
        %v856 = vsub.f32 1.5, %v855
        %v857 = vmul.f32 %v852, %v856
        %vm858 = vweird.f32 %v755
        %vm859 = vweird.f32 %v852
        %vm860 = vmor %vm858, %vm859
        %v861 = vsel %vm860, %v852, %v857
        %v862 = vrsqrt.pop %v756
        %v863 = vmul.f32 %v862, %v756
        %v864 = vmul.f32 %v863, %v862
        %v865 = vmul.f32 0.5, %v864
        %v866 = vsub.f32 1.5, %v865
        %v867 = vmul.f32 %v862, %v866
        %vm868 = vweird.f32 %v756
        %vm869 = vweird.f32 %v862
        %vm870 = vmor %vm868, %vm869
        %v871 = vsel %vm870, %v862, %v867
        %v872 = vrsqrt.pop %v757
        %v873 = vmul.f32 %v872, %v757
        %v874 = vmul.f32 %v873, %v872
        %v875 = vmul.f32 0.5, %v874
        %v876 = vsub.f32 1.5, %v875
        %v877 = vmul.f32 %v872, %v876
        %vm878 = vweird.f32 %v757
        %vm879 = vweird.f32 %v872
        %vm880 = vmor %vm878, %vm879
        %v881 = vsel %vm880, %v872, %v877
        %v882 = vrsqrt.pop %v758
        %v883 = vmul.f32 %v882, %v758
        %v884 = vmul.f32 %v883, %v882
        %v885 = vmul.f32 0.5, %v884
        %v886 = vsub.f32 1.5, %v885
        %v887 = vmul.f32 %v882, %v886
        %vm888 = vweird.f32 %v758
        %vm889 = vweird.f32 %v882
        %vm890 = vmor %vm888, %vm889
        %v891 = vsel %vm890, %v882, %v887
        %v892 = vrsqrt.pop %v759
        %v893 = vmul.f32 %v892, %v759
        %v894 = vmul.f32 %v893, %v892
        %v895 = vmul.f32 0.5, %v894
        %v896 = vsub.f32 1.5, %v895
        %v897 = vmul.f32 %v892, %v896
        %vm898 = vweird.f32 %v759
        %vm899 = vweird.f32 %v892
        %vm900 = vmor %vm898, %vm899
        %v901 = vsel %vm900, %v892, %v897
        %v902 = vrsqrt.pop %v760
        %v903 = vmul.f32 %v902, %v760
        %v904 = vmul.f32 %v903, %v902
        %v905 = vmul.f32 0.5, %v904
        %v906 = vsub.f32 1.5, %v905
        %v907 = vmul.f32 %v902, %v906
        %vm908 = vweird.f32 %v760
        %vm909 = vweird.f32 %v902
        %vm910 = vmor %vm908, %vm909
        %v911 = vsel %vm910, %v902, %v907
        %v912 = vrsqrt.pop %v761
        %v913 = vmul.f32 %v912, %v761
        %v914 = vmul.f32 %v913, %v912
        %v915 = vmul.f32 0.5, %v914
        %v916 = vsub.f32 1.5, %v915
        %v917 = vmul.f32 %v912, %v916
        %vm918 = vweird.f32 %v761
        %vm919 = vweird.f32 %v912
        %vm920 = vmor %vm918, %vm919
        %v921 = vsel %vm920, %v912, %v917
        %v922 = vmul.f32 %v666, %v771
        %v923 = vmul.f32 %v667, %v781
        %v924 = vmul.f32 %v668, %v791
        %v925 = vmul.f32 %v669, %v801
        %v926 = vmul.f32 %v670, %v811
        %v927 = vmul.f32 %v671, %v821
        %v928 = vmul.f32 %v672, %v831
        %v929 = vmul.f32 %v673, %v841
        %v930 = vmul.f32 %v674, %v851
        %v931 = vmul.f32 %v675, %v861
        %v932 = vmul.f32 %v676, %v871
        %v933 = vmul.f32 %v677, %v881
        %v934 = vmul.f32 %v678, %v891
        %v935 = vmul.f32 %v679, %v901
        %v936 = vmul.f32 %v680, %v911
        %v937 = vmul.f32 %v681, %v921
        %v939 = vperm.slane %v609, 0
        %v941 = vmul.f32 %v922, %v939
        %v942 = vmul.f32 %v923, %v939
        %v943 = vmul.f32 %v924, %v939
        %v944 = vmul.f32 %v925, %v939
        %v945 = vmul.f32 %v926, %v939
        %v946 = vmul.f32 %v927, %v939
        %v947 = vmul.f32 %v928, %v939
        %v948 = vmul.f32 %v929, %v939
        %v949 = vmul.f32 %v930, %v939
        %v950 = vmul.f32 %v931, %v939
        %v951 = vmul.f32 %v932, %v939
        %v952 = vmul.f32 %v933, %v939
        %v953 = vmul.f32 %v934, %v939
        %v954 = vmul.f32 %v935, %v939
        %v955 = vmul.f32 %v936, %v939
        %v956 = vmul.f32 %v937, %v939
        %v958 = vperm.slane %v610, 0
        %v960 = vadd.f32 %v941, %v958
        %v961 = vadd.f32 %v942, %v958
        %v962 = vadd.f32 %v943, %v958
        %v963 = vadd.f32 %v944, %v958
        %v964 = vadd.f32 %v945, %v958
        %v965 = vadd.f32 %v946, %v958
        %v966 = vadd.f32 %v947, %v958
        %v967 = vadd.f32 %v948, %v958
        %v968 = vadd.f32 %v949, %v958
        %v969 = vadd.f32 %v950, %v958
        %v970 = vadd.f32 %v951, %v958
        %v971 = vadd.f32 %v952, %v958
        %v972 = vadd.f32 %v953, %v958
        %v973 = vadd.f32 %v954, %v958
        %v974 = vadd.f32 %v955, %v958
        %v975 = vadd.f32 %v956, %v958
        %v976 = vpack.c.bf16 %v578, %v577
        %v977 = vpack.c.bf16 %v580, %v579
        %v978 = vpack.c.bf16 %v582, %v581
        %v979 = vpack.c.bf16 %v584, %v583
        %v980 = vpack.c.bf16 %v586, %v585
        %v981 = vpack.c.bf16 %v588, %v587
        %v982 = vpack.c.bf16 %v590, %v589
        %v983 = vpack.c.bf16 %v592, %v591
        %v984 = vld [vmem:[#allocation7] sm:$0xff]
        %v985 = vld [vmem:[#allocation7 + $0x8] sm:$0xf]
        %v986 = vld [vmem:[#allocation7 + $0xc] sm:$0xff]
        %v987 = vld [vmem:[#allocation7 + $0x14] sm:$0xf]
        %v988 = vld [vmem:[#allocation7 + $0x18] sm:$0xff]
        %v989 = vld [vmem:[#allocation7 + $0x20] sm:$0xf]
        %v990 = vld [vmem:[#allocation7 + $0x24] sm:$0xff]
        %v991 = vld [vmem:[#allocation7 + $0x2c] sm:$0xf]
        %v992 = vld [vmem:[#allocation7 + $0x30] sm:$0xff]
        %v993 = vld [vmem:[#allocation7 + $0x38] sm:$0xf]
        %v994 = vld [vmem:[#allocation7 + $0x3c] sm:$0xff]
        %v995 = vld [vmem:[#allocation7 + $0x44] sm:$0xf]
        %v996 = vld [vmem:[#allocation7 + $0x48] sm:$0xff]
        %v997 = vld [vmem:[#allocation7 + $0x50] sm:$0xf]
        %v998 = vld [vmem:[#allocation7 + $0x54] sm:$0xff]
        %v999 = vld [vmem:[#allocation7 + $0x5c] sm:$0xf]
        %v1000 = vld [vmem:[#allocation7 + $0x60] sm:$0xff]
        %v1001 = vld [vmem:[#allocation7 + $0x68] sm:$0xf]
        %v1002 = vld [vmem:[#allocation7 + $0x6c] sm:$0xff]
        %v1003 = vld [vmem:[#allocation7 + $0x74] sm:$0xf]
        %v1004 = vld [vmem:[#allocation7 + $0x78] sm:$0xff]
        %v1005 = vld [vmem:[#allocation7 + $0x80] sm:$0xf]
        %v1006 = vld [vmem:[#allocation7 + $0x84] sm:$0xff]
        %v1007 = vld [vmem:[#allocation7 + $0x8c] sm:$0xf]
        %v1008 = vld [vmem:[#allocation7 + $0x90] sm:$0xff]
        %v1009 = vld [vmem:[#allocation7 + $0x98] sm:$0xf]
        %v1010 = vld [vmem:[#allocation7 + $0x9c] sm:$0xff]
        %v1011 = vld [vmem:[#allocation7 + $0xa4] sm:$0xf]
        %v1012 = vld [vmem:[#allocation7 + $0xa8] sm:$0xff]
        %v1013 = vld [vmem:[#allocation7 + $0xb0] sm:$0xf]
        %v1014 = vld [vmem:[#allocation7 + $0xb4] sm:$0xff]
        %v1015 = vld [vmem:[#allocation7 + $0xbc] sm:$0xf]
        %v1048 = vunpack.c.l.b16 %v984
        %v1049 = vunpack.c.h.b16 %v984
        %v1050 = vunpack.c.l.b16 %v985
        %v1051 = vunpack.c.l.b16 %v986
        %v1052 = vunpack.c.h.b16 %v986
        %v1053 = vunpack.c.l.b16 %v987
        %v1054 = vunpack.c.l.b16 %v988
        %v1055 = vunpack.c.h.b16 %v988
        %v1056 = vunpack.c.l.b16 %v989
        %v1057 = vunpack.c.l.b16 %v990
        %v1058 = vunpack.c.h.b16 %v990
        %v1059 = vunpack.c.l.b16 %v991
        %v1060 = vunpack.c.l.b16 %v992
        %v1061 = vunpack.c.h.b16 %v992
        %v1062 = vunpack.c.l.b16 %v993
        %v1063 = vunpack.c.l.b16 %v994
        %v1064 = vunpack.c.h.b16 %v994
        %v1065 = vunpack.c.l.b16 %v995
        %v1066 = vunpack.c.l.b16 %v996
        %v1067 = vunpack.c.h.b16 %v996
        %v1068 = vunpack.c.l.b16 %v997
        %v1069 = vunpack.c.l.b16 %v998
        %v1070 = vunpack.c.h.b16 %v998
        %v1071 = vunpack.c.l.b16 %v999
        %v1072 = vunpack.c.l.b16 %v1000
        %v1073 = vunpack.c.h.b16 %v1000
        %v1074 = vunpack.c.l.b16 %v1001
        %v1075 = vunpack.c.l.b16 %v1002
        %v1076 = vunpack.c.h.b16 %v1002
        %v1077 = vunpack.c.l.b16 %v1003
        %v1078 = vunpack.c.l.b16 %v1004
        %v1079 = vunpack.c.h.b16 %v1004
        %v1080 = vunpack.c.l.b16 %v1005
        %v1081 = vunpack.c.l.b16 %v1006
        %v1082 = vunpack.c.h.b16 %v1006
        %v1083 = vunpack.c.l.b16 %v1007
        %v1084 = vunpack.c.l.b16 %v1008
        %v1085 = vunpack.c.h.b16 %v1008
        %v1086 = vunpack.c.l.b16 %v1009
        %v1087 = vunpack.c.l.b16 %v1010
        %v1088 = vunpack.c.h.b16 %v1010
        %v1089 = vunpack.c.l.b16 %v1011
        %v1090 = vunpack.c.l.b16 %v1012
        %v1091 = vunpack.c.h.b16 %v1012
        %v1092 = vunpack.c.l.b16 %v1013
        %v1093 = vunpack.c.l.b16 %v1014
        %v1094 = vunpack.c.h.b16 %v1014
        %v1095 = vunpack.c.l.b16 %v1015
        %v1096 = vpack.c.b16 %v1051, %v1048
        %v1097 = vpack.c.b16 %v1052, %v1049
        %v1098 = vpack.c.b16 %v1053, %v1050
        %v1099 = vpack.c.b16 %v1057, %v1054
        %v1100 = vpack.c.b16 %v1058, %v1055
        %v1101 = vpack.c.b16 %v1059, %v1056
        %v1102 = vpack.c.b16 %v1063, %v1060
        %v1103 = vpack.c.b16 %v1064, %v1061
        %v1104 = vpack.c.b16 %v1065, %v1062
        %v1105 = vpack.c.b16 %v1069, %v1066
        %v1106 = vpack.c.b16 %v1070, %v1067
        %v1107 = vpack.c.b16 %v1071, %v1068
        %v1108 = vpack.c.b16 %v1075, %v1072
        %v1109 = vpack.c.b16 %v1076, %v1073
        %v1110 = vpack.c.b16 %v1077, %v1074
        %v1111 = vpack.c.b16 %v1081, %v1078
        %v1112 = vpack.c.b16 %v1082, %v1079
        %v1113 = vpack.c.b16 %v1083, %v1080
        %v1114 = vpack.c.b16 %v1087, %v1084
        %v1115 = vpack.c.b16 %v1088, %v1085
        %v1116 = vpack.c.b16 %v1089, %v1086
        %v1117 = vpack.c.b16 %v1093, %v1090
        %v1118 = vpack.c.b16 %v1094, %v1091
        %v1119 = vpack.c.b16 %v1095, %v1092
        %1144 = vmatpush.bf16.msra.mxu0 %v1117
        %1145 = vmatpush.bf16.msra.mxu0 %v1114
        %1146 = vmatpush.bf16.msra.mxu0 %v1111
        %1147 = vmatpush.bf16.msra.mxu0 %v1108
        %1148 = vmatpush.bf16.msra.mxu0 %v1105
        %1149 = vmatpush.bf16.msra.mxu0 %v1102
        %1150 = vmatpush.bf16.msra.mxu0 %v1099
        %1151 = vmatpush.bf16.msra.mxu0 %v1096
        %1152 = vmatmul.bf16.gmra.mxu0 %v976
        %v1153 = vpop.f32.mrf.mxu0
        %v1154 = vadd.f32 0.0, %v1153
        %v1155 = vpop.f32.mrf.mxu0
        %v1156 = vadd.f32 0.0, %v1155
        %1157 = vmatmul.bf16.gmra.mxu0 %v977
        %v1158 = vpop.f32.mrf.mxu0
        %v1159 = vadd.f32 0.0, %v1158
        %v1160 = vpop.f32.mrf.mxu0
        %v1161 = vadd.f32 0.0, %v1160
        %1162 = vmatmul.bf16.gmra.mxu0 %v978
        %v1163 = vpop.f32.mrf.mxu0
        %v1164 = vadd.f32 0.0, %v1163
        %v1165 = vpop.f32.mrf.mxu0
        %v1166 = vadd.f32 0.0, %v1165
        %1167 = vmatmul.bf16.gmra.mxu0 %v979
        %v1168 = vpop.f32.mrf.mxu0
        %v1169 = vadd.f32 0.0, %v1168
        %v1170 = vpop.f32.mrf.mxu0
        %v1171 = vadd.f32 0.0, %v1170
        %1172 = vmatmul.bf16.gmra.mxu0 %v980
        %v1173 = vpop.f32.mrf.mxu0
        %v1174 = vadd.f32 0.0, %v1173
        %v1175 = vpop.f32.mrf.mxu0
        %v1176 = vadd.f32 0.0, %v1175
        %1177 = vmatmul.bf16.gmra.mxu0 %v981
        %v1178 = vpop.f32.mrf.mxu0
        %v1179 = vadd.f32 0.0, %v1178
        %v1180 = vpop.f32.mrf.mxu0
        %v1181 = vadd.f32 0.0, %v1180
        %1182 = vmatmul.bf16.gmra.mxu0 %v982
        %v1183 = vpop.f32.mrf.mxu0
        %v1184 = vadd.f32 0.0, %v1183
        %v1185 = vpop.f32.mrf.mxu0
        %v1186 = vadd.f32 0.0, %v1185
        %1187 = vmatmul.bf16.gmra.mxu0 %v983
        %v1188 = vpop.f32.mrf.mxu0
        %v1189 = vadd.f32 0.0, %v1188
        %v1190 = vpop.f32.mrf.mxu0
        %v1191 = vadd.f32 0.0, %v1190
        %1192 = vdwg.mxu0
        %1193 = vmatpush.bf16.msra.mxu0 %v1118
        %1194 = vmatpush.bf16.msra.mxu0 %v1115
        %1195 = vmatpush.bf16.msra.mxu0 %v1112
        %1196 = vmatpush.bf16.msra.mxu0 %v1109
        %1197 = vmatpush.bf16.msra.mxu0 %v1106
        %1198 = vmatpush.bf16.msra.mxu0 %v1103
        %1199 = vmatpush.bf16.msra.mxu0 %v1100
        %1200 = vmatpush.bf16.msra.mxu0 %v1097
        %1201 = vmatmul.bf16.gmra.mxu0 %v976
        %v1202 = vpop.f32.mrf.mxu0
        %v1203 = vadd.f32 0.0, %v1202
        %v1204 = vpop.f32.mrf.mxu0
        %v1205 = vadd.f32 0.0, %v1204
        %1206 = vmatmul.bf16.gmra.mxu0 %v977
        %v1207 = vpop.f32.mrf.mxu0
        %v1208 = vadd.f32 0.0, %v1207
        %v1209 = vpop.f32.mrf.mxu0
        %v1210 = vadd.f32 0.0, %v1209
        %1211 = vmatmul.bf16.gmra.mxu0 %v978
        %v1212 = vpop.f32.mrf.mxu0
        %v1213 = vadd.f32 0.0, %v1212
        %v1214 = vpop.f32.mrf.mxu0
        %v1215 = vadd.f32 0.0, %v1214
        %1216 = vmatmul.bf16.gmra.mxu0 %v979
        %v1217 = vpop.f32.mrf.mxu0
        %v1218 = vadd.f32 0.0, %v1217
        %v1219 = vpop.f32.mrf.mxu0
        %v1220 = vadd.f32 0.0, %v1219
        %1221 = vmatmul.bf16.gmra.mxu0 %v980
        %v1222 = vpop.f32.mrf.mxu0
        %v1223 = vadd.f32 0.0, %v1222
        %v1224 = vpop.f32.mrf.mxu0
        %v1225 = vadd.f32 0.0, %v1224
        %1226 = vmatmul.bf16.gmra.mxu0 %v981
        %v1227 = vpop.f32.mrf.mxu0
        %v1228 = vadd.f32 0.0, %v1227
        %v1229 = vpop.f32.mrf.mxu0
        %v1230 = vadd.f32 0.0, %v1229
        %1231 = vmatmul.bf16.gmra.mxu0 %v982
        %v1232 = vpop.f32.mrf.mxu0
        %v1233 = vadd.f32 0.0, %v1232
        %v1234 = vpop.f32.mrf.mxu0
        %v1235 = vadd.f32 0.0, %v1234
        %1236 = vmatmul.bf16.gmra.mxu0 %v983
        %v1237 = vpop.f32.mrf.mxu0
        %v1238 = vadd.f32 0.0, %v1237
        %v1239 = vpop.f32.mrf.mxu0
        %v1240 = vadd.f32 0.0, %v1239
        %1241 = vdwg.mxu0
        %1242 = vmatpush.bf16.msra.mxu0 %v1119
        %1243 = vmatpush.bf16.msra.mxu0 %v1116
        %1244 = vmatpush.bf16.msra.mxu0 %v1113
        %1245 = vmatpush.bf16.msra.mxu0 %v1110
        %1246 = vmatpush.bf16.msra.mxu0 %v1107
        %1247 = vmatpush.bf16.msra.mxu0 %v1104
        %1248 = vmatpush.bf16.msra.mxu0 %v1101
        %1249 = vmatpush.bf16.msra.mxu0 %v1098
        %1250 = vmatmul.bf16.gmra.mxu0 %v976
        %v1251 = vpop.f32.mrf.mxu0
        %v1252 = vadd.f32 0.0, %v1251
        %v1253 = vpop.f32.mrf.mxu0
        %v1254 = vadd.f32 0.0, %v1253
        %1255 = vmatmul.bf16.gmra.mxu0 %v977
        %v1256 = vpop.f32.mrf.mxu0
        %v1257 = vadd.f32 0.0, %v1256
        %v1258 = vpop.f32.mrf.mxu0
        %v1259 = vadd.f32 0.0, %v1258
        %1260 = vmatmul.bf16.gmra.mxu0 %v978
        %v1261 = vpop.f32.mrf.mxu0
        %v1262 = vadd.f32 0.0, %v1261
        %v1263 = vpop.f32.mrf.mxu0
        %v1264 = vadd.f32 0.0, %v1263
        %1265 = vmatmul.bf16.gmra.mxu0 %v979
        %v1266 = vpop.f32.mrf.mxu0
        %v1267 = vadd.f32 0.0, %v1266
        %v1268 = vpop.f32.mrf.mxu0
        %v1269 = vadd.f32 0.0, %v1268
        %1270 = vmatmul.bf16.gmra.mxu0 %v980
        %v1271 = vpop.f32.mrf.mxu0
        %v1272 = vadd.f32 0.0, %v1271
        %v1273 = vpop.f32.mrf.mxu0
        %v1274 = vadd.f32 0.0, %v1273
        %1275 = vmatmul.bf16.gmra.mxu0 %v981
        %v1276 = vpop.f32.mrf.mxu0
        %v1277 = vadd.f32 0.0, %v1276
        %v1278 = vpop.f32.mrf.mxu0
        %v1279 = vadd.f32 0.0, %v1278
        %1280 = vmatmul.bf16.gmra.mxu0 %v982
        %v1281 = vpop.f32.mrf.mxu0
        %v1282 = vadd.f32 0.0, %v1281
        %v1283 = vpop.f32.mrf.mxu0
        %v1284 = vadd.f32 0.0, %v1283
        %1285 = vmatmul.bf16.gmra.mxu0 %v983
        %v1286 = vpop.f32.mrf.mxu0
        %v1287 = vadd.f32 0.0, %v1286
        %v1288 = vpop.f32.mrf.mxu0
        %v1289 = vadd.f32 0.0, %v1288
        %1290 = vdwg.mxu0
        %v1291 = vpack.c.bf16 %v1154, %v1154
        %v1292 = vpack.c.bf16 %v1156, %v1156
        %v1293 = vpack.c.bf16 %v1159, %v1159
        %v1294 = vpack.c.bf16 %v1161, %v1161
        %v1295 = vpack.c.bf16 %v1164, %v1164
        %v1296 = vpack.c.bf16 %v1166, %v1166
        %v1297 = vpack.c.bf16 %v1169, %v1169
        %v1298 = vpack.c.bf16 %v1171, %v1171
        %v1299 = vpack.c.bf16 %v1174, %v1174
        %v1300 = vpack.c.bf16 %v1176, %v1176
        %v1301 = vpack.c.bf16 %v1179, %v1179
        %v1302 = vpack.c.bf16 %v1181, %v1181
        %v1303 = vpack.c.bf16 %v1184, %v1184
        %v1304 = vpack.c.bf16 %v1186, %v1186
        %v1305 = vpack.c.bf16 %v1189, %v1189
        %v1306 = vpack.c.bf16 %v1191, %v1191
        %v1307 = vpack.c.bf16 %v1203, %v1203
        %v1308 = vpack.c.bf16 %v1205, %v1205
        %v1309 = vpack.c.bf16 %v1208, %v1208
        %v1310 = vpack.c.bf16 %v1210, %v1210
        %v1311 = vpack.c.bf16 %v1213, %v1213
        %v1312 = vpack.c.bf16 %v1215, %v1215
        %v1313 = vpack.c.bf16 %v1218, %v1218
        %v1314 = vpack.c.bf16 %v1220, %v1220
        %v1315 = vpack.c.bf16 %v1223, %v1223
        %v1316 = vpack.c.bf16 %v1225, %v1225
        %v1317 = vpack.c.bf16 %v1228, %v1228
        %v1318 = vpack.c.bf16 %v1230, %v1230
        %v1319 = vpack.c.bf16 %v1233, %v1233
        %v1320 = vpack.c.bf16 %v1235, %v1235
        %v1321 = vpack.c.bf16 %v1238, %v1238
        %v1322 = vpack.c.bf16 %v1240, %v1240
        %v1323 = vpack.c.bf16 %v1252, %v1252
        %v1324 = vpack.c.bf16 %v1254, %v1254
        %v1325 = vpack.c.bf16 %v1257, %v1257
        %v1326 = vpack.c.bf16 %v1259, %v1259
        %v1327 = vpack.c.bf16 %v1262, %v1262
        %v1328 = vpack.c.bf16 %v1264, %v1264
        %v1329 = vpack.c.bf16 %v1267, %v1267
        %v1330 = vpack.c.bf16 %v1269, %v1269
        %v1331 = vpack.c.bf16 %v1272, %v1272
        %v1332 = vpack.c.bf16 %v1274, %v1274
        %v1333 = vpack.c.bf16 %v1277, %v1277
        %v1334 = vpack.c.bf16 %v1279, %v1279
        %v1335 = vpack.c.bf16 %v1282, %v1282
        %v1336 = vpack.c.bf16 %v1284, %v1284
        %v1337 = vpack.c.bf16 %v1287, %v1287
        %v1338 = vpack.c.bf16 %v1289, %v1289
        %v1355 = vunpack.c.l.b16 %v1291
        %v1356 = vunpack.c.l.b16 %v1292
        %v1357 = vunpack.c.l.b16 %v1293
        %v1358 = vunpack.c.l.b16 %v1294
        %v1359 = vunpack.c.l.b16 %v1295
        %v1360 = vunpack.c.l.b16 %v1296
        %v1361 = vunpack.c.l.b16 %v1297
        %v1362 = vunpack.c.l.b16 %v1298
        %v1363 = vunpack.c.l.b16 %v1299
        %v1364 = vunpack.c.l.b16 %v1300
        %v1365 = vunpack.c.l.b16 %v1301
        %v1366 = vunpack.c.l.b16 %v1302
        %v1367 = vunpack.c.l.b16 %v1303
        %v1368 = vunpack.c.l.b16 %v1304
        %v1369 = vunpack.c.l.b16 %v1305
        %v1370 = vunpack.c.l.b16 %v1306
        %v1371 = vpack.c.b16 %v1356, %v1355
        %v1372 = vpack.c.b16 %v1358, %v1357
        %v1373 = vpack.c.b16 %v1360, %v1359
        %v1374 = vpack.c.b16 %v1362, %v1361
        %v1375 = vpack.c.b16 %v1364, %v1363
        %v1376 = vpack.c.b16 %v1366, %v1365
        %v1377 = vpack.c.b16 %v1368, %v1367
        %v1378 = vpack.c.b16 %v1370, %v1369
        %v1395 = vunpack.c.l.b16 %v1307
        %v1396 = vunpack.c.l.b16 %v1308
        %v1397 = vunpack.c.l.b16 %v1309
        %v1398 = vunpack.c.l.b16 %v1310
        %v1399 = vunpack.c.l.b16 %v1311
        %v1400 = vunpack.c.l.b16 %v1312
        %v1401 = vunpack.c.l.b16 %v1313
        %v1402 = vunpack.c.l.b16 %v1314
        %v1403 = vunpack.c.l.b16 %v1315
        %v1404 = vunpack.c.l.b16 %v1316
        %v1405 = vunpack.c.l.b16 %v1317
        %v1406 = vunpack.c.l.b16 %v1318
        %v1407 = vunpack.c.l.b16 %v1319
        %v1408 = vunpack.c.l.b16 %v1320
        %v1409 = vunpack.c.l.b16 %v1321
        %v1410 = vunpack.c.l.b16 %v1322
        %v1411 = vpack.c.b16 %v1396, %v1395
        %v1412 = vpack.c.b16 %v1398, %v1397
        %v1413 = vpack.c.b16 %v1400, %v1399
        %v1414 = vpack.c.b16 %v1402, %v1401
        %v1415 = vpack.c.b16 %v1404, %v1403
        %v1416 = vpack.c.b16 %v1406, %v1405
        %v1417 = vpack.c.b16 %v1408, %v1407
        %v1418 = vpack.c.b16 %v1410, %v1409
        %vm1419 = vcmask 261120
        %v1421 = vsel %vm1419, %v1371, 0
        %v1424 = vsel %vm1419, %v1372, 0
        %v1427 = vsel %vm1419, %v1373, 0
        %v1430 = vsel %vm1419, %v1374, 0
        %v1433 = vsel %vm1419, %v1375, 0
        %v1436 = vsel %vm1419, %v1376, 0
        %v1439 = vsel %vm1419, %v1377, 0
        %v1442 = vsel %vm1419, %v1378, 0
        %v1445 = vsel %vm1419, %v1411, 0
        %v1448 = vsel %vm1419, %v1412, 0
        %v1451 = vsel %vm1419, %v1413, 0
        %v1454 = vsel %vm1419, %v1414, 0
        %v1457 = vsel %vm1419, %v1415, 0
        %v1460 = vsel %vm1419, %v1416, 0
        %v1463 = vsel %vm1419, %v1417, 0
        %v1466 = vsel %vm1419, %v1418, 0
        %1468 = vmatpush.bf16.xpose.msra.mxu0 %v1466
        %1469 = vmatpush.bf16.xpose.msra.mxu0 %v1463
        %1470 = vmatpush.bf16.xpose.msra.mxu0 %v1460
        %1471 = vmatpush.bf16.xpose.msra.mxu0 %v1457
        %1472 = vmatpush.bf16.xpose.msra.mxu0 %v1454
        %1473 = vmatpush.bf16.xpose.msra.mxu0 %v1451
        %1474 = vmatpush.bf16.xpose.msra.mxu0 %v1448
        %1475 = vmatpush.bf16.xpose.msra.mxu0 %v1445
        %1476 = vmatmul.bf16.gmra.mxu0 %v1421
        %v1477 = vpop.f32.mrf.mxu0
        %v1478 = vadd.f32 %v593, %v1477
        %v1479 = vpop.f32.mrf.mxu0
        %v1480 = vadd.f32 %v594, %v1479
        %1481 = vmatmul.bf16.gmra.mxu0 %v1424
        %v1482 = vpop.f32.mrf.mxu0
        %v1483 = vadd.f32 %v595, %v1482
        %v1484 = vpop.f32.mrf.mxu0
        %v1485 = vadd.f32 %v596, %v1484
        %1486 = vmatmul.bf16.gmra.mxu0 %v1427
        %v1487 = vpop.f32.mrf.mxu0
        %v1488 = vadd.f32 %v597, %v1487
        %v1489 = vpop.f32.mrf.mxu0
        %v1490 = vadd.f32 %v598, %v1489
        %1491 = vmatmul.bf16.gmra.mxu0 %v1430
        %v1492 = vpop.f32.mrf.mxu0
        %v1493 = vadd.f32 %v599, %v1492
        %v1494 = vpop.f32.mrf.mxu0
        %v1495 = vadd.f32 %v600, %v1494
        %1496 = vmatmul.bf16.gmra.mxu0 %v1433
        %v1497 = vpop.f32.mrf.mxu0
        %v1498 = vadd.f32 %v601, %v1497
        %v1499 = vpop.f32.mrf.mxu0
        %v1500 = vadd.f32 %v602, %v1499
        %1501 = vmatmul.bf16.gmra.mxu0 %v1436
        %v1502 = vpop.f32.mrf.mxu0
        %v1503 = vadd.f32 %v603, %v1502
        %v1504 = vpop.f32.mrf.mxu0
        %v1505 = vadd.f32 %v604, %v1504
        %1506 = vmatmul.bf16.gmra.mxu0 %v1439
        %v1507 = vpop.f32.mrf.mxu0
        %v1508 = vadd.f32 %v605, %v1507
        %v1509 = vpop.f32.mrf.mxu0
        %v1510 = vadd.f32 %v606, %v1509
        %1511 = vmatmul.bf16.gmra.mxu0 %v1442
        %v1512 = vpop.f32.mrf.mxu0
        %v1513 = vadd.f32 %v607, %v1512
        %v1514 = vpop.f32.mrf.mxu0
        %v1515 = vadd.f32 %v608, %v1514
        %1516 = vdwg.mxu0
        %1517 = vmax.xlane.f32.xlu0 %v1478
        %v1518 = vpop.xlane.xlu0 %1517
        %1519 = vmax.xlane.f32.xlu0 %v1480
        %v1520 = vpop.xlane.xlu0 %1519
        %1521 = vmax.xlane.f32.xlu0 %v1483
        %v1522 = vpop.xlane.xlu0 %1521
        %1523 = vmax.xlane.f32.xlu0 %v1485
        %v1524 = vpop.xlane.xlu0 %1523
        %1525 = vmax.xlane.f32.xlu0 %v1488
        %v1526 = vpop.xlane.xlu0 %1525
        %1527 = vmax.xlane.f32.xlu0 %v1490
        %v1528 = vpop.xlane.xlu0 %1527
        %1529 = vmax.xlane.f32.xlu0 %v1493
        %v1530 = vpop.xlane.xlu0 %1529
        %1531 = vmax.xlane.f32.xlu0 %v1495
        %v1532 = vpop.xlane.xlu0 %1531
        %1533 = vmax.xlane.f32.xlu0 %v1498
        %v1534 = vpop.xlane.xlu0 %1533
        %1535 = vmax.xlane.f32.xlu0 %v1500
        %v1536 = vpop.xlane.xlu0 %1535
        %1537 = vmax.xlane.f32.xlu0 %v1503
        %v1538 = vpop.xlane.xlu0 %1537
        %1539 = vmax.xlane.f32.xlu0 %v1505
        %v1540 = vpop.xlane.xlu0 %1539
        %1541 = vmax.xlane.f32.xlu0 %v1508
        %v1542 = vpop.xlane.xlu0 %1541
        %1543 = vmax.xlane.f32.xlu0 %v1510
        %v1544 = vpop.xlane.xlu0 %1543
        %1545 = vmax.xlane.f32.xlu0 %v1513
        %v1546 = vpop.xlane.xlu0 %1545
        %1547 = vmax.xlane.f32.xlu0 %v1515
        %v1548 = vpop.xlane.xlu0 %1547
        %v1549 = vsub.f32 %v1478, %v1518
        %v1550 = vsub.f32 %v1480, %v1520
        %v1551 = vsub.f32 %v1483, %v1522
        %v1552 = vsub.f32 %v1485, %v1524
        %v1553 = vsub.f32 %v1488, %v1526
        %v1554 = vsub.f32 %v1490, %v1528
        %v1555 = vsub.f32 %v1493, %v1530
        %v1556 = vsub.f32 %v1495, %v1532
        %v1557 = vsub.f32 %v1498, %v1534
        %v1558 = vsub.f32 %v1500, %v1536
        %v1559 = vsub.f32 %v1503, %v1538
        %v1560 = vsub.f32 %v1505, %v1540
        %v1561 = vsub.f32 %v1508, %v1542
        %v1562 = vsub.f32 %v1510, %v1544
        %v1563 = vsub.f32 %v1513, %v1546
        %v1564 = vsub.f32 %v1515, %v1548
        %v1565 = vmul.f32 %v1549, 1.442695
        %v1566 = vpow.pop %v1565
        %v1567 = vmul.f32 %v1550, 1.442695
        %v1568 = vpow.pop %v1567
        %v1569 = vmul.f32 %v1551, 1.442695
        %v1570 = vpow.pop %v1569
        %v1571 = vmul.f32 %v1552, 1.442695
        %v1572 = vpow.pop %v1571
        %v1573 = vmul.f32 %v1553, 1.442695
        %v1574 = vpow.pop %v1573
        %v1575 = vmul.f32 %v1554, 1.442695
        %v1576 = vpow.pop %v1575
        %v1577 = vmul.f32 %v1555, 1.442695
        %v1578 = vpow.pop %v1577
        %v1579 = vmul.f32 %v1556, 1.442695
        %v1580 = vpow.pop %v1579
        %v1581 = vmul.f32 %v1557, 1.442695
        %v1582 = vpow.pop %v1581
        %v1583 = vmul.f32 %v1558, 1.442695
        %v1584 = vpow.pop %v1583
        %v1585 = vmul.f32 %v1559, 1.442695
        %v1586 = vpow.pop %v1585
        %v1587 = vmul.f32 %v1560, 1.442695
        %v1588 = vpow.pop %v1587
        %v1589 = vmul.f32 %v1561, 1.442695
        %v1590 = vpow.pop %v1589
        %v1591 = vmul.f32 %v1562, 1.442695
        %v1592 = vpow.pop %v1591
        %v1593 = vmul.f32 %v1563, 1.442695
        %v1594 = vpow.pop %v1593
        %v1595 = vmul.f32 %v1564, 1.442695
        %v1596 = vpow.pop %v1595
        %1597 = vadd.xlane.f32.xlu0 %v1566
        %v1598 = vpop.xlane.xlu0 %1597
        %1599 = vadd.xlane.f32.xlu0 %v1568
        %v1600 = vpop.xlane.xlu0 %1599
        %1601 = vadd.xlane.f32.xlu0 %v1570
        %v1602 = vpop.xlane.xlu0 %1601
        %1603 = vadd.xlane.f32.xlu0 %v1572
        %v1604 = vpop.xlane.xlu0 %1603
        %1605 = vadd.xlane.f32.xlu0 %v1574
        %v1606 = vpop.xlane.xlu0 %1605
        %1607 = vadd.xlane.f32.xlu0 %v1576
        %v1608 = vpop.xlane.xlu0 %1607
        %1609 = vadd.xlane.f32.xlu0 %v1578
        %v1610 = vpop.xlane.xlu0 %1609
        %1611 = vadd.xlane.f32.xlu0 %v1580
        %v1612 = vpop.xlane.xlu0 %1611
        %1613 = vadd.xlane.f32.xlu0 %v1582
        %v1614 = vpop.xlane.xlu0 %1613
        %1615 = vadd.xlane.f32.xlu0 %v1584
        %v1616 = vpop.xlane.xlu0 %1615
        %1617 = vadd.xlane.f32.xlu0 %v1586
        %v1618 = vpop.xlane.xlu0 %1617
        %1619 = vadd.xlane.f32.xlu0 %v1588
        %v1620 = vpop.xlane.xlu0 %1619
        %1621 = vadd.xlane.f32.xlu0 %v1590
        %v1622 = vpop.xlane.xlu0 %1621
        %1623 = vadd.xlane.f32.xlu0 %v1592
        %v1624 = vpop.xlane.xlu0 %1623
        %1625 = vadd.xlane.f32.xlu0 %v1594
        %v1626 = vpop.xlane.xlu0 %1625
        %1627 = vadd.xlane.f32.xlu0 %v1596
        %v1628 = vpop.xlane.xlu0 %1627
        %v1629 = vrcp.pop %v1598
        %v1630 = vrcp.pop %v1600
        %v1631 = vrcp.pop %v1602
        %v1632 = vrcp.pop %v1604
        %v1633 = vrcp.pop %v1606
        %v1634 = vrcp.pop %v1608
        %v1635 = vrcp.pop %v1610
        %v1636 = vrcp.pop %v1612
        %v1637 = vrcp.pop %v1614
        %v1638 = vrcp.pop %v1616
        %v1639 = vrcp.pop %v1618
        %v1640 = vrcp.pop %v1620
        %v1641 = vrcp.pop %v1622
        %v1642 = vrcp.pop %v1624
        %v1643 = vrcp.pop %v1626
        %v1644 = vrcp.pop %v1628
        %v1645 = vmul.f32 %v1566, %v1629
        %v1646 = vmul.f32 %v1568, %v1630
        %v1647 = vmul.f32 %v1570, %v1631
        %v1648 = vmul.f32 %v1572, %v1632
        %v1649 = vmul.f32 %v1574, %v1633
        %v1650 = vmul.f32 %v1576, %v1634
        %v1651 = vmul.f32 %v1578, %v1635
        %v1652 = vmul.f32 %v1580, %v1636
        %v1653 = vmul.f32 %v1582, %v1637
        %v1654 = vmul.f32 %v1584, %v1638
        %v1655 = vmul.f32 %v1586, %v1639
        %v1656 = vmul.f32 %v1588, %v1640
        %v1657 = vmul.f32 %v1590, %v1641
        %v1658 = vmul.f32 %v1592, %v1642
        %v1659 = vmul.f32 %v1594, %v1643
        %v1660 = vmul.f32 %v1596, %v1644
        %v1661 = vpack.c.bf16 %v1646, %v1645
        %v1662 = vpack.c.bf16 %v1648, %v1647
        %v1663 = vpack.c.bf16 %v1650, %v1649
        %v1664 = vpack.c.bf16 %v1652, %v1651
        %v1665 = vpack.c.bf16 %v1654, %v1653
        %v1666 = vpack.c.bf16 %v1656, %v1655
        %v1667 = vpack.c.bf16 %v1658, %v1657
        %v1668 = vpack.c.bf16 %v1660, %v1659
        %v1685 = vunpack.c.l.b16 %v1323
        %v1686 = vunpack.c.l.b16 %v1324
        %v1687 = vunpack.c.l.b16 %v1325
        %v1688 = vunpack.c.l.b16 %v1326
        %v1689 = vunpack.c.l.b16 %v1327
        %v1690 = vunpack.c.l.b16 %v1328
        %v1691 = vunpack.c.l.b16 %v1329
        %v1692 = vunpack.c.l.b16 %v1330
        %v1693 = vunpack.c.l.b16 %v1331
        %v1694 = vunpack.c.l.b16 %v1332
        %v1695 = vunpack.c.l.b16 %v1333
        %v1696 = vunpack.c.l.b16 %v1334
        %v1697 = vunpack.c.l.b16 %v1335
        %v1698 = vunpack.c.l.b16 %v1336
        %v1699 = vunpack.c.l.b16 %v1337
        %v1700 = vunpack.c.l.b16 %v1338
        %v1701 = vpack.c.b16 %v1686, %v1685
        %v1702 = vpack.c.b16 %v1688, %v1687
        %v1703 = vpack.c.b16 %v1690, %v1689
        %v1704 = vpack.c.b16 %v1692, %v1691
        %v1705 = vpack.c.b16 %v1694, %v1693
        %v1706 = vpack.c.b16 %v1696, %v1695
        %v1707 = vpack.c.b16 %v1698, %v1697
        %v1708 = vpack.c.b16 %v1700, %v1699
        %1717 = vmatpush.bf16.msra.mxu0 %v1708
        %1718 = vmatpush.bf16.msra.mxu0 %v1707
        %1719 = vmatpush.bf16.msra.mxu0 %v1706
        %1720 = vmatpush.bf16.msra.mxu0 %v1705
        %1721 = vmatpush.bf16.msra.mxu0 %v1704
        %1722 = vmatpush.bf16.msra.mxu0 %v1703
        %1723 = vmatpush.bf16.msra.mxu0 %v1702
        %1724 = vmatpush.bf16.msra.mxu0 %v1701
        %1725 = vmatmul.bf16.gmra.mxu0 %v1661
        %v1726 = vpop.f32.mrf.mxu0
        %v1727 = vadd.f32 0.0, %v1726
        %v1728 = vpop.f32.mrf.mxu0
        %v1729 = vadd.f32 0.0, %v1728
        %1730 = vmatmul.bf16.gmra.mxu0 %v1662
        %v1731 = vpop.f32.mrf.mxu0
        %v1732 = vadd.f32 0.0, %v1731
        %v1733 = vpop.f32.mrf.mxu0
        %v1734 = vadd.f32 0.0, %v1733
        %1735 = vmatmul.bf16.gmra.mxu0 %v1663
        %v1736 = vpop.f32.mrf.mxu0
        %v1737 = vadd.f32 0.0, %v1736
        %v1738 = vpop.f32.mrf.mxu0
        %v1739 = vadd.f32 0.0, %v1738
        %1740 = vmatmul.bf16.gmra.mxu0 %v1664
        %v1741 = vpop.f32.mrf.mxu0
        %v1742 = vadd.f32 0.0, %v1741
        %v1743 = vpop.f32.mrf.mxu0
        %v1744 = vadd.f32 0.0, %v1743
        %1745 = vmatmul.bf16.gmra.mxu0 %v1665
        %v1746 = vpop.f32.mrf.mxu0
        %v1747 = vadd.f32 0.0, %v1746
        %v1748 = vpop.f32.mrf.mxu0
        %v1749 = vadd.f32 0.0, %v1748
        %1750 = vmatmul.bf16.gmra.mxu0 %v1666
        %v1751 = vpop.f32.mrf.mxu0
        %v1752 = vadd.f32 0.0, %v1751
        %v1753 = vpop.f32.mrf.mxu0
        %v1754 = vadd.f32 0.0, %v1753
        %1755 = vmatmul.bf16.gmra.mxu0 %v1667
        %v1756 = vpop.f32.mrf.mxu0
        %v1757 = vadd.f32 0.0, %v1756
        %v1758 = vpop.f32.mrf.mxu0
        %v1759 = vadd.f32 0.0, %v1758
        %1760 = vmatmul.bf16.gmra.mxu0 %v1668
        %v1761 = vpop.f32.mrf.mxu0
        %v1762 = vadd.f32 0.0, %v1761
        %v1763 = vpop.f32.mrf.mxu0
        %v1764 = vadd.f32 0.0, %v1763
        %1765 = vdwg.mxu0
        %v1766 = vpack.c.bf16 %v1729, %v1727
        %v1767 = vpack.c.bf16 %v1734, %v1732
        %v1768 = vpack.c.bf16 %v1739, %v1737
        %v1769 = vpack.c.bf16 %v1744, %v1742
        %v1770 = vpack.c.bf16 %v1749, %v1747
        %v1771 = vpack.c.bf16 %v1754, %v1752
        %v1772 = vpack.c.bf16 %v1759, %v1757
        %v1773 = vpack.c.bf16 %v1764, %v1762
        %v1774 = vld [vmem:[#allocation8] sm:$0xf]
        %v1775 = vld [vmem:[#allocation8 + $0x4] sm:$0xf]
        %v1776 = vld [vmem:[#allocation8 + $0x8] sm:$0xf]
        %v1777 = vld [vmem:[#allocation8 + $0xc] sm:$0xf]
        %1778 = vrot.lane.b32.xlu0 %v1371, 96
        %v1779 = vpop.permute.xlu0 %1778
        %1780 = vrot.lane.b32.xlu0 %v1372, 96
        %v1781 = vpop.permute.xlu0 %1780
        %1782 = vrot.lane.b32.xlu0 %v1373, 96
        %v1783 = vpop.permute.xlu0 %1782
        %1784 = vrot.lane.b32.xlu0 %v1374, 96
        %v1785 = vpop.permute.xlu0 %1784
        %1786 = vrot.lane.b32.xlu0 %v1375, 96
        %v1787 = vpop.permute.xlu0 %1786
        %1788 = vrot.lane.b32.xlu0 %v1376, 96
        %v1789 = vpop.permute.xlu0 %1788
        %1790 = vrot.lane.b32.xlu0 %v1377, 96
        %v1791 = vpop.permute.xlu0 %1790
        %1792 = vrot.lane.b32.xlu0 %v1378, 96
        %v1793 = vpop.permute.xlu0 %1792
        %1794 = vrot.lane.b32.xlu0 %v1411, 96
        %v1795 = vpop.permute.xlu0 %1794
        %1796 = vrot.lane.b32.xlu0 %v1412, 96
        %v1797 = vpop.permute.xlu0 %1796
        %1798 = vrot.lane.b32.xlu0 %v1413, 96
        %v1799 = vpop.permute.xlu0 %1798
        %1800 = vrot.lane.b32.xlu0 %v1414, 96
        %v1801 = vpop.permute.xlu0 %1800
        %1802 = vrot.lane.b32.xlu0 %v1415, 96
        %v1803 = vpop.permute.xlu0 %1802
        %1804 = vrot.lane.b32.xlu0 %v1416, 96
        %v1805 = vpop.permute.xlu0 %1804
        %1806 = vrot.lane.b32.xlu0 %v1417, 96
        %v1807 = vpop.permute.xlu0 %1806
        %1808 = vrot.lane.b32.xlu0 %v1418, 96
        %v1809 = vpop.permute.xlu0 %1808
        %v1811 = vsel %vm1419, %v1779, 0
        %v1814 = vsel %vm1419, %v1781, 0
        %v1817 = vsel %vm1419, %v1783, 0
        %v1820 = vsel %vm1419, %v1785, 0
        %v1823 = vsel %vm1419, %v1787, 0
        %v1826 = vsel %vm1419, %v1789, 0
        %v1829 = vsel %vm1419, %v1791, 0
        %v1832 = vsel %vm1419, %v1793, 0
        %v1835 = vsel %vm1419, %v1795, 0
        %v1838 = vsel %vm1419, %v1797, 0
        %v1841 = vsel %vm1419, %v1799, 0
        %v1844 = vsel %vm1419, %v1801, 0
        %v1847 = vsel %vm1419, %v1803, 0
        %v1850 = vsel %vm1419, %v1805, 0
        %v1853 = vsel %vm1419, %v1807, 0
        %v1856 = vsel %vm1419, %v1809, 0
        %1858 = vmatpush.bf16.xpose.msra.mxu0 %v1856
        %1859 = vmatpush.bf16.xpose.msra.mxu0 %v1853
        %1860 = vmatpush.bf16.xpose.msra.mxu0 %v1850
        %1861 = vmatpush.bf16.xpose.msra.mxu0 %v1847
        %1862 = vmatpush.bf16.xpose.msra.mxu0 %v1844
        %1863 = vmatpush.bf16.xpose.msra.mxu0 %v1841
        %1864 = vmatpush.bf16.xpose.msra.mxu0 %v1838
        %1865 = vmatpush.bf16.xpose.msra.mxu0 %v1835
        %1866 = vmatmul.bf16.gmra.mxu0 %v1811
        %v1867 = vpop.f32.mrf.mxu0
        %v1868 = vadd.f32 %v593, %v1867
        %v1869 = vpop.f32.mrf.mxu0
        %v1870 = vadd.f32 %v594, %v1869
        %1871 = vmatmul.bf16.gmra.mxu0 %v1814
        %v1872 = vpop.f32.mrf.mxu0
        %v1873 = vadd.f32 %v595, %v1872
        %v1874 = vpop.f32.mrf.mxu0
        %v1875 = vadd.f32 %v596, %v1874
        %1876 = vmatmul.bf16.gmra.mxu0 %v1817
        %v1877 = vpop.f32.mrf.mxu0
        %v1878 = vadd.f32 %v597, %v1877
        %v1879 = vpop.f32.mrf.mxu0
        %v1880 = vadd.f32 %v598, %v1879
        %1881 = vmatmul.bf16.gmra.mxu0 %v1820
        %v1882 = vpop.f32.mrf.mxu0
        %v1883 = vadd.f32 %v599, %v1882
        %v1884 = vpop.f32.mrf.mxu0
        %v1885 = vadd.f32 %v600, %v1884
        %1886 = vmatmul.bf16.gmra.mxu0 %v1823
        %v1887 = vpop.f32.mrf.mxu0
        %v1888 = vadd.f32 %v601, %v1887
        %v1889 = vpop.f32.mrf.mxu0
        %v1890 = vadd.f32 %v602, %v1889
        %1891 = vmatmul.bf16.gmra.mxu0 %v1826
        %v1892 = vpop.f32.mrf.mxu0
        %v1893 = vadd.f32 %v603, %v1892
        %v1894 = vpop.f32.mrf.mxu0
        %v1895 = vadd.f32 %v604, %v1894
        %1896 = vmatmul.bf16.gmra.mxu0 %v1829
        %v1897 = vpop.f32.mrf.mxu0
        %v1898 = vadd.f32 %v605, %v1897
        %v1899 = vpop.f32.mrf.mxu0
        %v1900 = vadd.f32 %v606, %v1899
        %1901 = vmatmul.bf16.gmra.mxu0 %v1832
        %v1902 = vpop.f32.mrf.mxu0
        %v1903 = vadd.f32 %v607, %v1902
        %v1904 = vpop.f32.mrf.mxu0
        %v1905 = vadd.f32 %v608, %v1904
        %1906 = vdwg.mxu0
        %1907 = vmax.xlane.f32.xlu0 %v1868
        %v1908 = vpop.xlane.xlu0 %1907
        %1909 = vmax.xlane.f32.xlu0 %v1870
        %v1910 = vpop.xlane.xlu0 %1909
        %1911 = vmax.xlane.f32.xlu0 %v1873
        %v1912 = vpop.xlane.xlu0 %1911
        %1913 = vmax.xlane.f32.xlu0 %v1875
        %v1914 = vpop.xlane.xlu0 %1913
        %1915 = vmax.xlane.f32.xlu0 %v1878
        %v1916 = vpop.xlane.xlu0 %1915
        %1917 = vmax.xlane.f32.xlu0 %v1880
        %v1918 = vpop.xlane.xlu0 %1917
        %1919 = vmax.xlane.f32.xlu0 %v1883
        %v1920 = vpop.xlane.xlu0 %1919
        %1921 = vmax.xlane.f32.xlu0 %v1885
        %v1922 = vpop.xlane.xlu0 %1921
        %1923 = vmax.xlane.f32.xlu0 %v1888
        %v1924 = vpop.xlane.xlu0 %1923
        %1925 = vmax.xlane.f32.xlu0 %v1890
        %v1926 = vpop.xlane.xlu0 %1925
        %1927 = vmax.xlane.f32.xlu0 %v1893
        %v1928 = vpop.xlane.xlu0 %1927
        %1929 = vmax.xlane.f32.xlu0 %v1895
        %v1930 = vpop.xlane.xlu0 %1929
        %1931 = vmax.xlane.f32.xlu0 %v1898
        %v1932 = vpop.xlane.xlu0 %1931
        %1933 = vmax.xlane.f32.xlu0 %v1900
        %v1934 = vpop.xlane.xlu0 %1933
        %1935 = vmax.xlane.f32.xlu0 %v1903
        %v1936 = vpop.xlane.xlu0 %1935
        %1937 = vmax.xlane.f32.xlu0 %v1905
        %v1938 = vpop.xlane.xlu0 %1937
        %v1939 = vsub.f32 %v1868, %v1908
        %v1940 = vsub.f32 %v1870, %v1910
        %v1941 = vsub.f32 %v1873, %v1912
        %v1942 = vsub.f32 %v1875, %v1914
        %v1943 = vsub.f32 %v1878, %v1916
        %v1944 = vsub.f32 %v1880, %v1918
        %v1945 = vsub.f32 %v1883, %v1920
        %v1946 = vsub.f32 %v1885, %v1922
        %v1947 = vsub.f32 %v1888, %v1924
        %v1948 = vsub.f32 %v1890, %v1926
        %v1949 = vsub.f32 %v1893, %v1928
        %v1950 = vsub.f32 %v1895, %v1930
        %v1951 = vsub.f32 %v1898, %v1932
        %v1952 = vsub.f32 %v1900, %v1934
        %v1953 = vsub.f32 %v1903, %v1936
        %v1954 = vsub.f32 %v1905, %v1938
        %v1955 = vmul.f32 %v1939, 1.442695
        %v1956 = vpow.pop %v1955
        %v1957 = vmul.f32 %v1940, 1.442695
        %v1958 = vpow.pop %v1957
        %v1959 = vmul.f32 %v1941, 1.442695
        %v1960 = vpow.pop %v1959
        %v1961 = vmul.f32 %v1942, 1.442695
        %v1962 = vpow.pop %v1961
        %v1963 = vmul.f32 %v1943, 1.442695
        %v1964 = vpow.pop %v1963
        %v1965 = vmul.f32 %v1944, 1.442695
        %v1966 = vpow.pop %v1965
        %v1967 = vmul.f32 %v1945, 1.442695
        %v1968 = vpow.pop %v1967
        %v1969 = vmul.f32 %v1946, 1.442695
        %v1970 = vpow.pop %v1969
        %v1971 = vmul.f32 %v1947, 1.442695
        %v1972 = vpow.pop %v1971
        %v1973 = vmul.f32 %v1948, 1.442695
        %v1974 = vpow.pop %v1973
        %v1975 = vmul.f32 %v1949, 1.442695
        %v1976 = vpow.pop %v1975
        %v1977 = vmul.f32 %v1950, 1.442695
        %v1978 = vpow.pop %v1977
        %v1979 = vmul.f32 %v1951, 1.442695
        %v1980 = vpow.pop %v1979
        %v1981 = vmul.f32 %v1952, 1.442695
        %v1982 = vpow.pop %v1981
        %v1983 = vmul.f32 %v1953, 1.442695
        %v1984 = vpow.pop %v1983
        %v1985 = vmul.f32 %v1954, 1.442695
        %v1986 = vpow.pop %v1985
        %1987 = vadd.xlane.f32.xlu0 %v1956
        %v1988 = vpop.xlane.xlu0 %1987
        %1989 = vadd.xlane.f32.xlu0 %v1958
        %v1990 = vpop.xlane.xlu0 %1989
        %1991 = vadd.xlane.f32.xlu0 %v1960
        %v1992 = vpop.xlane.xlu0 %1991
        %1993 = vadd.xlane.f32.xlu0 %v1962
        %v1994 = vpop.xlane.xlu0 %1993
        %1995 = vadd.xlane.f32.xlu0 %v1964
        %v1996 = vpop.xlane.xlu0 %1995
        %1997 = vadd.xlane.f32.xlu0 %v1966
        %v1998 = vpop.xlane.xlu0 %1997
        %1999 = vadd.xlane.f32.xlu0 %v1968
        %v2000 = vpop.xlane.xlu0 %1999
        %2001 = vadd.xlane.f32.xlu0 %v1970
        %v2002 = vpop.xlane.xlu0 %2001
        %2003 = vadd.xlane.f32.xlu0 %v1972
        %v2004 = vpop.xlane.xlu0 %2003
        %2005 = vadd.xlane.f32.xlu0 %v1974
        %v2006 = vpop.xlane.xlu0 %2005
        %2007 = vadd.xlane.f32.xlu0 %v1976
        %v2008 = vpop.xlane.xlu0 %2007
        %2009 = vadd.xlane.f32.xlu0 %v1978
        %v2010 = vpop.xlane.xlu0 %2009
        %2011 = vadd.xlane.f32.xlu0 %v1980
        %v2012 = vpop.xlane.xlu0 %2011
        %2013 = vadd.xlane.f32.xlu0 %v1982
        %v2014 = vpop.xlane.xlu0 %2013
        %2015 = vadd.xlane.f32.xlu0 %v1984
        %v2016 = vpop.xlane.xlu0 %2015
        %2017 = vadd.xlane.f32.xlu0 %v1986
        %v2018 = vpop.xlane.xlu0 %2017
        %v2019 = vrcp.pop %v1988
        %v2020 = vrcp.pop %v1990
        %v2021 = vrcp.pop %v1992
        %v2022 = vrcp.pop %v1994
        %v2023 = vrcp.pop %v1996
        %v2024 = vrcp.pop %v1998
        %v2025 = vrcp.pop %v2000
        %v2026 = vrcp.pop %v2002
        %v2027 = vrcp.pop %v2004
        %v2028 = vrcp.pop %v2006
        %v2029 = vrcp.pop %v2008
        %v2030 = vrcp.pop %v2010
        %v2031 = vrcp.pop %v2012
        %v2032 = vrcp.pop %v2014
        %v2033 = vrcp.pop %v2016
        %v2034 = vrcp.pop %v2018
        %v2035 = vmul.f32 %v1956, %v2019
        %v2036 = vmul.f32 %v1958, %v2020
        %v2037 = vmul.f32 %v1960, %v2021
        %v2038 = vmul.f32 %v1962, %v2022
        %v2039 = vmul.f32 %v1964, %v2023
        %v2040 = vmul.f32 %v1966, %v2024
        %v2041 = vmul.f32 %v1968, %v2025
        %v2042 = vmul.f32 %v1970, %v2026
        %v2043 = vmul.f32 %v1972, %v2027
        %v2044 = vmul.f32 %v1974, %v2028
        %v2045 = vmul.f32 %v1976, %v2029
        %v2046 = vmul.f32 %v1978, %v2030
        %v2047 = vmul.f32 %v1980, %v2031
        %v2048 = vmul.f32 %v1982, %v2032
        %v2049 = vmul.f32 %v1984, %v2033
        %v2050 = vmul.f32 %v1986, %v2034
        %v2051 = vpack.c.bf16 %v2036, %v2035
        %v2052 = vpack.c.bf16 %v2038, %v2037
        %v2053 = vpack.c.bf16 %v2040, %v2039
        %v2054 = vpack.c.bf16 %v2042, %v2041
        %v2055 = vpack.c.bf16 %v2044, %v2043
        %v2056 = vpack.c.bf16 %v2046, %v2045
        %v2057 = vpack.c.bf16 %v2048, %v2047
        %v2058 = vpack.c.bf16 %v2050, %v2049
        %2059 = vrot.lane.b32.xlu0 %v1701, 96
        %v2060 = vpop.permute.xlu0 %2059
        %2061 = vrot.lane.b32.xlu0 %v1702, 96
        %v2062 = vpop.permute.xlu0 %2061
        %2063 = vrot.lane.b32.xlu0 %v1703, 96
        %v2064 = vpop.permute.xlu0 %2063
        %2065 = vrot.lane.b32.xlu0 %v1704, 96
        %v2066 = vpop.permute.xlu0 %2065
        %2067 = vrot.lane.b32.xlu0 %v1705, 96
        %v2068 = vpop.permute.xlu0 %2067
        %2069 = vrot.lane.b32.xlu0 %v1706, 96
        %v2070 = vpop.permute.xlu0 %2069
        %2071 = vrot.lane.b32.xlu0 %v1707, 96
        %v2072 = vpop.permute.xlu0 %2071
        %2073 = vrot.lane.b32.xlu0 %v1708, 96
        %v2074 = vpop.permute.xlu0 %2073
        %2083 = vmatpush.bf16.msra.mxu0 %v2074
        %2084 = vmatpush.bf16.msra.mxu0 %v2072
        %2085 = vmatpush.bf16.msra.mxu0 %v2070
        %2086 = vmatpush.bf16.msra.mxu0 %v2068
        %2087 = vmatpush.bf16.msra.mxu0 %v2066
        %2088 = vmatpush.bf16.msra.mxu0 %v2064
        %2089 = vmatpush.bf16.msra.mxu0 %v2062
        %2090 = vmatpush.bf16.msra.mxu0 %v2060
        %2091 = vmatmul.bf16.gmra.mxu0 %v2051
        %v2092 = vpop.f32.mrf.mxu0
        %v2093 = vadd.f32 0.0, %v2092
        %v2094 = vpop.f32.mrf.mxu0
        %v2095 = vadd.f32 0.0, %v2094
        %2096 = vmatmul.bf16.gmra.mxu0 %v2052
        %v2097 = vpop.f32.mrf.mxu0
        %v2098 = vadd.f32 0.0, %v2097
        %v2099 = vpop.f32.mrf.mxu0
        %v2100 = vadd.f32 0.0, %v2099
        %2101 = vmatmul.bf16.gmra.mxu0 %v2053
        %v2102 = vpop.f32.mrf.mxu0
        %v2103 = vadd.f32 0.0, %v2102
        %v2104 = vpop.f32.mrf.mxu0
        %v2105 = vadd.f32 0.0, %v2104
        %2106 = vmatmul.bf16.gmra.mxu0 %v2054
        %v2107 = vpop.f32.mrf.mxu0
        %v2108 = vadd.f32 0.0, %v2107
        %v2109 = vpop.f32.mrf.mxu0
        %v2110 = vadd.f32 0.0, %v2109
        %2111 = vmatmul.bf16.gmra.mxu0 %v2055
        %v2112 = vpop.f32.mrf.mxu0
        %v2113 = vadd.f32 0.0, %v2112
        %v2114 = vpop.f32.mrf.mxu0
        %v2115 = vadd.f32 0.0, %v2114
        %2116 = vmatmul.bf16.gmra.mxu0 %v2056
        %v2117 = vpop.f32.mrf.mxu0
        %v2118 = vadd.f32 0.0, %v2117
        %v2119 = vpop.f32.mrf.mxu0
        %v2120 = vadd.f32 0.0, %v2119
        %2121 = vmatmul.bf16.gmra.mxu0 %v2057
        %v2122 = vpop.f32.mrf.mxu0
        %v2123 = vadd.f32 0.0, %v2122
        %v2124 = vpop.f32.mrf.mxu0
        %v2125 = vadd.f32 0.0, %v2124
        %2126 = vmatmul.bf16.gmra.mxu0 %v2058
        %v2127 = vpop.f32.mrf.mxu0
        %v2128 = vadd.f32 0.0, %v2127
        %v2129 = vpop.f32.mrf.mxu0
        %v2130 = vadd.f32 0.0, %v2129
        %2131 = vdwg.mxu0
        %v2132 = vpack.c.bf16 %v2095, %v2093
        %v2133 = vpack.c.bf16 %v2100, %v2098
        %v2134 = vpack.c.bf16 %v2105, %v2103
        %v2135 = vpack.c.bf16 %v2110, %v2108
        %v2136 = vpack.c.bf16 %v2115, %v2113
        %v2137 = vpack.c.bf16 %v2120, %v2118
        %v2138 = vpack.c.bf16 %v2125, %v2123
        %v2139 = vpack.c.bf16 %v2130, %v2128
        %v2140 = vld [vmem:[#allocation8 + $0x10] sm:$0xf]
        %v2141 = vld [vmem:[#allocation8 + $0x14] sm:$0xf]
        %v2142 = vld [vmem:[#allocation8 + $0x18] sm:$0xf]
        %v2143 = vld [vmem:[#allocation8 + $0x1c] sm:$0xf]
        %v2148 = vunpack.c.l.b16 %v2140
        %v2149 = vunpack.c.l.b16 %v2141
        %v2150 = vunpack.c.l.b16 %v2142
        %v2151 = vunpack.c.l.b16 %v2143
        %v2152 = vpack.c.b16 %v2149, %v2148
        %v2153 = vpack.c.b16 %v2151, %v2150
        %v2157 = vsel %vm1419, %v2132, 0
        %v2160 = vsel %vm1419, %v2133, 0
        %v2163 = vsel %vm1419, %v2134, 0
        %v2166 = vsel %vm1419, %v2135, 0
        %v2169 = vsel %vm1419, %v2136, 0
        %v2172 = vsel %vm1419, %v2137, 0
        %v2175 = vsel %vm1419, %v2138, 0
        %v2178 = vsel %vm1419, %v2139, 0
        %2180 = vmatpush.bf16.msra.mxu0 0
        %2181 = vmatpush.bf16.msra.mxu0 0
        %2182 = vmatpush.bf16.msra.mxu0 0
        %2183 = vmatpush.bf16.msra.mxu0 0
        %2184 = vmatpush.bf16.msra.mxu0 0
        %2185 = vmatpush.bf16.msra.mxu0 0
        %2186 = vmatpush.bf16.msra.mxu0 %v2153
        %2187 = vmatpush.bf16.msra.mxu0 %v2152
        %2188 = vmatmul.bf16.gmra.mxu0 %v2157
        %v2189 = vpop.f32.mrf.mxu0
        %v2190 = vadd.f32 0.0, %v2189
        %v2191 = vpop.f32.mrf.mxu0
        %v2192 = vadd.f32 0.0, %v2191
        %2193 = vmatmul.bf16.gmra.mxu0 %v2160
        %v2194 = vpop.f32.mrf.mxu0
        %v2195 = vadd.f32 0.0, %v2194
        %v2196 = vpop.f32.mrf.mxu0
        %v2197 = vadd.f32 0.0, %v2196
        %2198 = vmatmul.bf16.gmra.mxu0 %v2163
        %v2199 = vpop.f32.mrf.mxu0
        %v2200 = vadd.f32 0.0, %v2199
        %v2201 = vpop.f32.mrf.mxu0
        %v2202 = vadd.f32 0.0, %v2201
        %2203 = vmatmul.bf16.gmra.mxu0 %v2166
        %v2204 = vpop.f32.mrf.mxu0
        %v2205 = vadd.f32 0.0, %v2204
        %v2206 = vpop.f32.mrf.mxu0
        %v2207 = vadd.f32 0.0, %v2206
        %2208 = vmatmul.bf16.gmra.mxu0 %v2169
        %v2209 = vpop.f32.mrf.mxu0
        %v2210 = vadd.f32 0.0, %v2209
        %v2211 = vpop.f32.mrf.mxu0
        %v2212 = vadd.f32 0.0, %v2211
        %2213 = vmatmul.bf16.gmra.mxu0 %v2172
        %v2214 = vpop.f32.mrf.mxu0
        %v2215 = vadd.f32 0.0, %v2214
        %v2216 = vpop.f32.mrf.mxu0
        %v2217 = vadd.f32 0.0, %v2216
        %2218 = vmatmul.bf16.gmra.mxu0 %v2175
        %v2219 = vpop.f32.mrf.mxu0
        %v2220 = vadd.f32 0.0, %v2219
        %v2221 = vpop.f32.mrf.mxu0
        %v2222 = vadd.f32 0.0, %v2221
        %2223 = vmatmul.bf16.gmra.mxu0 %v2178
        %v2224 = vpop.f32.mrf.mxu0
        %v2225 = vadd.f32 0.0, %v2224
        %v2226 = vpop.f32.mrf.mxu0
        %v2227 = vadd.f32 0.0, %v2226
        %2228 = vdwg.mxu0
        %v2233 = vunpack.c.l.b16 %v1774
        %v2234 = vunpack.c.l.b16 %v1775
        %v2235 = vunpack.c.l.b16 %v1776
        %v2236 = vunpack.c.l.b16 %v1777
        %v2237 = vpack.c.b16 %v2234, %v2233
        %v2238 = vpack.c.b16 %v2236, %v2235
        %v2242 = vsel %vm1419, %v1766, 0
        %v2245 = vsel %vm1419, %v1767, 0
        %v2248 = vsel %vm1419, %v1768, 0
        %v2251 = vsel %vm1419, %v1769, 0
        %v2254 = vsel %vm1419, %v1770, 0
        %v2257 = vsel %vm1419, %v1771, 0
        %v2260 = vsel %vm1419, %v1772, 0
        %v2263 = vsel %vm1419, %v1773, 0
        %2265 = vmatpush.bf16.msra.mxu0 0
        %2266 = vmatpush.bf16.msra.mxu0 0
        %2267 = vmatpush.bf16.msra.mxu0 0
        %2268 = vmatpush.bf16.msra.mxu0 0
        %2269 = vmatpush.bf16.msra.mxu0 0
        %2270 = vmatpush.bf16.msra.mxu0 0
        %2271 = vmatpush.bf16.msra.mxu0 %v2238
        %2272 = vmatpush.bf16.msra.mxu0 %v2237
        %2273 = vmatmul.bf16.gmra.mxu0 %v2242
        %v2274 = vpop.f32.mrf.mxu0
        %v2275 = vadd.f32 %v2190, %v2274
        %v2276 = vpop.f32.mrf.mxu0
        %v2277 = vadd.f32 %v2192, %v2276
        %2278 = vmatmul.bf16.gmra.mxu0 %v2245
        %v2279 = vpop.f32.mrf.mxu0
        %v2280 = vadd.f32 %v2195, %v2279
        %v2281 = vpop.f32.mrf.mxu0
        %v2282 = vadd.f32 %v2197, %v2281
        %2283 = vmatmul.bf16.gmra.mxu0 %v2248
        %v2284 = vpop.f32.mrf.mxu0
        %v2285 = vadd.f32 %v2200, %v2284
        %v2286 = vpop.f32.mrf.mxu0
        %v2287 = vadd.f32 %v2202, %v2286
        %2288 = vmatmul.bf16.gmra.mxu0 %v2251
        %v2289 = vpop.f32.mrf.mxu0
        %v2290 = vadd.f32 %v2205, %v2289
        %v2291 = vpop.f32.mrf.mxu0
        %v2292 = vadd.f32 %v2207, %v2291
        %2293 = vmatmul.bf16.gmra.mxu0 %v2254
        %v2294 = vpop.f32.mrf.mxu0
        %v2295 = vadd.f32 %v2210, %v2294
        %v2296 = vpop.f32.mrf.mxu0
        %v2297 = vadd.f32 %v2212, %v2296
        %2298 = vmatmul.bf16.gmra.mxu0 %v2257
        %v2299 = vpop.f32.mrf.mxu0
        %v2300 = vadd.f32 %v2215, %v2299
        %v2301 = vpop.f32.mrf.mxu0
        %v2302 = vadd.f32 %v2217, %v2301
        %2303 = vmatmul.bf16.gmra.mxu0 %v2260
        %v2304 = vpop.f32.mrf.mxu0
        %v2305 = vadd.f32 %v2220, %v2304
        %v2306 = vpop.f32.mrf.mxu0
        %v2307 = vadd.f32 %v2222, %v2306
        %2308 = vmatmul.bf16.gmra.mxu0 %v2263
        %v2309 = vpop.f32.mrf.mxu0
        %v2310 = vadd.f32 %v2225, %v2309
        %v2311 = vpop.f32.mrf.mxu0
        %v2312 = vadd.f32 %v2227, %v2311
        %2313 = vdwg.mxu0
        %2314 = vrot.lane.b32.xlu0 %v1371, 64
        %v2315 = vpop.permute.xlu0 %2314
        %2316 = vrot.lane.b32.xlu0 %v1372, 64
        %v2317 = vpop.permute.xlu0 %2316
        %2318 = vrot.lane.b32.xlu0 %v1373, 64
        %v2319 = vpop.permute.xlu0 %2318
        %2320 = vrot.lane.b32.xlu0 %v1374, 64
        %v2321 = vpop.permute.xlu0 %2320
        %2322 = vrot.lane.b32.xlu0 %v1375, 64
        %v2323 = vpop.permute.xlu0 %2322
        %2324 = vrot.lane.b32.xlu0 %v1376, 64
        %v2325 = vpop.permute.xlu0 %2324
        %2326 = vrot.lane.b32.xlu0 %v1377, 64
        %v2327 = vpop.permute.xlu0 %2326
        %2328 = vrot.lane.b32.xlu0 %v1378, 64
        %v2329 = vpop.permute.xlu0 %2328
        %2330 = vrot.lane.b32.xlu0 %v1411, 64
        %v2331 = vpop.permute.xlu0 %2330
        %2332 = vrot.lane.b32.xlu0 %v1412, 64
        %v2333 = vpop.permute.xlu0 %2332
        %2334 = vrot.lane.b32.xlu0 %v1413, 64
        %v2335 = vpop.permute.xlu0 %2334
        %2336 = vrot.lane.b32.xlu0 %v1414, 64
        %v2337 = vpop.permute.xlu0 %2336
        %2338 = vrot.lane.b32.xlu0 %v1415, 64
        %v2339 = vpop.permute.xlu0 %2338
        %2340 = vrot.lane.b32.xlu0 %v1416, 64
        %v2341 = vpop.permute.xlu0 %2340
        %2342 = vrot.lane.b32.xlu0 %v1417, 64
        %v2343 = vpop.permute.xlu0 %2342
        %2344 = vrot.lane.b32.xlu0 %v1418, 64
        %v2345 = vpop.permute.xlu0 %2344
        %v2347 = vsel %vm1419, %v2315, 0
        %v2350 = vsel %vm1419, %v2317, 0
        %v2353 = vsel %vm1419, %v2319, 0
        %v2356 = vsel %vm1419, %v2321, 0
        %v2359 = vsel %vm1419, %v2323, 0
        %v2362 = vsel %vm1419, %v2325, 0
        %v2365 = vsel %vm1419, %v2327, 0
        %v2368 = vsel %vm1419, %v2329, 0
        %v2371 = vsel %vm1419, %v2331, 0
        %v2374 = vsel %vm1419, %v2333, 0
        %v2377 = vsel %vm1419, %v2335, 0
        %v2380 = vsel %vm1419, %v2337, 0
        %v2383 = vsel %vm1419, %v2339, 0
        %v2386 = vsel %vm1419, %v2341, 0
        %v2389 = vsel %vm1419, %v2343, 0
        %v2392 = vsel %vm1419, %v2345, 0
        %2394 = vmatpush.bf16.xpose.msra.mxu0 %v2392
        %2395 = vmatpush.bf16.xpose.msra.mxu0 %v2389
        %2396 = vmatpush.bf16.xpose.msra.mxu0 %v2386
        %2397 = vmatpush.bf16.xpose.msra.mxu0 %v2383
        %2398 = vmatpush.bf16.xpose.msra.mxu0 %v2380
        %2399 = vmatpush.bf16.xpose.msra.mxu0 %v2377
        %2400 = vmatpush.bf16.xpose.msra.mxu0 %v2374
        %2401 = vmatpush.bf16.xpose.msra.mxu0 %v2371
        %2402 = vmatmul.bf16.gmra.mxu0 %v2347
        %v2403 = vpop.f32.mrf.mxu0
        %v2404 = vadd.f32 %v593, %v2403
        %v2405 = vpop.f32.mrf.mxu0
        %v2406 = vadd.f32 %v594, %v2405
        %2407 = vmatmul.bf16.gmra.mxu0 %v2350
        %v2408 = vpop.f32.mrf.mxu0
        %v2409 = vadd.f32 %v595, %v2408
        %v2410 = vpop.f32.mrf.mxu0
        %v2411 = vadd.f32 %v596, %v2410
        %2412 = vmatmul.bf16.gmra.mxu0 %v2353
        %v2413 = vpop.f32.mrf.mxu0
        %v2414 = vadd.f32 %v597, %v2413
        %v2415 = vpop.f32.mrf.mxu0
        %v2416 = vadd.f32 %v598, %v2415
        %2417 = vmatmul.bf16.gmra.mxu0 %v2356
        %v2418 = vpop.f32.mrf.mxu0
        %v2419 = vadd.f32 %v599, %v2418
        %v2420 = vpop.f32.mrf.mxu0
        %v2421 = vadd.f32 %v600, %v2420
        %2422 = vmatmul.bf16.gmra.mxu0 %v2359
        %v2423 = vpop.f32.mrf.mxu0
        %v2424 = vadd.f32 %v601, %v2423
        %v2425 = vpop.f32.mrf.mxu0
        %v2426 = vadd.f32 %v602, %v2425
        %2427 = vmatmul.bf16.gmra.mxu0 %v2362
        %v2428 = vpop.f32.mrf.mxu0
        %v2429 = vadd.f32 %v603, %v2428
        %v2430 = vpop.f32.mrf.mxu0
        %v2431 = vadd.f32 %v604, %v2430
        %2432 = vmatmul.bf16.gmra.mxu0 %v2365
        %v2433 = vpop.f32.mrf.mxu0
        %v2434 = vadd.f32 %v605, %v2433
        %v2435 = vpop.f32.mrf.mxu0
        %v2436 = vadd.f32 %v606, %v2435
        %2437 = vmatmul.bf16.gmra.mxu0 %v2368
        %v2438 = vpop.f32.mrf.mxu0
        %v2439 = vadd.f32 %v607, %v2438
        %v2440 = vpop.f32.mrf.mxu0
        %v2441 = vadd.f32 %v608, %v2440
        %2442 = vdwg.mxu0
        %2443 = vmax.xlane.f32.xlu0 %v2404
        %v2444 = vpop.xlane.xlu0 %2443
        %2445 = vmax.xlane.f32.xlu0 %v2406
        %v2446 = vpop.xlane.xlu0 %2445
        %2447 = vmax.xlane.f32.xlu0 %v2409
        %v2448 = vpop.xlane.xlu0 %2447
        %2449 = vmax.xlane.f32.xlu0 %v2411
        %v2450 = vpop.xlane.xlu0 %2449
        %2451 = vmax.xlane.f32.xlu0 %v2414
        %v2452 = vpop.xlane.xlu0 %2451
        %2453 = vmax.xlane.f32.xlu0 %v2416
        %v2454 = vpop.xlane.xlu0 %2453
        %2455 = vmax.xlane.f32.xlu0 %v2419
        %v2456 = vpop.xlane.xlu0 %2455
        %2457 = vmax.xlane.f32.xlu0 %v2421
        %v2458 = vpop.xlane.xlu0 %2457
        %2459 = vmax.xlane.f32.xlu0 %v2424
        %v2460 = vpop.xlane.xlu0 %2459
        %2461 = vmax.xlane.f32.xlu0 %v2426
        %v2462 = vpop.xlane.xlu0 %2461
        %2463 = vmax.xlane.f32.xlu0 %v2429
        %v2464 = vpop.xlane.xlu0 %2463
        %2465 = vmax.xlane.f32.xlu0 %v2431
        %v2466 = vpop.xlane.xlu0 %2465
        %2467 = vmax.xlane.f32.xlu0 %v2434
        %v2468 = vpop.xlane.xlu0 %2467
        %2469 = vmax.xlane.f32.xlu0 %v2436
        %v2470 = vpop.xlane.xlu0 %2469
        %2471 = vmax.xlane.f32.xlu0 %v2439
        %v2472 = vpop.xlane.xlu0 %2471
        %2473 = vmax.xlane.f32.xlu0 %v2441
        %v2474 = vpop.xlane.xlu0 %2473
        %v2475 = vsub.f32 %v2404, %v2444
        %v2476 = vsub.f32 %v2406, %v2446
        %v2477 = vsub.f32 %v2409, %v2448
        %v2478 = vsub.f32 %v2411, %v2450
        %v2479 = vsub.f32 %v2414, %v2452
        %v2480 = vsub.f32 %v2416, %v2454
        %v2481 = vsub.f32 %v2419, %v2456
        %v2482 = vsub.f32 %v2421, %v2458
        %v2483 = vsub.f32 %v2424, %v2460
        %v2484 = vsub.f32 %v2426, %v2462
        %v2485 = vsub.f32 %v2429, %v2464
        %v2486 = vsub.f32 %v2431, %v2466
        %v2487 = vsub.f32 %v2434, %v2468
        %v2488 = vsub.f32 %v2436, %v2470
        %v2489 = vsub.f32 %v2439, %v2472
        %v2490 = vsub.f32 %v2441, %v2474
        %v2491 = vmul.f32 %v2475, 1.442695
        %v2492 = vpow.pop %v2491
        %v2493 = vmul.f32 %v2476, 1.442695
        %v2494 = vpow.pop %v2493
        %v2495 = vmul.f32 %v2477, 1.442695
        %v2496 = vpow.pop %v2495
        %v2497 = vmul.f32 %v2478, 1.442695
        %v2498 = vpow.pop %v2497
        %v2499 = vmul.f32 %v2479, 1.442695
        %v2500 = vpow.pop %v2499
        %v2501 = vmul.f32 %v2480, 1.442695
        %v2502 = vpow.pop %v2501
        %v2503 = vmul.f32 %v2481, 1.442695
        %v2504 = vpow.pop %v2503
        %v2505 = vmul.f32 %v2482, 1.442695
        %v2506 = vpow.pop %v2505
        %v2507 = vmul.f32 %v2483, 1.442695
        %v2508 = vpow.pop %v2507
        %v2509 = vmul.f32 %v2484, 1.442695
        %v2510 = vpow.pop %v2509
        %v2511 = vmul.f32 %v2485, 1.442695
        %v2512 = vpow.pop %v2511
        %v2513 = vmul.f32 %v2486, 1.442695
        %v2514 = vpow.pop %v2513
        %v2515 = vmul.f32 %v2487, 1.442695
        %v2516 = vpow.pop %v2515
        %v2517 = vmul.f32 %v2488, 1.442695
        %v2518 = vpow.pop %v2517
        %v2519 = vmul.f32 %v2489, 1.442695
        %v2520 = vpow.pop %v2519
        %v2521 = vmul.f32 %v2490, 1.442695
        %v2522 = vpow.pop %v2521
        %2523 = vadd.xlane.f32.xlu0 %v2492
        %v2524 = vpop.xlane.xlu0 %2523
        %2525 = vadd.xlane.f32.xlu0 %v2494
        %v2526 = vpop.xlane.xlu0 %2525
        %2527 = vadd.xlane.f32.xlu0 %v2496
        %v2528 = vpop.xlane.xlu0 %2527
        %2529 = vadd.xlane.f32.xlu0 %v2498
        %v2530 = vpop.xlane.xlu0 %2529
        %2531 = vadd.xlane.f32.xlu0 %v2500
        %v2532 = vpop.xlane.xlu0 %2531
        %2533 = vadd.xlane.f32.xlu0 %v2502
        %v2534 = vpop.xlane.xlu0 %2533
        %2535 = vadd.xlane.f32.xlu0 %v2504
        %v2536 = vpop.xlane.xlu0 %2535
        %2537 = vadd.xlane.f32.xlu0 %v2506
        %v2538 = vpop.xlane.xlu0 %2537
        %2539 = vadd.xlane.f32.xlu0 %v2508
        %v2540 = vpop.xlane.xlu0 %2539
        %2541 = vadd.xlane.f32.xlu0 %v2510
        %v2542 = vpop.xlane.xlu0 %2541
        %2543 = vadd.xlane.f32.xlu0 %v2512
        %v2544 = vpop.xlane.xlu0 %2543
        %2545 = vadd.xlane.f32.xlu0 %v2514
        %v2546 = vpop.xlane.xlu0 %2545
        %2547 = vadd.xlane.f32.xlu0 %v2516
        %v2548 = vpop.xlane.xlu0 %2547
        %2549 = vadd.xlane.f32.xlu0 %v2518
        %v2550 = vpop.xlane.xlu0 %2549
        %2551 = vadd.xlane.f32.xlu0 %v2520
        %v2552 = vpop.xlane.xlu0 %2551
        %2553 = vadd.xlane.f32.xlu0 %v2522
        %v2554 = vpop.xlane.xlu0 %2553
        %v2555 = vrcp.pop %v2524
        %v2556 = vrcp.pop %v2526
        %v2557 = vrcp.pop %v2528
        %v2558 = vrcp.pop %v2530
        %v2559 = vrcp.pop %v2532
        %v2560 = vrcp.pop %v2534
        %v2561 = vrcp.pop %v2536
        %v2562 = vrcp.pop %v2538
        %v2563 = vrcp.pop %v2540
        %v2564 = vrcp.pop %v2542
        %v2565 = vrcp.pop %v2544
        %v2566 = vrcp.pop %v2546
        %v2567 = vrcp.pop %v2548
        %v2568 = vrcp.pop %v2550
        %v2569 = vrcp.pop %v2552
        %v2570 = vrcp.pop %v2554
        %v2571 = vmul.f32 %v2492, %v2555
        %v2572 = vmul.f32 %v2494, %v2556
        %v2573 = vmul.f32 %v2496, %v2557
        %v2574 = vmul.f32 %v2498, %v2558
        %v2575 = vmul.f32 %v2500, %v2559
        %v2576 = vmul.f32 %v2502, %v2560
        %v2577 = vmul.f32 %v2504, %v2561
        %v2578 = vmul.f32 %v2506, %v2562
        %v2579 = vmul.f32 %v2508, %v2563
        %v2580 = vmul.f32 %v2510, %v2564
        %v2581 = vmul.f32 %v2512, %v2565
        %v2582 = vmul.f32 %v2514, %v2566
        %v2583 = vmul.f32 %v2516, %v2567
        %v2584 = vmul.f32 %v2518, %v2568
        %v2585 = vmul.f32 %v2520, %v2569
        %v2586 = vmul.f32 %v2522, %v2570
        %v2587 = vpack.c.bf16 %v2572, %v2571
        %v2588 = vpack.c.bf16 %v2574, %v2573
        %v2589 = vpack.c.bf16 %v2576, %v2575
        %v2590 = vpack.c.bf16 %v2578, %v2577
        %v2591 = vpack.c.bf16 %v2580, %v2579
        %v2592 = vpack.c.bf16 %v2582, %v2581
        %v2593 = vpack.c.bf16 %v2584, %v2583
        %v2594 = vpack.c.bf16 %v2586, %v2585
        %2595 = vrot.lane.b32.xlu0 %v1701, 64
        %v2596 = vpop.permute.xlu0 %2595
        %2597 = vrot.lane.b32.xlu0 %v1702, 64
        %v2598 = vpop.permute.xlu0 %2597
        %2599 = vrot.lane.b32.xlu0 %v1703, 64
        %v2600 = vpop.permute.xlu0 %2599
        %2601 = vrot.lane.b32.xlu0 %v1704, 64
        %v2602 = vpop.permute.xlu0 %2601
        %2603 = vrot.lane.b32.xlu0 %v1705, 64
        %v2604 = vpop.permute.xlu0 %2603
        %2605 = vrot.lane.b32.xlu0 %v1706, 64
        %v2606 = vpop.permute.xlu0 %2605
        %2607 = vrot.lane.b32.xlu0 %v1707, 64
        %v2608 = vpop.permute.xlu0 %2607
        %2609 = vrot.lane.b32.xlu0 %v1708, 64
        %v2610 = vpop.permute.xlu0 %2609
        %2619 = vmatpush.bf16.msra.mxu0 %v2610
        %2620 = vmatpush.bf16.msra.mxu0 %v2608
        %2621 = vmatpush.bf16.msra.mxu0 %v2606
        %2622 = vmatpush.bf16.msra.mxu0 %v2604
        %2623 = vmatpush.bf16.msra.mxu0 %v2602
        %2624 = vmatpush.bf16.msra.mxu0 %v2600
        %2625 = vmatpush.bf16.msra.mxu0 %v2598
        %2626 = vmatpush.bf16.msra.mxu0 %v2596
        %2627 = vmatmul.bf16.gmra.mxu0 %v2587
        %v2628 = vpop.f32.mrf.mxu0
        %v2629 = vadd.f32 0.0, %v2628
        %v2630 = vpop.f32.mrf.mxu0
        %v2631 = vadd.f32 0.0, %v2630
        %2632 = vmatmul.bf16.gmra.mxu0 %v2588
        %v2633 = vpop.f32.mrf.mxu0
        %v2634 = vadd.f32 0.0, %v2633
        %v2635 = vpop.f32.mrf.mxu0
        %v2636 = vadd.f32 0.0, %v2635
        %2637 = vmatmul.bf16.gmra.mxu0 %v2589
        %v2638 = vpop.f32.mrf.mxu0
        %v2639 = vadd.f32 0.0, %v2638
        %v2640 = vpop.f32.mrf.mxu0
        %v2641 = vadd.f32 0.0, %v2640
        %2642 = vmatmul.bf16.gmra.mxu0 %v2590
        %v2643 = vpop.f32.mrf.mxu0
        %v2644 = vadd.f32 0.0, %v2643
        %v2645 = vpop.f32.mrf.mxu0
        %v2646 = vadd.f32 0.0, %v2645
        %2647 = vmatmul.bf16.gmra.mxu0 %v2591
        %v2648 = vpop.f32.mrf.mxu0
        %v2649 = vadd.f32 0.0, %v2648
        %v2650 = vpop.f32.mrf.mxu0
        %v2651 = vadd.f32 0.0, %v2650
        %2652 = vmatmul.bf16.gmra.mxu0 %v2592
        %v2653 = vpop.f32.mrf.mxu0
        %v2654 = vadd.f32 0.0, %v2653
        %v2655 = vpop.f32.mrf.mxu0
        %v2656 = vadd.f32 0.0, %v2655
        %2657 = vmatmul.bf16.gmra.mxu0 %v2593
        %v2658 = vpop.f32.mrf.mxu0
        %v2659 = vadd.f32 0.0, %v2658
        %v2660 = vpop.f32.mrf.mxu0
        %v2661 = vadd.f32 0.0, %v2660
        %2662 = vmatmul.bf16.gmra.mxu0 %v2594
        %v2663 = vpop.f32.mrf.mxu0
        %v2664 = vadd.f32 0.0, %v2663
        %v2665 = vpop.f32.mrf.mxu0
        %v2666 = vadd.f32 0.0, %v2665
        %2667 = vdwg.mxu0
        %v2668 = vpack.c.bf16 %v2631, %v2629
        %v2669 = vpack.c.bf16 %v2636, %v2634
        %v2670 = vpack.c.bf16 %v2641, %v2639
        %v2671 = vpack.c.bf16 %v2646, %v2644
        %v2672 = vpack.c.bf16 %v2651, %v2649
        %v2673 = vpack.c.bf16 %v2656, %v2654
        %v2674 = vpack.c.bf16 %v2661, %v2659
        %v2675 = vpack.c.bf16 %v2666, %v2664
        %v2676 = vld [vmem:[#allocation8 + $0x20] sm:$0xf]
        %v2677 = vld [vmem:[#allocation8 + $0x24] sm:$0xf]
        %v2678 = vld [vmem:[#allocation8 + $0x28] sm:$0xf]
        %v2679 = vld [vmem:[#allocation8 + $0x2c] sm:$0xf]
        %v2684 = vunpack.c.l.b16 %v2676
        %v2685 = vunpack.c.l.b16 %v2677
        %v2686 = vunpack.c.l.b16 %v2678
        %v2687 = vunpack.c.l.b16 %v2679
        %v2688 = vpack.c.b16 %v2685, %v2684
        %v2689 = vpack.c.b16 %v2687, %v2686
        %v2693 = vsel %vm1419, %v2668, 0
        %v2696 = vsel %vm1419, %v2669, 0
        %v2699 = vsel %vm1419, %v2670, 0
        %v2702 = vsel %vm1419, %v2671, 0
        %v2705 = vsel %vm1419, %v2672, 0
        %v2708 = vsel %vm1419, %v2673, 0
        %v2711 = vsel %vm1419, %v2674, 0
        %v2714 = vsel %vm1419, %v2675, 0
        %2716 = vmatpush.bf16.msra.mxu0 0
        %2717 = vmatpush.bf16.msra.mxu0 0
        %2718 = vmatpush.bf16.msra.mxu0 0
        %2719 = vmatpush.bf16.msra.mxu0 0
        %2720 = vmatpush.bf16.msra.mxu0 0
        %2721 = vmatpush.bf16.msra.mxu0 0
        %2722 = vmatpush.bf16.msra.mxu0 %v2689
        %2723 = vmatpush.bf16.msra.mxu0 %v2688
        %2724 = vmatmul.bf16.gmra.mxu0 %v2693
        %v2725 = vpop.f32.mrf.mxu0
        %v2726 = vadd.f32 0.0, %v2725
        %v2727 = vpop.f32.mrf.mxu0
        %v2728 = vadd.f32 0.0, %v2727
        %2729 = vmatmul.bf16.gmra.mxu0 %v2696
        %v2730 = vpop.f32.mrf.mxu0
        %v2731 = vadd.f32 0.0, %v2730
        %v2732 = vpop.f32.mrf.mxu0
        %v2733 = vadd.f32 0.0, %v2732
        %2734 = vmatmul.bf16.gmra.mxu0 %v2699
        %v2735 = vpop.f32.mrf.mxu0
        %v2736 = vadd.f32 0.0, %v2735
        %v2737 = vpop.f32.mrf.mxu0
        %v2738 = vadd.f32 0.0, %v2737
        %2739 = vmatmul.bf16.gmra.mxu0 %v2702
        %v2740 = vpop.f32.mrf.mxu0
        %v2741 = vadd.f32 0.0, %v2740
        %v2742 = vpop.f32.mrf.mxu0
        %v2743 = vadd.f32 0.0, %v2742
        %2744 = vmatmul.bf16.gmra.mxu0 %v2705
        %v2745 = vpop.f32.mrf.mxu0
        %v2746 = vadd.f32 0.0, %v2745
        %v2747 = vpop.f32.mrf.mxu0
        %v2748 = vadd.f32 0.0, %v2747
        %2749 = vmatmul.bf16.gmra.mxu0 %v2708
        %v2750 = vpop.f32.mrf.mxu0
        %v2751 = vadd.f32 0.0, %v2750
        %v2752 = vpop.f32.mrf.mxu0
        %v2753 = vadd.f32 0.0, %v2752
        %2754 = vmatmul.bf16.gmra.mxu0 %v2711
        %v2755 = vpop.f32.mrf.mxu0
        %v2756 = vadd.f32 0.0, %v2755
        %v2757 = vpop.f32.mrf.mxu0
        %v2758 = vadd.f32 0.0, %v2757
        %2759 = vmatmul.bf16.gmra.mxu0 %v2714
        %v2760 = vpop.f32.mrf.mxu0
        %v2761 = vadd.f32 0.0, %v2760
        %v2762 = vpop.f32.mrf.mxu0
        %v2763 = vadd.f32 0.0, %v2762
        %2764 = vdwg.mxu0
        %v2765 = vadd.f32 %v2275, %v2726
        %v2766 = vadd.f32 %v2277, %v2728
        %v2767 = vadd.f32 %v2280, %v2731
        %v2768 = vadd.f32 %v2282, %v2733
        %v2769 = vadd.f32 %v2285, %v2736
        %v2770 = vadd.f32 %v2287, %v2738
        %v2771 = vadd.f32 %v2290, %v2741
        %v2772 = vadd.f32 %v2292, %v2743
        %v2773 = vadd.f32 %v2295, %v2746
        %v2774 = vadd.f32 %v2297, %v2748
        %v2775 = vadd.f32 %v2300, %v2751
        %v2776 = vadd.f32 %v2302, %v2753
        %v2777 = vadd.f32 %v2305, %v2756
        %v2778 = vadd.f32 %v2307, %v2758
        %v2779 = vadd.f32 %v2310, %v2761
        %v2780 = vadd.f32 %v2312, %v2763
        %2781 = vrot.lane.b32.xlu0 %v1371, 32
        %v2782 = vpop.permute.xlu0 %2781
        %2783 = vrot.lane.b32.xlu0 %v1372, 32
        %v2784 = vpop.permute.xlu0 %2783
        %2785 = vrot.lane.b32.xlu0 %v1373, 32
        %v2786 = vpop.permute.xlu0 %2785
        %2787 = vrot.lane.b32.xlu0 %v1374, 32
        %v2788 = vpop.permute.xlu0 %2787
        %2789 = vrot.lane.b32.xlu0 %v1375, 32
        %v2790 = vpop.permute.xlu0 %2789
        %2791 = vrot.lane.b32.xlu0 %v1376, 32
        %v2792 = vpop.permute.xlu0 %2791
        %2793 = vrot.lane.b32.xlu0 %v1377, 32
        %v2794 = vpop.permute.xlu0 %2793
        %2795 = vrot.lane.b32.xlu0 %v1378, 32
        %v2796 = vpop.permute.xlu0 %2795
        %2797 = vrot.lane.b32.xlu0 %v1411, 32
        %v2798 = vpop.permute.xlu0 %2797
        %2799 = vrot.lane.b32.xlu0 %v1412, 32
        %v2800 = vpop.permute.xlu0 %2799
        %2801 = vrot.lane.b32.xlu0 %v1413, 32
        %v2802 = vpop.permute.xlu0 %2801
        %2803 = vrot.lane.b32.xlu0 %v1414, 32
        %v2804 = vpop.permute.xlu0 %2803
        %2805 = vrot.lane.b32.xlu0 %v1415, 32
        %v2806 = vpop.permute.xlu0 %2805
        %2807 = vrot.lane.b32.xlu0 %v1416, 32
        %v2808 = vpop.permute.xlu0 %2807
        %2809 = vrot.lane.b32.xlu0 %v1417, 32
        %v2810 = vpop.permute.xlu0 %2809
        %2811 = vrot.lane.b32.xlu0 %v1418, 32
        %v2812 = vpop.permute.xlu0 %2811
        %v2814 = vsel %vm1419, %v2782, 0
        %v2817 = vsel %vm1419, %v2784, 0
        %v2820 = vsel %vm1419, %v2786, 0
        %v2823 = vsel %vm1419, %v2788, 0
        %v2826 = vsel %vm1419, %v2790, 0
        %v2829 = vsel %vm1419, %v2792, 0
        %v2832 = vsel %vm1419, %v2794, 0
        %v2835 = vsel %vm1419, %v2796, 0
        %v2838 = vsel %vm1419, %v2798, 0
        %v2841 = vsel %vm1419, %v2800, 0
        %v2844 = vsel %vm1419, %v2802, 0
        %v2847 = vsel %vm1419, %v2804, 0
        %v2850 = vsel %vm1419, %v2806, 0
        %v2853 = vsel %vm1419, %v2808, 0
        %v2856 = vsel %vm1419, %v2810, 0
        %v2859 = vsel %vm1419, %v2812, 0
        %2861 = vmatpush.bf16.xpose.msra.mxu0 %v2859
        %2862 = vmatpush.bf16.xpose.msra.mxu0 %v2856
        %2863 = vmatpush.bf16.xpose.msra.mxu0 %v2853
        %2864 = vmatpush.bf16.xpose.msra.mxu0 %v2850
        %2865 = vmatpush.bf16.xpose.msra.mxu0 %v2847
        %2866 = vmatpush.bf16.xpose.msra.mxu0 %v2844
        %2867 = vmatpush.bf16.xpose.msra.mxu0 %v2841
        %2868 = vmatpush.bf16.xpose.msra.mxu0 %v2838
        %2869 = vmatmul.bf16.gmra.mxu0 %v2814
        %v2870 = vpop.f32.mrf.mxu0
        %v2871 = vadd.f32 %v593, %v2870
        %v2872 = vpop.f32.mrf.mxu0
        %v2873 = vadd.f32 %v594, %v2872
        %2874 = vmatmul.bf16.gmra.mxu0 %v2817
        %v2875 = vpop.f32.mrf.mxu0
        %v2876 = vadd.f32 %v595, %v2875
        %v2877 = vpop.f32.mrf.mxu0
        %v2878 = vadd.f32 %v596, %v2877
        %2879 = vmatmul.bf16.gmra.mxu0 %v2820
        %v2880 = vpop.f32.mrf.mxu0
        %v2881 = vadd.f32 %v597, %v2880
        %v2882 = vpop.f32.mrf.mxu0
        %v2883 = vadd.f32 %v598, %v2882
        %2884 = vmatmul.bf16.gmra.mxu0 %v2823
        %v2885 = vpop.f32.mrf.mxu0
        %v2886 = vadd.f32 %v599, %v2885
        %v2887 = vpop.f32.mrf.mxu0
        %v2888 = vadd.f32 %v600, %v2887
        %2889 = vmatmul.bf16.gmra.mxu0 %v2826
        %v2890 = vpop.f32.mrf.mxu0
        %v2891 = vadd.f32 %v601, %v2890
        %v2892 = vpop.f32.mrf.mxu0
        %v2893 = vadd.f32 %v602, %v2892
        %2894 = vmatmul.bf16.gmra.mxu0 %v2829
        %v2895 = vpop.f32.mrf.mxu0
        %v2896 = vadd.f32 %v603, %v2895
        %v2897 = vpop.f32.mrf.mxu0
        %v2898 = vadd.f32 %v604, %v2897
        %2899 = vmatmul.bf16.gmra.mxu0 %v2832
        %v2900 = vpop.f32.mrf.mxu0
        %v2901 = vadd.f32 %v605, %v2900
        %v2902 = vpop.f32.mrf.mxu0
        %v2903 = vadd.f32 %v606, %v2902
        %2904 = vmatmul.bf16.gmra.mxu0 %v2835
        %v2905 = vpop.f32.mrf.mxu0
        %v2906 = vadd.f32 %v607, %v2905
        %v2907 = vpop.f32.mrf.mxu0
        %v2908 = vadd.f32 %v608, %v2907
        %2909 = vdwg.mxu0
        %2910 = vmax.xlane.f32.xlu0 %v2871
        %v2911 = vpop.xlane.xlu0 %2910
        %2912 = vmax.xlane.f32.xlu0 %v2873
        %v2913 = vpop.xlane.xlu0 %2912
        %2914 = vmax.xlane.f32.xlu0 %v2876
        %v2915 = vpop.xlane.xlu0 %2914
        %2916 = vmax.xlane.f32.xlu0 %v2878
        %v2917 = vpop.xlane.xlu0 %2916
        %2918 = vmax.xlane.f32.xlu0 %v2881
        %v2919 = vpop.xlane.xlu0 %2918
        %2920 = vmax.xlane.f32.xlu0 %v2883
        %v2921 = vpop.xlane.xlu0 %2920
        %2922 = vmax.xlane.f32.xlu0 %v2886
        %v2923 = vpop.xlane.xlu0 %2922
        %2924 = vmax.xlane.f32.xlu0 %v2888
        %v2925 = vpop.xlane.xlu0 %2924
        %2926 = vmax.xlane.f32.xlu0 %v2891
        %v2927 = vpop.xlane.xlu0 %2926
        %2928 = vmax.xlane.f32.xlu0 %v2893
        %v2929 = vpop.xlane.xlu0 %2928
        %2930 = vmax.xlane.f32.xlu0 %v2896
        %v2931 = vpop.xlane.xlu0 %2930
        %2932 = vmax.xlane.f32.xlu0 %v2898
        %v2933 = vpop.xlane.xlu0 %2932
        %2934 = vmax.xlane.f32.xlu0 %v2901
        %v2935 = vpop.xlane.xlu0 %2934
        %2936 = vmax.xlane.f32.xlu0 %v2903
        %v2937 = vpop.xlane.xlu0 %2936
        %2938 = vmax.xlane.f32.xlu0 %v2906
        %v2939 = vpop.xlane.xlu0 %2938
        %2940 = vmax.xlane.f32.xlu0 %v2908
        %v2941 = vpop.xlane.xlu0 %2940
        %v2942 = vsub.f32 %v2871, %v2911
        %v2943 = vsub.f32 %v2873, %v2913
        %v2944 = vsub.f32 %v2876, %v2915
        %v2945 = vsub.f32 %v2878, %v2917
        %v2946 = vsub.f32 %v2881, %v2919
        %v2947 = vsub.f32 %v2883, %v2921
        %v2948 = vsub.f32 %v2886, %v2923
        %v2949 = vsub.f32 %v2888, %v2925
        %v2950 = vsub.f32 %v2891, %v2927
        %v2951 = vsub.f32 %v2893, %v2929
        %v2952 = vsub.f32 %v2896, %v2931
        %v2953 = vsub.f32 %v2898, %v2933
        %v2954 = vsub.f32 %v2901, %v2935
        %v2955 = vsub.f32 %v2903, %v2937
        %v2956 = vsub.f32 %v2906, %v2939
        %v2957 = vsub.f32 %v2908, %v2941
        %v2958 = vmul.f32 %v2942, 1.442695
        %v2959 = vpow.pop %v2958
        %v2960 = vmul.f32 %v2943, 1.442695
        %v2961 = vpow.pop %v2960
        %v2962 = vmul.f32 %v2944, 1.442695
        %v2963 = vpow.pop %v2962
        %v2964 = vmul.f32 %v2945, 1.442695
        %v2965 = vpow.pop %v2964
        %v2966 = vmul.f32 %v2946, 1.442695
        %v2967 = vpow.pop %v2966
        %v2968 = vmul.f32 %v2947, 1.442695
        %v2969 = vpow.pop %v2968
        %v2970 = vmul.f32 %v2948, 1.442695
        %v2971 = vpow.pop %v2970
        %v2972 = vmul.f32 %v2949, 1.442695
        %v2973 = vpow.pop %v2972
        %v2974 = vmul.f32 %v2950, 1.442695
        %v2975 = vpow.pop %v2974
        %v2976 = vmul.f32 %v2951, 1.442695
        %v2977 = vpow.pop %v2976
        %v2978 = vmul.f32 %v2952, 1.442695
        %v2979 = vpow.pop %v2978
        %v2980 = vmul.f32 %v2953, 1.442695
        %v2981 = vpow.pop %v2980
        %v2982 = vmul.f32 %v2954, 1.442695
        %v2983 = vpow.pop %v2982
        %v2984 = vmul.f32 %v2955, 1.442695
        %v2985 = vpow.pop %v2984
        %v2986 = vmul.f32 %v2956, 1.442695
        %v2987 = vpow.pop %v2986
        %v2988 = vmul.f32 %v2957, 1.442695
        %v2989 = vpow.pop %v2988
        %2990 = vadd.xlane.f32.xlu0 %v2959
        %v2991 = vpop.xlane.xlu0 %2990
        %2992 = vadd.xlane.f32.xlu0 %v2961
        %v2993 = vpop.xlane.xlu0 %2992
        %2994 = vadd.xlane.f32.xlu0 %v2963
        %v2995 = vpop.xlane.xlu0 %2994
        %2996 = vadd.xlane.f32.xlu0 %v2965
        %v2997 = vpop.xlane.xlu0 %2996
        %2998 = vadd.xlane.f32.xlu0 %v2967
        %v2999 = vpop.xlane.xlu0 %2998
        %3000 = vadd.xlane.f32.xlu0 %v2969
        %v3001 = vpop.xlane.xlu0 %3000
        %3002 = vadd.xlane.f32.xlu0 %v2971
        %v3003 = vpop.xlane.xlu0 %3002
        %3004 = vadd.xlane.f32.xlu0 %v2973
        %v3005 = vpop.xlane.xlu0 %3004
        %3006 = vadd.xlane.f32.xlu0 %v2975
        %v3007 = vpop.xlane.xlu0 %3006
        %3008 = vadd.xlane.f32.xlu0 %v2977
        %v3009 = vpop.xlane.xlu0 %3008
        %3010 = vadd.xlane.f32.xlu0 %v2979
        %v3011 = vpop.xlane.xlu0 %3010
        %3012 = vadd.xlane.f32.xlu0 %v2981
        %v3013 = vpop.xlane.xlu0 %3012
        %3014 = vadd.xlane.f32.xlu0 %v2983
        %v3015 = vpop.xlane.xlu0 %3014
        %3016 = vadd.xlane.f32.xlu0 %v2985
        %v3017 = vpop.xlane.xlu0 %3016
        %3018 = vadd.xlane.f32.xlu0 %v2987
        %v3019 = vpop.xlane.xlu0 %3018
        %3020 = vadd.xlane.f32.xlu0 %v2989
        %v3021 = vpop.xlane.xlu0 %3020
        %v3022 = vrcp.pop %v2991
        %v3023 = vrcp.pop %v2993
        %v3024 = vrcp.pop %v2995
        %v3025 = vrcp.pop %v2997
        %v3026 = vrcp.pop %v2999
        %v3027 = vrcp.pop %v3001
        %v3028 = vrcp.pop %v3003
        %v3029 = vrcp.pop %v3005
        %v3030 = vrcp.pop %v3007
        %v3031 = vrcp.pop %v3009
        %v3032 = vrcp.pop %v3011
        %v3033 = vrcp.pop %v3013
        %v3034 = vrcp.pop %v3015
        %v3035 = vrcp.pop %v3017
        %v3036 = vrcp.pop %v3019
        %v3037 = vrcp.pop %v3021
        %v3038 = vmul.f32 %v2959, %v3022
        %v3039 = vmul.f32 %v2961, %v3023
        %v3040 = vmul.f32 %v2963, %v3024
        %v3041 = vmul.f32 %v2965, %v3025
        %v3042 = vmul.f32 %v2967, %v3026
        %v3043 = vmul.f32 %v2969, %v3027
        %v3044 = vmul.f32 %v2971, %v3028
        %v3045 = vmul.f32 %v2973, %v3029
        %v3046 = vmul.f32 %v2975, %v3030
        %v3047 = vmul.f32 %v2977, %v3031
        %v3048 = vmul.f32 %v2979, %v3032
        %v3049 = vmul.f32 %v2981, %v3033
        %v3050 = vmul.f32 %v2983, %v3034
        %v3051 = vmul.f32 %v2985, %v3035
        %v3052 = vmul.f32 %v2987, %v3036
        %v3053 = vmul.f32 %v2989, %v3037
        %v3054 = vpack.c.bf16 %v3039, %v3038
        %v3055 = vpack.c.bf16 %v3041, %v3040
        %v3056 = vpack.c.bf16 %v3043, %v3042
        %v3057 = vpack.c.bf16 %v3045, %v3044
        %v3058 = vpack.c.bf16 %v3047, %v3046
        %v3059 = vpack.c.bf16 %v3049, %v3048
        %v3060 = vpack.c.bf16 %v3051, %v3050
        %v3061 = vpack.c.bf16 %v3053, %v3052
        %3062 = vrot.lane.b32.xlu0 %v1701, 32
        %v3063 = vpop.permute.xlu0 %3062
        %3064 = vrot.lane.b32.xlu0 %v1702, 32
        %v3065 = vpop.permute.xlu0 %3064
        %3066 = vrot.lane.b32.xlu0 %v1703, 32
        %v3067 = vpop.permute.xlu0 %3066
        %3068 = vrot.lane.b32.xlu0 %v1704, 32
        %v3069 = vpop.permute.xlu0 %3068
        %3070 = vrot.lane.b32.xlu0 %v1705, 32
        %v3071 = vpop.permute.xlu0 %3070
        %3072 = vrot.lane.b32.xlu0 %v1706, 32
        %v3073 = vpop.permute.xlu0 %3072
        %3074 = vrot.lane.b32.xlu0 %v1707, 32
        %v3075 = vpop.permute.xlu0 %3074
        %3076 = vrot.lane.b32.xlu0 %v1708, 32
        %v3077 = vpop.permute.xlu0 %3076
        %3086 = vmatpush.bf16.msra.mxu0 %v3077
        %3087 = vmatpush.bf16.msra.mxu0 %v3075
        %3088 = vmatpush.bf16.msra.mxu0 %v3073
        %3089 = vmatpush.bf16.msra.mxu0 %v3071
        %3090 = vmatpush.bf16.msra.mxu0 %v3069
        %3091 = vmatpush.bf16.msra.mxu0 %v3067
        %3092 = vmatpush.bf16.msra.mxu0 %v3065
        %3093 = vmatpush.bf16.msra.mxu0 %v3063
        %3094 = vmatmul.bf16.gmra.mxu0 %v3054
        %v3095 = vpop.f32.mrf.mxu0
        %v3096 = vadd.f32 0.0, %v3095
        %v3097 = vpop.f32.mrf.mxu0
        %v3098 = vadd.f32 0.0, %v3097
        %3099 = vmatmul.bf16.gmra.mxu0 %v3055
        %v3100 = vpop.f32.mrf.mxu0
        %v3101 = vadd.f32 0.0, %v3100
        %v3102 = vpop.f32.mrf.mxu0
        %v3103 = vadd.f32 0.0, %v3102
        %3104 = vmatmul.bf16.gmra.mxu0 %v3056
        %v3105 = vpop.f32.mrf.mxu0
        %v3106 = vadd.f32 0.0, %v3105
        %v3107 = vpop.f32.mrf.mxu0
        %v3108 = vadd.f32 0.0, %v3107
        %3109 = vmatmul.bf16.gmra.mxu0 %v3057
        %v3110 = vpop.f32.mrf.mxu0
        %v3111 = vadd.f32 0.0, %v3110
        %v3112 = vpop.f32.mrf.mxu0
        %v3113 = vadd.f32 0.0, %v3112
        %3114 = vmatmul.bf16.gmra.mxu0 %v3058
        %v3115 = vpop.f32.mrf.mxu0
        %v3116 = vadd.f32 0.0, %v3115
        %v3117 = vpop.f32.mrf.mxu0
        %v3118 = vadd.f32 0.0, %v3117
        %3119 = vmatmul.bf16.gmra.mxu0 %v3059
        %v3120 = vpop.f32.mrf.mxu0
        %v3121 = vadd.f32 0.0, %v3120
        %v3122 = vpop.f32.mrf.mxu0
        %v3123 = vadd.f32 0.0, %v3122
        %3124 = vmatmul.bf16.gmra.mxu0 %v3060
        %v3125 = vpop.f32.mrf.mxu0
        %v3126 = vadd.f32 0.0, %v3125
        %v3127 = vpop.f32.mrf.mxu0
        %v3128 = vadd.f32 0.0, %v3127
        %3129 = vmatmul.bf16.gmra.mxu0 %v3061
        %v3130 = vpop.f32.mrf.mxu0
        %v3131 = vadd.f32 0.0, %v3130
        %v3132 = vpop.f32.mrf.mxu0
        %v3133 = vadd.f32 0.0, %v3132
        %3134 = vdwg.mxu0
        %v3135 = vpack.c.bf16 %v3098, %v3096
        %v3136 = vpack.c.bf16 %v3103, %v3101
        %v3137 = vpack.c.bf16 %v3108, %v3106
        %v3138 = vpack.c.bf16 %v3113, %v3111
        %v3139 = vpack.c.bf16 %v3118, %v3116
        %v3140 = vpack.c.bf16 %v3123, %v3121
        %v3141 = vpack.c.bf16 %v3128, %v3126
        %v3142 = vpack.c.bf16 %v3133, %v3131
        %v3143 = vld [vmem:[#allocation8 + $0x30] sm:$0xf]
        %v3144 = vld [vmem:[#allocation8 + $0x34] sm:$0xf]
        %v3145 = vld [vmem:[#allocation8 + $0x38] sm:$0xf]
        %v3146 = vld [vmem:[#allocation8 + $0x3c] sm:$0xf]
        %v3151 = vunpack.c.l.b16 %v3143
        %v3152 = vunpack.c.l.b16 %v3144
        %v3153 = vunpack.c.l.b16 %v3145
        %v3154 = vunpack.c.l.b16 %v3146
        %v3155 = vpack.c.b16 %v3152, %v3151
        %v3156 = vpack.c.b16 %v3154, %v3153
        %v3160 = vsel %vm1419, %v3135, 0
        %v3163 = vsel %vm1419, %v3136, 0
        %v3166 = vsel %vm1419, %v3137, 0
        %v3169 = vsel %vm1419, %v3138, 0
        %v3172 = vsel %vm1419, %v3139, 0
        %v3175 = vsel %vm1419, %v3140, 0
        %v3178 = vsel %vm1419, %v3141, 0
        %v3181 = vsel %vm1419, %v3142, 0
        %3183 = vmatpush.bf16.msra.mxu0 0
        %3184 = vmatpush.bf16.msra.mxu0 0
        %3185 = vmatpush.bf16.msra.mxu0 0
        %3186 = vmatpush.bf16.msra.mxu0 0
        %3187 = vmatpush.bf16.msra.mxu0 0
        %3188 = vmatpush.bf16.msra.mxu0 0
        %3189 = vmatpush.bf16.msra.mxu0 %v3156
        %3190 = vmatpush.bf16.msra.mxu0 %v3155
        %3191 = vmatmul.bf16.gmra.mxu0 %v3160
        %v3192 = vpop.f32.mrf.mxu0
        %v3193 = vadd.f32 0.0, %v3192
        %v3194 = vpop.f32.mrf.mxu0
        %v3195 = vadd.f32 0.0, %v3194
        %3196 = vmatmul.bf16.gmra.mxu0 %v3163
        %v3197 = vpop.f32.mrf.mxu0
        %v3198 = vadd.f32 0.0, %v3197
        %v3199 = vpop.f32.mrf.mxu0
        %v3200 = vadd.f32 0.0, %v3199
        %3201 = vmatmul.bf16.gmra.mxu0 %v3166
        %v3202 = vpop.f32.mrf.mxu0
        %v3203 = vadd.f32 0.0, %v3202
        %v3204 = vpop.f32.mrf.mxu0
        %v3205 = vadd.f32 0.0, %v3204
        %3206 = vmatmul.bf16.gmra.mxu0 %v3169
        %v3207 = vpop.f32.mrf.mxu0
        %v3208 = vadd.f32 0.0, %v3207
        %v3209 = vpop.f32.mrf.mxu0
        %v3210 = vadd.f32 0.0, %v3209
        %3211 = vmatmul.bf16.gmra.mxu0 %v3172
        %v3212 = vpop.f32.mrf.mxu0
        %v3213 = vadd.f32 0.0, %v3212
        %v3214 = vpop.f32.mrf.mxu0
        %v3215 = vadd.f32 0.0, %v3214
        %3216 = vmatmul.bf16.gmra.mxu0 %v3175
        %v3217 = vpop.f32.mrf.mxu0
        %v3218 = vadd.f32 0.0, %v3217
        %v3219 = vpop.f32.mrf.mxu0
        %v3220 = vadd.f32 0.0, %v3219
        %3221 = vmatmul.bf16.gmra.mxu0 %v3178
        %v3222 = vpop.f32.mrf.mxu0
        %v3223 = vadd.f32 0.0, %v3222
        %v3224 = vpop.f32.mrf.mxu0
        %v3225 = vadd.f32 0.0, %v3224
        %3226 = vmatmul.bf16.gmra.mxu0 %v3181
        %v3227 = vpop.f32.mrf.mxu0
        %v3228 = vadd.f32 0.0, %v3227
        %v3229 = vpop.f32.mrf.mxu0
        %v3230 = vadd.f32 0.0, %v3229
        %3231 = vdwg.mxu0
        %v3232 = vadd.f32 %v2765, %v3193
        %v3233 = vadd.f32 %v2766, %v3195
        %v3234 = vadd.f32 %v2767, %v3198
        %v3235 = vadd.f32 %v2768, %v3200
        %v3236 = vadd.f32 %v2769, %v3203
        %v3237 = vadd.f32 %v2770, %v3205
        %v3238 = vadd.f32 %v2771, %v3208
        %v3239 = vadd.f32 %v2772, %v3210
        %v3240 = vadd.f32 %v2773, %v3213
        %v3241 = vadd.f32 %v2774, %v3215
        %v3242 = vadd.f32 %v2775, %v3218
        %v3243 = vadd.f32 %v2776, %v3220
        %v3244 = vadd.f32 %v2777, %v3223
        %v3245 = vadd.f32 %v2778, %v3225
        %v3246 = vadd.f32 %v2779, %v3228
        %v3247 = vadd.f32 %v2780, %v3230
        %v3248 = vld [vmem:[%s6] sm:$0x1]
        %v3250 = vperm.slane %v3248, 0
        %v3252 = vadd.f32 %v3232, %v3250
        %v3253 = vadd.f32 %v3233, %v3250
        %v3254 = vadd.f32 %v3234, %v3250
        %v3255 = vadd.f32 %v3235, %v3250
        %v3256 = vadd.f32 %v3236, %v3250
        %v3257 = vadd.f32 %v3237, %v3250
        %v3258 = vadd.f32 %v3238, %v3250
        %v3259 = vadd.f32 %v3239, %v3250
        %v3260 = vadd.f32 %v3240, %v3250
        %v3261 = vadd.f32 %v3241, %v3250
        %v3262 = vadd.f32 %v3242, %v3250
        %v3263 = vadd.f32 %v3243, %v3250
        %v3264 = vadd.f32 %v3244, %v3250
        %v3265 = vadd.f32 %v3245, %v3250
        %v3266 = vadd.f32 %v3246, %v3250
        %v3267 = vadd.f32 %v3247, %v3250
        %v3268 = vadd.f32 %v3252, %v960
        %v3269 = vadd.f32 %v3253, %v961
        %v3270 = vadd.f32 %v3254, %v962
        %v3271 = vadd.f32 %v3255, %v963
        %v3272 = vadd.f32 %v3256, %v964
        %v3273 = vadd.f32 %v3257, %v965
        %v3274 = vadd.f32 %v3258, %v966
        %v3275 = vadd.f32 %v3259, %v967
        %v3276 = vadd.f32 %v3260, %v968
        %v3277 = vadd.f32 %v3261, %v969
        %v3278 = vadd.f32 %v3262, %v970
        %v3279 = vadd.f32 %v3263, %v971
        %v3280 = vadd.f32 %v3264, %v972
        %v3281 = vadd.f32 %v3265, %v973
        %v3282 = vadd.f32 %v3266, %v974
        %v3283 = vadd.f32 %v3267, %v975
        %v3284 = vld [vmem:[#allocation10] sm:$0x1]
        %v3285 = vld [vmem:[#allocation11] sm:$0x1]
        %3286 = vadd.xlane.f32.xlu0 %v3268
        %v3287 = vpop.xlane.xlu0 %3286
        %3288 = vadd.xlane.f32.xlu0 %v3269
        %v3289 = vpop.xlane.xlu0 %3288
        %3290 = vadd.xlane.f32.xlu0 %v3270
        %v3291 = vpop.xlane.xlu0 %3290
        %3292 = vadd.xlane.f32.xlu0 %v3271
        %v3293 = vpop.xlane.xlu0 %3292
        %3294 = vadd.xlane.f32.xlu0 %v3272
        %v3295 = vpop.xlane.xlu0 %3294
        %3296 = vadd.xlane.f32.xlu0 %v3273
        %v3297 = vpop.xlane.xlu0 %3296
        %3298 = vadd.xlane.f32.xlu0 %v3274
        %v3299 = vpop.xlane.xlu0 %3298
        %3300 = vadd.xlane.f32.xlu0 %v3275
        %v3301 = vpop.xlane.xlu0 %3300
        %3302 = vadd.xlane.f32.xlu0 %v3276
        %v3303 = vpop.xlane.xlu0 %3302
        %3304 = vadd.xlane.f32.xlu0 %v3277
        %v3305 = vpop.xlane.xlu0 %3304
        %3306 = vadd.xlane.f32.xlu0 %v3278
        %v3307 = vpop.xlane.xlu0 %3306
        %3308 = vadd.xlane.f32.xlu0 %v3279
        %v3309 = vpop.xlane.xlu0 %3308
        %3310 = vadd.xlane.f32.xlu0 %v3280
        %v3311 = vpop.xlane.xlu0 %3310
        %3312 = vadd.xlane.f32.xlu0 %v3281
        %v3313 = vpop.xlane.xlu0 %3312
        %3314 = vadd.xlane.f32.xlu0 %v3282
        %v3315 = vpop.xlane.xlu0 %3314
        %3316 = vadd.xlane.f32.xlu0 %v3283
        %v3317 = vpop.xlane.xlu0 %3316
        %v3318 = vmul.f32 %v3287, %v649
        %v3319 = vmul.f32 %v3289, %v649
        %v3320 = vmul.f32 %v3291, %v649
        %v3321 = vmul.f32 %v3293, %v649
        %v3322 = vmul.f32 %v3295, %v649
        %v3323 = vmul.f32 %v3297, %v649
        %v3324 = vmul.f32 %v3299, %v649
        %v3325 = vmul.f32 %v3301, %v649
        %v3326 = vmul.f32 %v3303, %v649
        %v3327 = vmul.f32 %v3305, %v649
        %v3328 = vmul.f32 %v3307, %v649
        %v3329 = vmul.f32 %v3309, %v649
        %v3330 = vmul.f32 %v3311, %v649
        %v3331 = vmul.f32 %v3313, %v649
        %v3332 = vmul.f32 %v3315, %v649
        %v3333 = vmul.f32 %v3317, %v649
        %v3334 = vsub.f32 %v3268, %v3318
        %v3335 = vsub.f32 %v3269, %v3319
        %v3336 = vsub.f32 %v3270, %v3320
        %v3337 = vsub.f32 %v3271, %v3321
        %v3338 = vsub.f32 %v3272, %v3322
        %v3339 = vsub.f32 %v3273, %v3323
        %v3340 = vsub.f32 %v3274, %v3324
        %v3341 = vsub.f32 %v3275, %v3325
        %v3342 = vsub.f32 %v3276, %v3326
        %v3343 = vsub.f32 %v3277, %v3327
        %v3344 = vsub.f32 %v3278, %v3328
        %v3345 = vsub.f32 %v3279, %v3329
        %v3346 = vsub.f32 %v3280, %v3330
        %v3347 = vsub.f32 %v3281, %v3331
        %v3348 = vsub.f32 %v3282, %v3332
        %v3349 = vsub.f32 %v3283, %v3333
        %v3350 = vmul.f32 %v3334, %v3334
        %v3351 = vmul.f32 %v3335, %v3335
        %v3352 = vmul.f32 %v3336, %v3336
        %v3353 = vmul.f32 %v3337, %v3337
        %v3354 = vmul.f32 %v3338, %v3338
        %v3355 = vmul.f32 %v3339, %v3339
        %v3356 = vmul.f32 %v3340, %v3340
        %v3357 = vmul.f32 %v3341, %v3341
        %v3358 = vmul.f32 %v3342, %v3342
        %v3359 = vmul.f32 %v3343, %v3343
        %v3360 = vmul.f32 %v3344, %v3344
        %v3361 = vmul.f32 %v3345, %v3345
        %v3362 = vmul.f32 %v3346, %v3346
        %v3363 = vmul.f32 %v3347, %v3347
        %v3364 = vmul.f32 %v3348, %v3348
        %v3365 = vmul.f32 %v3349, %v3349
        %3366 = vadd.xlane.f32.xlu0 %v3350
        %v3367 = vpop.xlane.xlu0 %3366
        %3368 = vadd.xlane.f32.xlu0 %v3351
        %v3369 = vpop.xlane.xlu0 %3368
        %3370 = vadd.xlane.f32.xlu0 %v3352
        %v3371 = vpop.xlane.xlu0 %3370
        %3372 = vadd.xlane.f32.xlu0 %v3353
        %v3373 = vpop.xlane.xlu0 %3372
        %3374 = vadd.xlane.f32.xlu0 %v3354
        %v3375 = vpop.xlane.xlu0 %3374
        %3376 = vadd.xlane.f32.xlu0 %v3355
        %v3377 = vpop.xlane.xlu0 %3376
        %3378 = vadd.xlane.f32.xlu0 %v3356
        %v3379 = vpop.xlane.xlu0 %3378
        %3380 = vadd.xlane.f32.xlu0 %v3357
        %v3381 = vpop.xlane.xlu0 %3380
        %3382 = vadd.xlane.f32.xlu0 %v3358
        %v3383 = vpop.xlane.xlu0 %3382
        %3384 = vadd.xlane.f32.xlu0 %v3359
        %v3385 = vpop.xlane.xlu0 %3384
        %3386 = vadd.xlane.f32.xlu0 %v3360
        %v3387 = vpop.xlane.xlu0 %3386
        %3388 = vadd.xlane.f32.xlu0 %v3361
        %v3389 = vpop.xlane.xlu0 %3388
        %3390 = vadd.xlane.f32.xlu0 %v3362
        %v3391 = vpop.xlane.xlu0 %3390
        %3392 = vadd.xlane.f32.xlu0 %v3363
        %v3393 = vpop.xlane.xlu0 %3392
        %3394 = vadd.xlane.f32.xlu0 %v3364
        %v3395 = vpop.xlane.xlu0 %3394
        %3396 = vadd.xlane.f32.xlu0 %v3365
        %v3397 = vpop.xlane.xlu0 %3396
        %v3398 = vmul.f32 %v3367, %v649
        %v3399 = vmul.f32 %v3369, %v649
        %v3400 = vmul.f32 %v3371, %v649
        %v3401 = vmul.f32 %v3373, %v649
        %v3402 = vmul.f32 %v3375, %v649
        %v3403 = vmul.f32 %v3377, %v649
        %v3404 = vmul.f32 %v3379, %v649
        %v3405 = vmul.f32 %v3381, %v649
        %v3406 = vmul.f32 %v3383, %v649
        %v3407 = vmul.f32 %v3385, %v649
        %v3408 = vmul.f32 %v3387, %v649
        %v3409 = vmul.f32 %v3389, %v649
        %v3410 = vmul.f32 %v3391, %v649
        %v3411 = vmul.f32 %v3393, %v649
        %v3412 = vmul.f32 %v3395, %v649
        %v3413 = vmul.f32 %v3397, %v649
        %v3414 = vadd.f32 %v3398, 1e-07
        %v3415 = vadd.f32 %v3399, 1e-07
        %v3416 = vadd.f32 %v3400, 1e-07
        %v3417 = vadd.f32 %v3401, 1e-07
        %v3418 = vadd.f32 %v3402, 1e-07
        %v3419 = vadd.f32 %v3403, 1e-07
        %v3420 = vadd.f32 %v3404, 1e-07
        %v3421 = vadd.f32 %v3405, 1e-07
        %v3422 = vadd.f32 %v3406, 1e-07
        %v3423 = vadd.f32 %v3407, 1e-07
        %v3424 = vadd.f32 %v3408, 1e-07
        %v3425 = vadd.f32 %v3409, 1e-07
        %v3426 = vadd.f32 %v3410, 1e-07
        %v3427 = vadd.f32 %v3411, 1e-07
        %v3428 = vadd.f32 %v3412, 1e-07
        %v3429 = vadd.f32 %v3413, 1e-07
        %v3430 = vrsqrt.pop %v3414
        %v3431 = vmul.f32 %v3430, %v3414
        %v3432 = vmul.f32 %v3431, %v3430
        %v3433 = vmul.f32 0.5, %v3432
        %v3434 = vsub.f32 1.5, %v3433
        %v3435 = vmul.f32 %v3430, %v3434
        %vm3436 = vweird.f32 %v3414
        %vm3437 = vweird.f32 %v3430
        %vm3438 = vmor %vm3436, %vm3437
        %v3439 = vsel %vm3438, %v3430, %v3435
        %v3440 = vrsqrt.pop %v3415
        %v3441 = vmul.f32 %v3440, %v3415
        %v3442 = vmul.f32 %v3441, %v3440
        %v3443 = vmul.f32 0.5, %v3442
        %v3444 = vsub.f32 1.5, %v3443
        %v3445 = vmul.f32 %v3440, %v3444
        %vm3446 = vweird.f32 %v3415
        %vm3447 = vweird.f32 %v3440
        %vm3448 = vmor %vm3446, %vm3447
        %v3449 = vsel %vm3448, %v3440, %v3445
        %v3450 = vrsqrt.pop %v3416
        %v3451 = vmul.f32 %v3450, %v3416
        %v3452 = vmul.f32 %v3451, %v3450
        %v3453 = vmul.f32 0.5, %v3452
        %v3454 = vsub.f32 1.5, %v3453
        %v3455 = vmul.f32 %v3450, %v3454
        %vm3456 = vweird.f32 %v3416
        %vm3457 = vweird.f32 %v3450
        %vm3458 = vmor %vm3456, %vm3457
        %v3459 = vsel %vm3458, %v3450, %v3455
        %v3460 = vrsqrt.pop %v3417
        %v3461 = vmul.f32 %v3460, %v3417
        %v3462 = vmul.f32 %v3461, %v3460
        %v3463 = vmul.f32 0.5, %v3462
        %v3464 = vsub.f32 1.5, %v3463
        %v3465 = vmul.f32 %v3460, %v3464
        %vm3466 = vweird.f32 %v3417
        %vm3467 = vweird.f32 %v3460
        %vm3468 = vmor %vm3466, %vm3467
        %v3469 = vsel %vm3468, %v3460, %v3465
        %v3470 = vrsqrt.pop %v3418
        %v3471 = vmul.f32 %v3470, %v3418
        %v3472 = vmul.f32 %v3471, %v3470
        %v3473 = vmul.f32 0.5, %v3472
        %v3474 = vsub.f32 1.5, %v3473
        %v3475 = vmul.f32 %v3470, %v3474
        %vm3476 = vweird.f32 %v3418
        %vm3477 = vweird.f32 %v3470
        %vm3478 = vmor %vm3476, %vm3477
        %v3479 = vsel %vm3478, %v3470, %v3475
        %v3480 = vrsqrt.pop %v3419
        %v3481 = vmul.f32 %v3480, %v3419
        %v3482 = vmul.f32 %v3481, %v3480
        %v3483 = vmul.f32 0.5, %v3482
        %v3484 = vsub.f32 1.5, %v3483
        %v3485 = vmul.f32 %v3480, %v3484
        %vm3486 = vweird.f32 %v3419
        %vm3487 = vweird.f32 %v3480
        %vm3488 = vmor %vm3486, %vm3487
        %v3489 = vsel %vm3488, %v3480, %v3485
        %v3490 = vrsqrt.pop %v3420
        %v3491 = vmul.f32 %v3490, %v3420
        %v3492 = vmul.f32 %v3491, %v3490
        %v3493 = vmul.f32 0.5, %v3492
        %v3494 = vsub.f32 1.5, %v3493
        %v3495 = vmul.f32 %v3490, %v3494
        %vm3496 = vweird.f32 %v3420
        %vm3497 = vweird.f32 %v3490
        %vm3498 = vmor %vm3496, %vm3497
        %v3499 = vsel %vm3498, %v3490, %v3495
        %v3500 = vrsqrt.pop %v3421
        %v3501 = vmul.f32 %v3500, %v3421
        %v3502 = vmul.f32 %v3501, %v3500
        %v3503 = vmul.f32 0.5, %v3502
        %v3504 = vsub.f32 1.5, %v3503
        %v3505 = vmul.f32 %v3500, %v3504
        %vm3506 = vweird.f32 %v3421
        %vm3507 = vweird.f32 %v3500
        %vm3508 = vmor %vm3506, %vm3507
        %v3509 = vsel %vm3508, %v3500, %v3505
        %v3510 = vrsqrt.pop %v3422
        %v3511 = vmul.f32 %v3510, %v3422
        %v3512 = vmul.f32 %v3511, %v3510
        %v3513 = vmul.f32 0.5, %v3512
        %v3514 = vsub.f32 1.5, %v3513
        %v3515 = vmul.f32 %v3510, %v3514
        %vm3516 = vweird.f32 %v3422
        %vm3517 = vweird.f32 %v3510
        %vm3518 = vmor %vm3516, %vm3517
        %v3519 = vsel %vm3518, %v3510, %v3515
        %v3520 = vrsqrt.pop %v3423
        %v3521 = vmul.f32 %v3520, %v3423
        %v3522 = vmul.f32 %v3521, %v3520
        %v3523 = vmul.f32 0.5, %v3522
        %v3524 = vsub.f32 1.5, %v3523
        %v3525 = vmul.f32 %v3520, %v3524
        %vm3526 = vweird.f32 %v3423
        %vm3527 = vweird.f32 %v3520
        %vm3528 = vmor %vm3526, %vm3527
        %v3529 = vsel %vm3528, %v3520, %v3525
        %v3530 = vrsqrt.pop %v3424
        %v3531 = vmul.f32 %v3530, %v3424
        %v3532 = vmul.f32 %v3531, %v3530
        %v3533 = vmul.f32 0.5, %v3532
        %v3534 = vsub.f32 1.5, %v3533
        %v3535 = vmul.f32 %v3530, %v3534
        %vm3536 = vweird.f32 %v3424
        %vm3537 = vweird.f32 %v3530
        %vm3538 = vmor %vm3536, %vm3537
        %v3539 = vsel %vm3538, %v3530, %v3535
        %v3540 = vrsqrt.pop %v3425
        %v3541 = vmul.f32 %v3540, %v3425
        %v3542 = vmul.f32 %v3541, %v3540
        %v3543 = vmul.f32 0.5, %v3542
        %v3544 = vsub.f32 1.5, %v3543
        %v3545 = vmul.f32 %v3540, %v3544
        %vm3546 = vweird.f32 %v3425
        %vm3547 = vweird.f32 %v3540
        %vm3548 = vmor %vm3546, %vm3547
        %v3549 = vsel %vm3548, %v3540, %v3545
        %v3550 = vrsqrt.pop %v3426
        %v3551 = vmul.f32 %v3550, %v3426
        %v3552 = vmul.f32 %v3551, %v3550
        %v3553 = vmul.f32 0.5, %v3552
        %v3554 = vsub.f32 1.5, %v3553
        %v3555 = vmul.f32 %v3550, %v3554
        %vm3556 = vweird.f32 %v3426
        %vm3557 = vweird.f32 %v3550
        %vm3558 = vmor %vm3556, %vm3557
        %v3559 = vsel %vm3558, %v3550, %v3555
        %v3560 = vrsqrt.pop %v3427
        %v3561 = vmul.f32 %v3560, %v3427
        %v3562 = vmul.f32 %v3561, %v3560
        %v3563 = vmul.f32 0.5, %v3562
        %v3564 = vsub.f32 1.5, %v3563
        %v3565 = vmul.f32 %v3560, %v3564
        %vm3566 = vweird.f32 %v3427
        %vm3567 = vweird.f32 %v3560
        %vm3568 = vmor %vm3566, %vm3567
        %v3569 = vsel %vm3568, %v3560, %v3565
        %v3570 = vrsqrt.pop %v3428
        %v3571 = vmul.f32 %v3570, %v3428
        %v3572 = vmul.f32 %v3571, %v3570
        %v3573 = vmul.f32 0.5, %v3572
        %v3574 = vsub.f32 1.5, %v3573
        %v3575 = vmul.f32 %v3570, %v3574
        %vm3576 = vweird.f32 %v3428
        %vm3577 = vweird.f32 %v3570
        %vm3578 = vmor %vm3576, %vm3577
        %v3579 = vsel %vm3578, %v3570, %v3575
        %v3580 = vrsqrt.pop %v3429
        %v3581 = vmul.f32 %v3580, %v3429
        %v3582 = vmul.f32 %v3581, %v3580
        %v3583 = vmul.f32 0.5, %v3582
        %v3584 = vsub.f32 1.5, %v3583
        %v3585 = vmul.f32 %v3580, %v3584
        %vm3586 = vweird.f32 %v3429
        %vm3587 = vweird.f32 %v3580
        %vm3588 = vmor %vm3586, %vm3587
        %v3589 = vsel %vm3588, %v3580, %v3585
        %v3590 = vmul.f32 %v3334, %v3439
        %v3591 = vmul.f32 %v3335, %v3449
        %v3592 = vmul.f32 %v3336, %v3459
        %v3593 = vmul.f32 %v3337, %v3469
        %v3594 = vmul.f32 %v3338, %v3479
        %v3595 = vmul.f32 %v3339, %v3489
        %v3596 = vmul.f32 %v3340, %v3499
        %v3597 = vmul.f32 %v3341, %v3509
        %v3598 = vmul.f32 %v3342, %v3519
        %v3599 = vmul.f32 %v3343, %v3529
        %v3600 = vmul.f32 %v3344, %v3539
        %v3601 = vmul.f32 %v3345, %v3549
        %v3602 = vmul.f32 %v3346, %v3559
        %v3603 = vmul.f32 %v3347, %v3569
        %v3604 = vmul.f32 %v3348, %v3579
        %v3605 = vmul.f32 %v3349, %v3589
        %v3607 = vperm.slane %v3284, 0
        %v3609 = vmul.f32 %v3590, %v3607
        %v3610 = vmul.f32 %v3591, %v3607
        %v3611 = vmul.f32 %v3592, %v3607
        %v3612 = vmul.f32 %v3593, %v3607
        %v3613 = vmul.f32 %v3594, %v3607
        %v3614 = vmul.f32 %v3595, %v3607
        %v3615 = vmul.f32 %v3596, %v3607
        %v3616 = vmul.f32 %v3597, %v3607
        %v3617 = vmul.f32 %v3598, %v3607
        %v3618 = vmul.f32 %v3599, %v3607
        %v3619 = vmul.f32 %v3600, %v3607
        %v3620 = vmul.f32 %v3601, %v3607
        %v3621 = vmul.f32 %v3602, %v3607
        %v3622 = vmul.f32 %v3603, %v3607
        %v3623 = vmul.f32 %v3604, %v3607
        %v3624 = vmul.f32 %v3605, %v3607
        %v3626 = vperm.slane %v3285, 0
        %v3628 = vadd.f32 %v3609, %v3626
        %v3629 = vadd.f32 %v3610, %v3626
        %v3630 = vadd.f32 %v3611, %v3626
        %v3631 = vadd.f32 %v3612, %v3626
        %v3632 = vadd.f32 %v3613, %v3626
        %v3633 = vadd.f32 %v3614, %v3626
        %v3634 = vadd.f32 %v3615, %v3626
        %v3635 = vadd.f32 %v3616, %v3626
        %v3636 = vadd.f32 %v3617, %v3626
        %v3637 = vadd.f32 %v3618, %v3626
        %v3638 = vadd.f32 %v3619, %v3626
        %v3639 = vadd.f32 %v3620, %v3626
        %v3640 = vadd.f32 %v3621, %v3626
        %v3641 = vadd.f32 %v3622, %v3626
        %v3642 = vadd.f32 %v3623, %v3626
        %v3643 = vadd.f32 %v3624, %v3626
        %v3644 = vpack.c.bf16 %v3629, %v3628
        %v3645 = vpack.c.bf16 %v3631, %v3630
        %v3646 = vpack.c.bf16 %v3633, %v3632
        %v3647 = vpack.c.bf16 %v3635, %v3634
        %v3648 = vpack.c.bf16 %v3637, %v3636
        %v3649 = vpack.c.bf16 %v3639, %v3638
        %v3650 = vpack.c.bf16 %v3641, %v3640
        %v3651 = vpack.c.bf16 %v3643, %v3642
        %v3652 = vld [vmem:[#allocation13] sm:$0xff]
        %v3653 = vld [vmem:[#allocation13 + $0x8] sm:$0xff]
        %v3654 = vld [vmem:[#allocation13 + $0x10] sm:$0xff]
        %v3655 = vld [vmem:[#allocation13 + $0x18] sm:$0xff]
        %v3656 = vld [vmem:[#allocation13 + $0x20] sm:$0xff]
        %v3657 = vld [vmem:[#allocation13 + $0x28] sm:$0xff]
        %v3658 = vld [vmem:[#allocation13 + $0x30] sm:$0xff]
        %v3659 = vld [vmem:[#allocation13 + $0x38] sm:$0xff]
        %v3660 = vld [vmem:[#allocation13 + $0x40] sm:$0xff]
        %v3661 = vld [vmem:[#allocation13 + $0x48] sm:$0xff]
        %v3662 = vld [vmem:[#allocation13 + $0x50] sm:$0xff]
        %v3663 = vld [vmem:[#allocation13 + $0x58] sm:$0xff]
        %v3664 = vld [vmem:[#allocation13 + $0x60] sm:$0xff]
        %v3665 = vld [vmem:[#allocation13 + $0x68] sm:$0xff]
        %v3666 = vld [vmem:[#allocation13 + $0x70] sm:$0xff]
        %v3667 = vld [vmem:[#allocation13 + $0x78] sm:$0xff]
        %v3668 = vld [vmem:[#allocation13 + $0x80] sm:$0xff]
        %v3669 = vld [vmem:[#allocation13 + $0x88] sm:$0xff]
        %v3670 = vld [vmem:[#allocation13 + $0x90] sm:$0xff]
        %v3671 = vld [vmem:[#allocation13 + $0x98] sm:$0xff]
        %v3672 = vld [vmem:[#allocation13 + $0xa0] sm:$0xff]
        %v3673 = vld [vmem:[#allocation13 + $0xa8] sm:$0xff]
        %v3674 = vld [vmem:[#allocation13 + $0xb0] sm:$0xff]
        %v3675 = vld [vmem:[#allocation13 + $0xb8] sm:$0xff]
        %v3676 = vld [vmem:[#allocation13 + $0xc0] sm:$0xff]
        %v3677 = vld [vmem:[#allocation13 + $0xc8] sm:$0xff]
        %v3678 = vld [vmem:[#allocation13 + $0xd0] sm:$0xff]
        %v3679 = vld [vmem:[#allocation13 + $0xd8] sm:$0xff]
        %v3680 = vld [vmem:[#allocation13 + $0xe0] sm:$0xff]
        %v3681 = vld [vmem:[#allocation13 + $0xe8] sm:$0xff]
        %v3682 = vld [vmem:[#allocation13 + $0xf0] sm:$0xff]
        %v3683 = vld [vmem:[#allocation13 + $0xf8] sm:$0xff]
        %v3684 = vld [vmem:[%s10] sm:$0xf]
        %v3686 = vperm.slane %v3684, 0
        %v3687 = vperm.slane %v3684, 1
        %v3688 = vperm.slane %v3684, 2
        %v3689 = vperm.slane %v3684, 3
        %v3726 = vunpack.c.l.b16 %v3652
        %v3727 = vunpack.c.h.b16 %v3652
        %v3728 = vunpack.c.l.b16 %v3653
        %v3729 = vunpack.c.h.b16 %v3653
        %v3730 = vunpack.c.l.b16 %v3654
        %v3731 = vunpack.c.h.b16 %v3654
        %v3732 = vunpack.c.l.b16 %v3655
        %v3733 = vunpack.c.h.b16 %v3655
        %v3734 = vunpack.c.l.b16 %v3656
        %v3735 = vunpack.c.h.b16 %v3656
        %v3736 = vunpack.c.l.b16 %v3657
        %v3737 = vunpack.c.h.b16 %v3657
        %v3738 = vunpack.c.l.b16 %v3658
        %v3739 = vunpack.c.h.b16 %v3658
        %v3740 = vunpack.c.l.b16 %v3659
        %v3741 = vunpack.c.h.b16 %v3659
        %v3742 = vunpack.c.l.b16 %v3660
        %v3743 = vunpack.c.h.b16 %v3660
        %v3744 = vunpack.c.l.b16 %v3661
        %v3745 = vunpack.c.h.b16 %v3661
        %v3746 = vunpack.c.l.b16 %v3662
        %v3747 = vunpack.c.h.b16 %v3662
        %v3748 = vunpack.c.l.b16 %v3663
        %v3749 = vunpack.c.h.b16 %v3663
        %v3750 = vunpack.c.l.b16 %v3664
        %v3751 = vunpack.c.h.b16 %v3664
        %v3752 = vunpack.c.l.b16 %v3665
        %v3753 = vunpack.c.h.b16 %v3665
        %v3754 = vunpack.c.l.b16 %v3666
        %v3755 = vunpack.c.h.b16 %v3666
        %v3756 = vunpack.c.l.b16 %v3667
        %v3757 = vunpack.c.h.b16 %v3667
        %v3758 = vunpack.c.l.b16 %v3668
        %v3759 = vunpack.c.h.b16 %v3668
        %v3760 = vunpack.c.l.b16 %v3669
        %v3761 = vunpack.c.h.b16 %v3669
        %v3762 = vunpack.c.l.b16 %v3670
        %v3763 = vunpack.c.h.b16 %v3670
        %v3764 = vunpack.c.l.b16 %v3671
        %v3765 = vunpack.c.h.b16 %v3671
        %v3766 = vunpack.c.l.b16 %v3672
        %v3767 = vunpack.c.h.b16 %v3672
        %v3768 = vunpack.c.l.b16 %v3673
        %v3769 = vunpack.c.h.b16 %v3673
        %v3770 = vunpack.c.l.b16 %v3674
        %v3771 = vunpack.c.h.b16 %v3674
        %v3772 = vunpack.c.l.b16 %v3675
        %v3773 = vunpack.c.h.b16 %v3675
        %v3774 = vunpack.c.l.b16 %v3676
        %v3775 = vunpack.c.h.b16 %v3676
        %v3776 = vunpack.c.l.b16 %v3677
        %v3777 = vunpack.c.h.b16 %v3677
        %v3778 = vunpack.c.l.b16 %v3678
        %v3779 = vunpack.c.h.b16 %v3678
        %v3780 = vunpack.c.l.b16 %v3679
        %v3781 = vunpack.c.h.b16 %v3679
        %v3782 = vunpack.c.l.b16 %v3680
        %v3783 = vunpack.c.h.b16 %v3680
        %v3784 = vunpack.c.l.b16 %v3681
        %v3785 = vunpack.c.h.b16 %v3681
        %v3786 = vunpack.c.l.b16 %v3682
        %v3787 = vunpack.c.h.b16 %v3682
        %v3788 = vunpack.c.l.b16 %v3683
        %v3789 = vunpack.c.h.b16 %v3683
        %v3790 = vpack.c.b16 %v3730, %v3726
        %v3791 = vpack.c.b16 %v3731, %v3727
        %v3792 = vpack.c.b16 %v3732, %v3728
        %v3793 = vpack.c.b16 %v3733, %v3729
        %v3794 = vpack.c.b16 %v3738, %v3734
        %v3795 = vpack.c.b16 %v3739, %v3735
        %v3796 = vpack.c.b16 %v3740, %v3736
        %v3797 = vpack.c.b16 %v3741, %v3737
        %v3798 = vpack.c.b16 %v3746, %v3742
        %v3799 = vpack.c.b16 %v3747, %v3743
        %v3800 = vpack.c.b16 %v3748, %v3744
        %v3801 = vpack.c.b16 %v3749, %v3745
        %v3802 = vpack.c.b16 %v3754, %v3750
        %v3803 = vpack.c.b16 %v3755, %v3751
        %v3804 = vpack.c.b16 %v3756, %v3752
        %v3805 = vpack.c.b16 %v3757, %v3753
        %v3806 = vpack.c.b16 %v3762, %v3758
        %v3807 = vpack.c.b16 %v3763, %v3759
        %v3808 = vpack.c.b16 %v3764, %v3760
        %v3809 = vpack.c.b16 %v3765, %v3761
        %v3810 = vpack.c.b16 %v3770, %v3766
        %v3811 = vpack.c.b16 %v3771, %v3767
        %v3812 = vpack.c.b16 %v3772, %v3768
        %v3813 = vpack.c.b16 %v3773, %v3769
        %v3814 = vpack.c.b16 %v3778, %v3774
        %v3815 = vpack.c.b16 %v3779, %v3775
        %v3816 = vpack.c.b16 %v3780, %v3776
        %v3817 = vpack.c.b16 %v3781, %v3777
        %v3818 = vpack.c.b16 %v3786, %v3782
        %v3819 = vpack.c.b16 %v3787, %v3783
        %v3820 = vpack.c.b16 %v3788, %v3784
        %v3821 = vpack.c.b16 %v3789, %v3785
        %3854 = vmatpush.bf16.msra.mxu0 %v3818
        %3855 = vmatpush.bf16.msra.mxu0 %v3814
        %3856 = vmatpush.bf16.msra.mxu0 %v3810
        %3857 = vmatpush.bf16.msra.mxu0 %v3806
        %3858 = vmatpush.bf16.msra.mxu0 %v3802
        %3859 = vmatpush.bf16.msra.mxu0 %v3798
        %3860 = vmatpush.bf16.msra.mxu0 %v3794
        %3861 = vmatpush.bf16.msra.mxu0 %v3790
        %3862 = vmatmul.bf16.gmra.mxu0 %v3644
        %v3863 = vpop.f32.mrf.mxu0
        %v3864 = vadd.f32 %v3686, %v3863
        %v3865 = vpop.f32.mrf.mxu0
        %v3866 = vadd.f32 %v3686, %v3865
        %3867 = vmatmul.bf16.gmra.mxu0 %v3645
        %v3868 = vpop.f32.mrf.mxu0
        %v3869 = vadd.f32 %v3686, %v3868
        %v3870 = vpop.f32.mrf.mxu0
        %v3871 = vadd.f32 %v3686, %v3870
        %3872 = vmatmul.bf16.gmra.mxu0 %v3646
        %v3873 = vpop.f32.mrf.mxu0
        %v3874 = vadd.f32 %v3686, %v3873
        %v3875 = vpop.f32.mrf.mxu0
        %v3876 = vadd.f32 %v3686, %v3875
        %3877 = vmatmul.bf16.gmra.mxu0 %v3647
        %v3878 = vpop.f32.mrf.mxu0
        %v3879 = vadd.f32 %v3686, %v3878
        %v3880 = vpop.f32.mrf.mxu0
        %v3881 = vadd.f32 %v3686, %v3880
        %3882 = vmatmul.bf16.gmra.mxu0 %v3648
        %v3883 = vpop.f32.mrf.mxu0
        %v3884 = vadd.f32 %v3686, %v3883
        %v3885 = vpop.f32.mrf.mxu0
        %v3886 = vadd.f32 %v3686, %v3885
        %3887 = vmatmul.bf16.gmra.mxu0 %v3649
        %v3888 = vpop.f32.mrf.mxu0
        %v3889 = vadd.f32 %v3686, %v3888
        %v3890 = vpop.f32.mrf.mxu0
        %v3891 = vadd.f32 %v3686, %v3890
        %3892 = vmatmul.bf16.gmra.mxu0 %v3650
        %v3893 = vpop.f32.mrf.mxu0
        %v3894 = vadd.f32 %v3686, %v3893
        %v3895 = vpop.f32.mrf.mxu0
        %v3896 = vadd.f32 %v3686, %v3895
        %3897 = vmatmul.bf16.gmra.mxu0 %v3651
        %v3898 = vpop.f32.mrf.mxu0
        %v3899 = vadd.f32 %v3686, %v3898
        %v3900 = vpop.f32.mrf.mxu0
        %v3901 = vadd.f32 %v3686, %v3900
        %3902 = vdwg.mxu0
        %3903 = vmatpush.bf16.msra.mxu0 %v3819
        %3904 = vmatpush.bf16.msra.mxu0 %v3815
        %3905 = vmatpush.bf16.msra.mxu0 %v3811
        %3906 = vmatpush.bf16.msra.mxu0 %v3807
        %3907 = vmatpush.bf16.msra.mxu0 %v3803
        %3908 = vmatpush.bf16.msra.mxu0 %v3799
        %3909 = vmatpush.bf16.msra.mxu0 %v3795
        %3910 = vmatpush.bf16.msra.mxu0 %v3791
        %3911 = vmatmul.bf16.gmra.mxu0 %v3644
        %v3912 = vpop.f32.mrf.mxu0
        %v3913 = vadd.f32 %v3687, %v3912
        %v3914 = vpop.f32.mrf.mxu0
        %v3915 = vadd.f32 %v3687, %v3914
        %3916 = vmatmul.bf16.gmra.mxu0 %v3645
        %v3917 = vpop.f32.mrf.mxu0
        %v3918 = vadd.f32 %v3687, %v3917
        %v3919 = vpop.f32.mrf.mxu0
        %v3920 = vadd.f32 %v3687, %v3919
        %3921 = vmatmul.bf16.gmra.mxu0 %v3646
        %v3922 = vpop.f32.mrf.mxu0
        %v3923 = vadd.f32 %v3687, %v3922
        %v3924 = vpop.f32.mrf.mxu0
        %v3925 = vadd.f32 %v3687, %v3924
        %3926 = vmatmul.bf16.gmra.mxu0 %v3647
        %v3927 = vpop.f32.mrf.mxu0
        %v3928 = vadd.f32 %v3687, %v3927
        %v3929 = vpop.f32.mrf.mxu0
        %v3930 = vadd.f32 %v3687, %v3929
        %3931 = vmatmul.bf16.gmra.mxu0 %v3648
        %v3932 = vpop.f32.mrf.mxu0
        %v3933 = vadd.f32 %v3687, %v3932
        %v3934 = vpop.f32.mrf.mxu0
        %v3935 = vadd.f32 %v3687, %v3934
        %3936 = vmatmul.bf16.gmra.mxu0 %v3649
        %v3937 = vpop.f32.mrf.mxu0
        %v3938 = vadd.f32 %v3687, %v3937
        %v3939 = vpop.f32.mrf.mxu0
        %v3940 = vadd.f32 %v3687, %v3939
        %3941 = vmatmul.bf16.gmra.mxu0 %v3650
        %v3942 = vpop.f32.mrf.mxu0
        %v3943 = vadd.f32 %v3687, %v3942
        %v3944 = vpop.f32.mrf.mxu0
        %v3945 = vadd.f32 %v3687, %v3944
        %3946 = vmatmul.bf16.gmra.mxu0 %v3651
        %v3947 = vpop.f32.mrf.mxu0
        %v3948 = vadd.f32 %v3687, %v3947
        %v3949 = vpop.f32.mrf.mxu0
        %v3950 = vadd.f32 %v3687, %v3949
        %3951 = vdwg.mxu0
        %3952 = vmatpush.bf16.msra.mxu0 %v3820
        %3953 = vmatpush.bf16.msra.mxu0 %v3816
        %3954 = vmatpush.bf16.msra.mxu0 %v3812
        %3955 = vmatpush.bf16.msra.mxu0 %v3808
        %3956 = vmatpush.bf16.msra.mxu0 %v3804
        %3957 = vmatpush.bf16.msra.mxu0 %v3800
        %3958 = vmatpush.bf16.msra.mxu0 %v3796
        %3959 = vmatpush.bf16.msra.mxu0 %v3792
        %3960 = vmatmul.bf16.gmra.mxu0 %v3644
        %v3961 = vpop.f32.mrf.mxu0
        %v3962 = vadd.f32 %v3688, %v3961
        %v3963 = vpop.f32.mrf.mxu0
        %v3964 = vadd.f32 %v3688, %v3963
        %3965 = vmatmul.bf16.gmra.mxu0 %v3645
        %v3966 = vpop.f32.mrf.mxu0
        %v3967 = vadd.f32 %v3688, %v3966
        %v3968 = vpop.f32.mrf.mxu0
        %v3969 = vadd.f32 %v3688, %v3968
        %3970 = vmatmul.bf16.gmra.mxu0 %v3646
        %v3971 = vpop.f32.mrf.mxu0
        %v3972 = vadd.f32 %v3688, %v3971
        %v3973 = vpop.f32.mrf.mxu0
        %v3974 = vadd.f32 %v3688, %v3973
        %3975 = vmatmul.bf16.gmra.mxu0 %v3647
        %v3976 = vpop.f32.mrf.mxu0
        %v3977 = vadd.f32 %v3688, %v3976
        %v3978 = vpop.f32.mrf.mxu0
        %v3979 = vadd.f32 %v3688, %v3978
        %3980 = vmatmul.bf16.gmra.mxu0 %v3648
        %v3981 = vpop.f32.mrf.mxu0
        %v3982 = vadd.f32 %v3688, %v3981
        %v3983 = vpop.f32.mrf.mxu0
        %v3984 = vadd.f32 %v3688, %v3983
        %3985 = vmatmul.bf16.gmra.mxu0 %v3649
        %v3986 = vpop.f32.mrf.mxu0
        %v3987 = vadd.f32 %v3688, %v3986
        %v3988 = vpop.f32.mrf.mxu0
        %v3989 = vadd.f32 %v3688, %v3988
        %3990 = vmatmul.bf16.gmra.mxu0 %v3650
        %v3991 = vpop.f32.mrf.mxu0
        %v3992 = vadd.f32 %v3688, %v3991
        %v3993 = vpop.f32.mrf.mxu0
        %v3994 = vadd.f32 %v3688, %v3993
        %3995 = vmatmul.bf16.gmra.mxu0 %v3651
        %v3996 = vpop.f32.mrf.mxu0
        %v3997 = vadd.f32 %v3688, %v3996
        %v3998 = vpop.f32.mrf.mxu0
        %v3999 = vadd.f32 %v3688, %v3998
        %4000 = vdwg.mxu0
        %4001 = vmatpush.bf16.msra.mxu0 %v3821
        %4002 = vmatpush.bf16.msra.mxu0 %v3817
        %4003 = vmatpush.bf16.msra.mxu0 %v3813
        %4004 = vmatpush.bf16.msra.mxu0 %v3809
        %4005 = vmatpush.bf16.msra.mxu0 %v3805
        %4006 = vmatpush.bf16.msra.mxu0 %v3801
        %4007 = vmatpush.bf16.msra.mxu0 %v3797
        %4008 = vmatpush.bf16.msra.mxu0 %v3793
        %4009 = vmatmul.bf16.gmra.mxu0 %v3644
        %v4010 = vpop.f32.mrf.mxu0
        %v4011 = vadd.f32 %v3689, %v4010
        %v4012 = vpop.f32.mrf.mxu0
        %v4013 = vadd.f32 %v3689, %v4012
        %4014 = vmatmul.bf16.gmra.mxu0 %v3645
        %v4015 = vpop.f32.mrf.mxu0
        %v4016 = vadd.f32 %v3689, %v4015
        %v4017 = vpop.f32.mrf.mxu0
        %v4018 = vadd.f32 %v3689, %v4017
        %4019 = vmatmul.bf16.gmra.mxu0 %v3646
        %v4020 = vpop.f32.mrf.mxu0
        %v4021 = vadd.f32 %v3689, %v4020
        %v4022 = vpop.f32.mrf.mxu0
        %v4023 = vadd.f32 %v3689, %v4022
        %4024 = vmatmul.bf16.gmra.mxu0 %v3647
        %v4025 = vpop.f32.mrf.mxu0
        %v4026 = vadd.f32 %v3689, %v4025
        %v4027 = vpop.f32.mrf.mxu0
        %v4028 = vadd.f32 %v3689, %v4027
        %4029 = vmatmul.bf16.gmra.mxu0 %v3648
        %v4030 = vpop.f32.mrf.mxu0
        %v4031 = vadd.f32 %v3689, %v4030
        %v4032 = vpop.f32.mrf.mxu0
        %v4033 = vadd.f32 %v3689, %v4032
        %4034 = vmatmul.bf16.gmra.mxu0 %v3649
        %v4035 = vpop.f32.mrf.mxu0
        %v4036 = vadd.f32 %v3689, %v4035
        %v4037 = vpop.f32.mrf.mxu0
        %v4038 = vadd.f32 %v3689, %v4037
        %4039 = vmatmul.bf16.gmra.mxu0 %v3650
        %v4040 = vpop.f32.mrf.mxu0
        %v4041 = vadd.f32 %v3689, %v4040
        %v4042 = vpop.f32.mrf.mxu0
        %v4043 = vadd.f32 %v3689, %v4042
        %4044 = vmatmul.bf16.gmra.mxu0 %v3651
        %v4045 = vpop.f32.mrf.mxu0
        %v4046 = vadd.f32 %v3689, %v4045
        %v4047 = vpop.f32.mrf.mxu0
        %v4048 = vadd.f32 %v3689, %v4047
        %4049 = vdwg.mxu0
        %v4050 = vmul.f32 %v3864, 0.5
        %v4051 = vmul.f32 %v3913, 0.5
        %v4052 = vmul.f32 %v3962, 0.5
        %v4053 = vmul.f32 %v4011, 0.5
        %v4054 = vmul.f32 %v3866, 0.5
        %v4055 = vmul.f32 %v3915, 0.5
        %v4056 = vmul.f32 %v3964, 0.5
        %v4057 = vmul.f32 %v4013, 0.5
        %v4058 = vmul.f32 %v3869, 0.5
        %v4059 = vmul.f32 %v3918, 0.5
        %v4060 = vmul.f32 %v3967, 0.5
        %v4061 = vmul.f32 %v4016, 0.5
        %v4062 = vmul.f32 %v3871, 0.5
        %v4063 = vmul.f32 %v3920, 0.5
        %v4064 = vmul.f32 %v3969, 0.5
        %v4065 = vmul.f32 %v4018, 0.5
        %v4066 = vmul.f32 %v3874, 0.5
        %v4067 = vmul.f32 %v3923, 0.5
        %v4068 = vmul.f32 %v3972, 0.5
        %v4069 = vmul.f32 %v4021, 0.5
        %v4070 = vmul.f32 %v3876, 0.5
        %v4071 = vmul.f32 %v3925, 0.5
        %v4072 = vmul.f32 %v3974, 0.5
        %v4073 = vmul.f32 %v4023, 0.5
        %v4074 = vmul.f32 %v3879, 0.5
        %v4075 = vmul.f32 %v3928, 0.5
        %v4076 = vmul.f32 %v3977, 0.5
        %v4077 = vmul.f32 %v4026, 0.5
        %v4078 = vmul.f32 %v3881, 0.5
        %v4079 = vmul.f32 %v3930, 0.5
        %v4080 = vmul.f32 %v3979, 0.5
        %v4081 = vmul.f32 %v4028, 0.5
        %v4082 = vmul.f32 %v3884, 0.5
        %v4083 = vmul.f32 %v3933, 0.5
        %v4084 = vmul.f32 %v3982, 0.5
        %v4085 = vmul.f32 %v4031, 0.5
        %v4086 = vmul.f32 %v3886, 0.5
        %v4087 = vmul.f32 %v3935, 0.5
        %v4088 = vmul.f32 %v3984, 0.5
        %v4089 = vmul.f32 %v4033, 0.5
        %v4090 = vmul.f32 %v3889, 0.5
        %v4091 = vmul.f32 %v3938, 0.5
        %v4092 = vmul.f32 %v3987, 0.5
        %v4093 = vmul.f32 %v4036, 0.5
        %v4094 = vmul.f32 %v3891, 0.5
        %v4095 = vmul.f32 %v3940, 0.5
        %v4096 = vmul.f32 %v3989, 0.5
        %v4097 = vmul.f32 %v4038, 0.5
        %v4098 = vmul.f32 %v3894, 0.5
        %v4099 = vmul.f32 %v3943, 0.5
        %v4100 = vmul.f32 %v3992, 0.5
        %v4101 = vmul.f32 %v4041, 0.5
        %v4102 = vmul.f32 %v3896, 0.5
        %v4103 = vmul.f32 %v3945, 0.5
        %v4104 = vmul.f32 %v3994, 0.5
        %v4105 = vmul.f32 %v4043, 0.5
        %v4106 = vmul.f32 %v3899, 0.5
        %v4107 = vmul.f32 %v3948, 0.5
        %v4108 = vmul.f32 %v3997, 0.5
        %v4109 = vmul.f32 %v4046, 0.5
        %v4110 = vmul.f32 %v3901, 0.5
        %v4111 = vmul.f32 %v3950, 0.5
        %v4112 = vmul.f32 %v3999, 0.5
        %v4113 = vmul.f32 %v4048, 0.5
        %v4114 = vmul.f32 %v3864, 0.044715
        %v4115 = vmul.f32 %v3913, 0.044715
        %v4116 = vmul.f32 %v3962, 0.044715
        %v4117 = vmul.f32 %v4011, 0.044715
        %v4118 = vmul.f32 %v3866, 0.044715
        %v4119 = vmul.f32 %v3915, 0.044715
        %v4120 = vmul.f32 %v3964, 0.044715
        %v4121 = vmul.f32 %v4013, 0.044715
        %v4122 = vmul.f32 %v3869, 0.044715
        %v4123 = vmul.f32 %v3918, 0.044715
        %v4124 = vmul.f32 %v3967, 0.044715
        %v4125 = vmul.f32 %v4016, 0.044715
        %v4126 = vmul.f32 %v3871, 0.044715
        %v4127 = vmul.f32 %v3920, 0.044715
        %v4128 = vmul.f32 %v3969, 0.044715
        %v4129 = vmul.f32 %v4018, 0.044715
        %v4130 = vmul.f32 %v3874, 0.044715
        %v4131 = vmul.f32 %v3923, 0.044715
        %v4132 = vmul.f32 %v3972, 0.044715
        %v4133 = vmul.f32 %v4021, 0.044715
        %v4134 = vmul.f32 %v3876, 0.044715
        %v4135 = vmul.f32 %v3925, 0.044715
        %v4136 = vmul.f32 %v3974, 0.044715
        %v4137 = vmul.f32 %v4023, 0.044715
        %v4138 = vmul.f32 %v3879, 0.044715
        %v4139 = vmul.f32 %v3928, 0.044715
        %v4140 = vmul.f32 %v3977, 0.044715
        %v4141 = vmul.f32 %v4026, 0.044715
        %v4142 = vmul.f32 %v3881, 0.044715
        %v4143 = vmul.f32 %v3930, 0.044715
        %v4144 = vmul.f32 %v3979, 0.044715
        %v4145 = vmul.f32 %v4028, 0.044715
        %v4146 = vmul.f32 %v3884, 0.044715
        %v4147 = vmul.f32 %v3933, 0.044715
        %v4148 = vmul.f32 %v3982, 0.044715
        %v4149 = vmul.f32 %v4031, 0.044715
        %v4150 = vmul.f32 %v3886, 0.044715
        %v4151 = vmul.f32 %v3935, 0.044715
        %v4152 = vmul.f32 %v3984, 0.044715
        %v4153 = vmul.f32 %v4033, 0.044715
        %v4154 = vmul.f32 %v3889, 0.044715
        %v4155 = vmul.f32 %v3938, 0.044715
        %v4156 = vmul.f32 %v3987, 0.044715
        %v4157 = vmul.f32 %v4036, 0.044715
        %v4158 = vmul.f32 %v3891, 0.044715
        %v4159 = vmul.f32 %v3940, 0.044715
        %v4160 = vmul.f32 %v3989, 0.044715
        %v4161 = vmul.f32 %v4038, 0.044715
        %v4162 = vmul.f32 %v3894, 0.044715
        %v4163 = vmul.f32 %v3943, 0.044715
        %v4164 = vmul.f32 %v3992, 0.044715
        %v4165 = vmul.f32 %v4041, 0.044715
        %v4166 = vmul.f32 %v3896, 0.044715
        %v4167 = vmul.f32 %v3945, 0.044715
        %v4168 = vmul.f32 %v3994, 0.044715
        %v4169 = vmul.f32 %v4043, 0.044715
        %v4170 = vmul.f32 %v3899, 0.044715
        %v4171 = vmul.f32 %v3948, 0.044715
        %v4172 = vmul.f32 %v3997, 0.044715
        %v4173 = vmul.f32 %v4046, 0.044715
        %v4174 = vmul.f32 %v3901, 0.044715
        %v4175 = vmul.f32 %v3950, 0.044715
        %v4176 = vmul.f32 %v3999, 0.044715
        %v4177 = vmul.f32 %v4048, 0.044715
        %v4178 = vmul.f32 %v4114, %v3864
        %v4179 = vmul.f32 %v4115, %v3913
        %v4180 = vmul.f32 %v4116, %v3962
        %v4181 = vmul.f32 %v4117, %v4011
        %v4182 = vmul.f32 %v4118, %v3866
        %v4183 = vmul.f32 %v4119, %v3915
        %v4184 = vmul.f32 %v4120, %v3964
        %v4185 = vmul.f32 %v4121, %v4013
        %v4186 = vmul.f32 %v4122, %v3869
        %v4187 = vmul.f32 %v4123, %v3918
        %v4188 = vmul.f32 %v4124, %v3967
        %v4189 = vmul.f32 %v4125, %v4016
        %v4190 = vmul.f32 %v4126, %v3871
        %v4191 = vmul.f32 %v4127, %v3920
        %v4192 = vmul.f32 %v4128, %v3969
        %v4193 = vmul.f32 %v4129, %v4018
        %v4194 = vmul.f32 %v4130, %v3874
        %v4195 = vmul.f32 %v4131, %v3923
        %v4196 = vmul.f32 %v4132, %v3972
        %v4197 = vmul.f32 %v4133, %v4021
        %v4198 = vmul.f32 %v4134, %v3876
        %v4199 = vmul.f32 %v4135, %v3925
        %v4200 = vmul.f32 %v4136, %v3974
        %v4201 = vmul.f32 %v4137, %v4023
        %v4202 = vmul.f32 %v4138, %v3879
        %v4203 = vmul.f32 %v4139, %v3928
        %v4204 = vmul.f32 %v4140, %v3977
        %v4205 = vmul.f32 %v4141, %v4026
        %v4206 = vmul.f32 %v4142, %v3881
        %v4207 = vmul.f32 %v4143, %v3930
        %v4208 = vmul.f32 %v4144, %v3979
        %v4209 = vmul.f32 %v4145, %v4028
        %v4210 = vmul.f32 %v4146, %v3884
        %v4211 = vmul.f32 %v4147, %v3933
        %v4212 = vmul.f32 %v4148, %v3982
        %v4213 = vmul.f32 %v4149, %v4031
        %v4214 = vmul.f32 %v4150, %v3886
        %v4215 = vmul.f32 %v4151, %v3935
        %v4216 = vmul.f32 %v4152, %v3984
        %v4217 = vmul.f32 %v4153, %v4033
        %v4218 = vmul.f32 %v4154, %v3889
        %v4219 = vmul.f32 %v4155, %v3938
        %v4220 = vmul.f32 %v4156, %v3987
        %v4221 = vmul.f32 %v4157, %v4036
        %v4222 = vmul.f32 %v4158, %v3891
        %v4223 = vmul.f32 %v4159, %v3940
        %v4224 = vmul.f32 %v4160, %v3989
        %v4225 = vmul.f32 %v4161, %v4038
        %v4226 = vmul.f32 %v4162, %v3894
        %v4227 = vmul.f32 %v4163, %v3943
        %v4228 = vmul.f32 %v4164, %v3992
        %v4229 = vmul.f32 %v4165, %v4041
        %v4230 = vmul.f32 %v4166, %v3896
        %v4231 = vmul.f32 %v4167, %v3945
        %v4232 = vmul.f32 %v4168, %v3994
        %v4233 = vmul.f32 %v4169, %v4043
        %v4234 = vmul.f32 %v4170, %v3899
        %v4235 = vmul.f32 %v4171, %v3948
        %v4236 = vmul.f32 %v4172, %v3997
        %v4237 = vmul.f32 %v4173, %v4046
        %v4238 = vmul.f32 %v4174, %v3901
        %v4239 = vmul.f32 %v4175, %v3950
        %v4240 = vmul.f32 %v4176, %v3999
        %v4241 = vmul.f32 %v4177, %v4048
        %v4242 = vmul.f32 %v4178, %v3864
        %v4243 = vmul.f32 %v4179, %v3913
        %v4244 = vmul.f32 %v4180, %v3962
        %v4245 = vmul.f32 %v4181, %v4011
        %v4246 = vmul.f32 %v4182, %v3866
        %v4247 = vmul.f32 %v4183, %v3915
        %v4248 = vmul.f32 %v4184, %v3964
        %v4249 = vmul.f32 %v4185, %v4013
        %v4250 = vmul.f32 %v4186, %v3869
        %v4251 = vmul.f32 %v4187, %v3918
        %v4252 = vmul.f32 %v4188, %v3967
        %v4253 = vmul.f32 %v4189, %v4016
        %v4254 = vmul.f32 %v4190, %v3871
        %v4255 = vmul.f32 %v4191, %v3920
        %v4256 = vmul.f32 %v4192, %v3969
        %v4257 = vmul.f32 %v4193, %v4018
        %v4258 = vmul.f32 %v4194, %v3874
        %v4259 = vmul.f32 %v4195, %v3923
        %v4260 = vmul.f32 %v4196, %v3972
        %v4261 = vmul.f32 %v4197, %v4021
        %v4262 = vmul.f32 %v4198, %v3876
        %v4263 = vmul.f32 %v4199, %v3925
        %v4264 = vmul.f32 %v4200, %v3974
        %v4265 = vmul.f32 %v4201, %v4023
        %v4266 = vmul.f32 %v4202, %v3879
        %v4267 = vmul.f32 %v4203, %v3928
        %v4268 = vmul.f32 %v4204, %v3977
        %v4269 = vmul.f32 %v4205, %v4026
        %v4270 = vmul.f32 %v4206, %v3881
        %v4271 = vmul.f32 %v4207, %v3930
        %v4272 = vmul.f32 %v4208, %v3979
        %v4273 = vmul.f32 %v4209, %v4028
        %v4274 = vmul.f32 %v4210, %v3884
        %v4275 = vmul.f32 %v4211, %v3933
        %v4276 = vmul.f32 %v4212, %v3982
        %v4277 = vmul.f32 %v4213, %v4031
        %v4278 = vmul.f32 %v4214, %v3886
        %v4279 = vmul.f32 %v4215, %v3935
        %v4280 = vmul.f32 %v4216, %v3984
        %v4281 = vmul.f32 %v4217, %v4033
        %v4282 = vmul.f32 %v4218, %v3889
        %v4283 = vmul.f32 %v4219, %v3938
        %v4284 = vmul.f32 %v4220, %v3987
        %v4285 = vmul.f32 %v4221, %v4036
        %v4286 = vmul.f32 %v4222, %v3891
        %v4287 = vmul.f32 %v4223, %v3940
        %v4288 = vmul.f32 %v4224, %v3989
        %v4289 = vmul.f32 %v4225, %v4038
        %v4290 = vmul.f32 %v4226, %v3894
        %v4291 = vmul.f32 %v4227, %v3943
        %v4292 = vmul.f32 %v4228, %v3992
        %v4293 = vmul.f32 %v4229, %v4041
        %v4294 = vmul.f32 %v4230, %v3896
        %v4295 = vmul.f32 %v4231, %v3945
        %v4296 = vmul.f32 %v4232, %v3994
        %v4297 = vmul.f32 %v4233, %v4043
        %v4298 = vmul.f32 %v4234, %v3899
        %v4299 = vmul.f32 %v4235, %v3948
        %v4300 = vmul.f32 %v4236, %v3997
        %v4301 = vmul.f32 %v4237, %v4046
        %v4302 = vmul.f32 %v4238, %v3901
        %v4303 = vmul.f32 %v4239, %v3950
        %v4304 = vmul.f32 %v4240, %v3999
        %v4305 = vmul.f32 %v4241, %v4048
        %v4306 = vadd.f32 %v3864, %v4242
        %v4307 = vadd.f32 %v3913, %v4243
        %v4308 = vadd.f32 %v3962, %v4244
        %v4309 = vadd.f32 %v4011, %v4245
        %v4310 = vadd.f32 %v3866, %v4246
        %v4311 = vadd.f32 %v3915, %v4247
        %v4312 = vadd.f32 %v3964, %v4248
        %v4313 = vadd.f32 %v4013, %v4249
        %v4314 = vadd.f32 %v3869, %v4250
        %v4315 = vadd.f32 %v3918, %v4251
        %v4316 = vadd.f32 %v3967, %v4252
        %v4317 = vadd.f32 %v4016, %v4253
        %v4318 = vadd.f32 %v3871, %v4254
        %v4319 = vadd.f32 %v3920, %v4255
        %v4320 = vadd.f32 %v3969, %v4256
        %v4321 = vadd.f32 %v4018, %v4257
        %v4322 = vadd.f32 %v3874, %v4258
        %v4323 = vadd.f32 %v3923, %v4259
        %v4324 = vadd.f32 %v3972, %v4260
        %v4325 = vadd.f32 %v4021, %v4261
        %v4326 = vadd.f32 %v3876, %v4262
        %v4327 = vadd.f32 %v3925, %v4263
        %v4328 = vadd.f32 %v3974, %v4264
        %v4329 = vadd.f32 %v4023, %v4265
        %v4330 = vadd.f32 %v3879, %v4266
        %v4331 = vadd.f32 %v3928, %v4267
        %v4332 = vadd.f32 %v3977, %v4268
        %v4333 = vadd.f32 %v4026, %v4269
        %v4334 = vadd.f32 %v3881, %v4270
        %v4335 = vadd.f32 %v3930, %v4271
        %v4336 = vadd.f32 %v3979, %v4272
        %v4337 = vadd.f32 %v4028, %v4273
        %v4338 = vadd.f32 %v3884, %v4274
        %v4339 = vadd.f32 %v3933, %v4275
        %v4340 = vadd.f32 %v3982, %v4276
        %v4341 = vadd.f32 %v4031, %v4277
        %v4342 = vadd.f32 %v3886, %v4278
        %v4343 = vadd.f32 %v3935, %v4279
        %v4344 = vadd.f32 %v3984, %v4280
        %v4345 = vadd.f32 %v4033, %v4281
        %v4346 = vadd.f32 %v3889, %v4282
        %v4347 = vadd.f32 %v3938, %v4283
        %v4348 = vadd.f32 %v3987, %v4284
        %v4349 = vadd.f32 %v4036, %v4285
        %v4350 = vadd.f32 %v3891, %v4286
        %v4351 = vadd.f32 %v3940, %v4287
        %v4352 = vadd.f32 %v3989, %v4288
        %v4353 = vadd.f32 %v4038, %v4289
        %v4354 = vadd.f32 %v3894, %v4290
        %v4355 = vadd.f32 %v3943, %v4291
        %v4356 = vadd.f32 %v3992, %v4292
        %v4357 = vadd.f32 %v4041, %v4293
        %v4358 = vadd.f32 %v3896, %v4294
        %v4359 = vadd.f32 %v3945, %v4295
        %v4360 = vadd.f32 %v3994, %v4296
        %v4361 = vadd.f32 %v4043, %v4297
        %v4362 = vadd.f32 %v3899, %v4298
        %v4363 = vadd.f32 %v3948, %v4299
        %v4364 = vadd.f32 %v3997, %v4300
        %v4365 = vadd.f32 %v4046, %v4301
        %v4366 = vadd.f32 %v3901, %v4302
        %v4367 = vadd.f32 %v3950, %v4303
        %v4368 = vadd.f32 %v3999, %v4304
        %v4369 = vadd.f32 %v4048, %v4305
        %v4370 = vmul.f32 %v4306, 0.7978846
        %v4371 = vmul.f32 %v4307, 0.7978846
        %v4372 = vmul.f32 %v4308, 0.7978846
        %v4373 = vmul.f32 %v4309, 0.7978846
        %v4374 = vmul.f32 %v4310, 0.7978846
        %v4375 = vmul.f32 %v4311, 0.7978846
        %v4376 = vmul.f32 %v4312, 0.7978846
        %v4377 = vmul.f32 %v4313, 0.7978846
        %v4378 = vmul.f32 %v4314, 0.7978846
        %v4379 = vmul.f32 %v4315, 0.7978846
        %v4380 = vmul.f32 %v4316, 0.7978846
        %v4381 = vmul.f32 %v4317, 0.7978846
        %v4382 = vmul.f32 %v4318, 0.7978846
        %v4383 = vmul.f32 %v4319, 0.7978846
        %v4384 = vmul.f32 %v4320, 0.7978846
        %v4385 = vmul.f32 %v4321, 0.7978846
        %v4386 = vmul.f32 %v4322, 0.7978846
        %v4387 = vmul.f32 %v4323, 0.7978846
        %v4388 = vmul.f32 %v4324, 0.7978846
        %v4389 = vmul.f32 %v4325, 0.7978846
        %v4390 = vmul.f32 %v4326, 0.7978846
        %v4391 = vmul.f32 %v4327, 0.7978846
        %v4392 = vmul.f32 %v4328, 0.7978846
        %v4393 = vmul.f32 %v4329, 0.7978846
        %v4394 = vmul.f32 %v4330, 0.7978846
        %v4395 = vmul.f32 %v4331, 0.7978846
        %v4396 = vmul.f32 %v4332, 0.7978846
        %v4397 = vmul.f32 %v4333, 0.7978846
        %v4398 = vmul.f32 %v4334, 0.7978846
        %v4399 = vmul.f32 %v4335, 0.7978846
        %v4400 = vmul.f32 %v4336, 0.7978846
        %v4401 = vmul.f32 %v4337, 0.7978846
        %v4402 = vmul.f32 %v4338, 0.7978846
        %v4403 = vmul.f32 %v4339, 0.7978846
        %v4404 = vmul.f32 %v4340, 0.7978846
        %v4405 = vmul.f32 %v4341, 0.7978846
        %v4406 = vmul.f32 %v4342, 0.7978846
        %v4407 = vmul.f32 %v4343, 0.7978846
        %v4408 = vmul.f32 %v4344, 0.7978846
        %v4409 = vmul.f32 %v4345, 0.7978846
        %v4410 = vmul.f32 %v4346, 0.7978846
        %v4411 = vmul.f32 %v4347, 0.7978846
        %v4412 = vmul.f32 %v4348, 0.7978846
        %v4413 = vmul.f32 %v4349, 0.7978846
        %v4414 = vmul.f32 %v4350, 0.7978846
        %v4415 = vmul.f32 %v4351, 0.7978846
        %v4416 = vmul.f32 %v4352, 0.7978846
        %v4417 = vmul.f32 %v4353, 0.7978846
        %v4418 = vmul.f32 %v4354, 0.7978846
        %v4419 = vmul.f32 %v4355, 0.7978846
        %v4420 = vmul.f32 %v4356, 0.7978846
        %v4421 = vmul.f32 %v4357, 0.7978846
        %v4422 = vmul.f32 %v4358, 0.7978846
        %v4423 = vmul.f32 %v4359, 0.7978846
        %v4424 = vmul.f32 %v4360, 0.7978846
        %v4425 = vmul.f32 %v4361, 0.7978846
        %v4426 = vmul.f32 %v4362, 0.7978846
        %v4427 = vmul.f32 %v4363, 0.7978846
        %v4428 = vmul.f32 %v4364, 0.7978846
        %v4429 = vmul.f32 %v4365, 0.7978846
        %v4430 = vmul.f32 %v4366, 0.7978846
        %v4431 = vmul.f32 %v4367, 0.7978846
        %v4432 = vmul.f32 %v4368, 0.7978846
        %v4433 = vmul.f32 %v4369, 0.7978846
        %v4434 = vtanh.pop %v4370
        %v4435 = vtanh.pop %v4371
        %v4436 = vtanh.pop %v4372
        %v4437 = vtanh.pop %v4373
        %v4438 = vtanh.pop %v4374
        %v4439 = vtanh.pop %v4375
        %v4440 = vtanh.pop %v4376
        %v4441 = vtanh.pop %v4377
        %v4442 = vtanh.pop %v4378
        %v4443 = vtanh.pop %v4379
        %v4444 = vtanh.pop %v4380
        %v4445 = vtanh.pop %v4381
        %v4446 = vtanh.pop %v4382
        %v4447 = vtanh.pop %v4383
        %v4448 = vtanh.pop %v4384
        %v4449 = vtanh.pop %v4385
        %v4450 = vtanh.pop %v4386
        %v4451 = vtanh.pop %v4387
        %v4452 = vtanh.pop %v4388
        %v4453 = vtanh.pop %v4389
        %v4454 = vtanh.pop %v4390
        %v4455 = vtanh.pop %v4391
        %v4456 = vtanh.pop %v4392
        %v4457 = vtanh.pop %v4393
        %v4458 = vtanh.pop %v4394
        %v4459 = vtanh.pop %v4395
        %v4460 = vtanh.pop %v4396
        %v4461 = vtanh.pop %v4397
        %v4462 = vtanh.pop %v4398
        %v4463 = vtanh.pop %v4399
        %v4464 = vtanh.pop %v4400
        %v4465 = vtanh.pop %v4401
        %v4466 = vtanh.pop %v4402
        %v4467 = vtanh.pop %v4403
        %v4468 = vtanh.pop %v4404
        %v4469 = vtanh.pop %v4405
        %v4470 = vtanh.pop %v4406
        %v4471 = vtanh.pop %v4407
        %v4472 = vtanh.pop %v4408
        %v4473 = vtanh.pop %v4409
        %v4474 = vtanh.pop %v4410
        %v4475 = vtanh.pop %v4411
        %v4476 = vtanh.pop %v4412
        %v4477 = vtanh.pop %v4413
        %v4478 = vtanh.pop %v4414
        %v4479 = vtanh.pop %v4415
        %v4480 = vtanh.pop %v4416
        %v4481 = vtanh.pop %v4417
        %v4482 = vtanh.pop %v4418
        %v4483 = vtanh.pop %v4419
        %v4484 = vtanh.pop %v4420
        %v4485 = vtanh.pop %v4421
        %v4486 = vtanh.pop %v4422
        %v4487 = vtanh.pop %v4423
        %v4488 = vtanh.pop %v4424
        %v4489 = vtanh.pop %v4425
        %v4490 = vtanh.pop %v4426
        %v4491 = vtanh.pop %v4427
        %v4492 = vtanh.pop %v4428
        %v4493 = vtanh.pop %v4429
        %v4494 = vtanh.pop %v4430
        %v4495 = vtanh.pop %v4431
        %v4496 = vtanh.pop %v4432
        %v4497 = vtanh.pop %v4433
        %v4498 = vadd.f32 %v4434, 1.0
        %v4499 = vadd.f32 %v4435, 1.0
        %v4500 = vadd.f32 %v4436, 1.0
        %v4501 = vadd.f32 %v4437, 1.0
        %v4502 = vadd.f32 %v4438, 1.0
        %v4503 = vadd.f32 %v4439, 1.0
        %v4504 = vadd.f32 %v4440, 1.0
        %v4505 = vadd.f32 %v4441, 1.0
        %v4506 = vadd.f32 %v4442, 1.0
        %v4507 = vadd.f32 %v4443, 1.0
        %v4508 = vadd.f32 %v4444, 1.0
        %v4509 = vadd.f32 %v4445, 1.0
        %v4510 = vadd.f32 %v4446, 1.0
        %v4511 = vadd.f32 %v4447, 1.0
        %v4512 = vadd.f32 %v4448, 1.0
        %v4513 = vadd.f32 %v4449, 1.0
        %v4514 = vadd.f32 %v4450, 1.0
        %v4515 = vadd.f32 %v4451, 1.0
        %v4516 = vadd.f32 %v4452, 1.0
        %v4517 = vadd.f32 %v4453, 1.0
        %v4518 = vadd.f32 %v4454, 1.0
        %v4519 = vadd.f32 %v4455, 1.0
        %v4520 = vadd.f32 %v4456, 1.0
        %v4521 = vadd.f32 %v4457, 1.0
        %v4522 = vadd.f32 %v4458, 1.0
        %v4523 = vadd.f32 %v4459, 1.0
        %v4524 = vadd.f32 %v4460, 1.0
        %v4525 = vadd.f32 %v4461, 1.0
        %v4526 = vadd.f32 %v4462, 1.0
        %v4527 = vadd.f32 %v4463, 1.0
        %v4528 = vadd.f32 %v4464, 1.0
        %v4529 = vadd.f32 %v4465, 1.0
        %v4530 = vadd.f32 %v4466, 1.0
        %v4531 = vadd.f32 %v4467, 1.0
        %v4532 = vadd.f32 %v4468, 1.0
        %v4533 = vadd.f32 %v4469, 1.0
        %v4534 = vadd.f32 %v4470, 1.0
        %v4535 = vadd.f32 %v4471, 1.0
        %v4536 = vadd.f32 %v4472, 1.0
        %v4537 = vadd.f32 %v4473, 1.0
        %v4538 = vadd.f32 %v4474, 1.0
        %v4539 = vadd.f32 %v4475, 1.0
        %v4540 = vadd.f32 %v4476, 1.0
        %v4541 = vadd.f32 %v4477, 1.0
        %v4542 = vadd.f32 %v4478, 1.0
        %v4543 = vadd.f32 %v4479, 1.0
        %v4544 = vadd.f32 %v4480, 1.0
        %v4545 = vadd.f32 %v4481, 1.0
        %v4546 = vadd.f32 %v4482, 1.0
        %v4547 = vadd.f32 %v4483, 1.0
        %v4548 = vadd.f32 %v4484, 1.0
        %v4549 = vadd.f32 %v4485, 1.0
        %v4550 = vadd.f32 %v4486, 1.0
        %v4551 = vadd.f32 %v4487, 1.0
        %v4552 = vadd.f32 %v4488, 1.0
        %v4553 = vadd.f32 %v4489, 1.0
        %v4554 = vadd.f32 %v4490, 1.0
        %v4555 = vadd.f32 %v4491, 1.0
        %v4556 = vadd.f32 %v4492, 1.0
        %v4557 = vadd.f32 %v4493, 1.0
        %v4558 = vadd.f32 %v4494, 1.0
        %v4559 = vadd.f32 %v4495, 1.0
        %v4560 = vadd.f32 %v4496, 1.0
        %v4561 = vadd.f32 %v4497, 1.0
        %v4562 = vmul.f32 %v4050, %v4498
        %v4563 = vmul.f32 %v4051, %v4499
        %v4564 = vmul.f32 %v4052, %v4500
        %v4565 = vmul.f32 %v4053, %v4501
        %v4566 = vmul.f32 %v4054, %v4502
        %v4567 = vmul.f32 %v4055, %v4503
        %v4568 = vmul.f32 %v4056, %v4504
        %v4569 = vmul.f32 %v4057, %v4505
        %v4570 = vmul.f32 %v4058, %v4506
        %v4571 = vmul.f32 %v4059, %v4507
        %v4572 = vmul.f32 %v4060, %v4508
        %v4573 = vmul.f32 %v4061, %v4509
        %v4574 = vmul.f32 %v4062, %v4510
        %v4575 = vmul.f32 %v4063, %v4511
        %v4576 = vmul.f32 %v4064, %v4512
        %v4577 = vmul.f32 %v4065, %v4513
        %v4578 = vmul.f32 %v4066, %v4514
        %v4579 = vmul.f32 %v4067, %v4515
        %v4580 = vmul.f32 %v4068, %v4516
        %v4581 = vmul.f32 %v4069, %v4517
        %v4582 = vmul.f32 %v4070, %v4518
        %v4583 = vmul.f32 %v4071, %v4519
        %v4584 = vmul.f32 %v4072, %v4520
        %v4585 = vmul.f32 %v4073, %v4521
        %v4586 = vmul.f32 %v4074, %v4522
        %v4587 = vmul.f32 %v4075, %v4523
        %v4588 = vmul.f32 %v4076, %v4524
        %v4589 = vmul.f32 %v4077, %v4525
        %v4590 = vmul.f32 %v4078, %v4526
        %v4591 = vmul.f32 %v4079, %v4527
        %v4592 = vmul.f32 %v4080, %v4528
        %v4593 = vmul.f32 %v4081, %v4529
        %v4594 = vmul.f32 %v4082, %v4530
        %v4595 = vmul.f32 %v4083, %v4531
        %v4596 = vmul.f32 %v4084, %v4532
        %v4597 = vmul.f32 %v4085, %v4533
        %v4598 = vmul.f32 %v4086, %v4534
        %v4599 = vmul.f32 %v4087, %v4535
        %v4600 = vmul.f32 %v4088, %v4536
        %v4601 = vmul.f32 %v4089, %v4537
        %v4602 = vmul.f32 %v4090, %v4538
        %v4603 = vmul.f32 %v4091, %v4539
        %v4604 = vmul.f32 %v4092, %v4540
        %v4605 = vmul.f32 %v4093, %v4541
        %v4606 = vmul.f32 %v4094, %v4542
        %v4607 = vmul.f32 %v4095, %v4543
        %v4608 = vmul.f32 %v4096, %v4544
        %v4609 = vmul.f32 %v4097, %v4545
        %v4610 = vmul.f32 %v4098, %v4546
        %v4611 = vmul.f32 %v4099, %v4547
        %v4612 = vmul.f32 %v4100, %v4548
        %v4613 = vmul.f32 %v4101, %v4549
        %v4614 = vmul.f32 %v4102, %v4550
        %v4615 = vmul.f32 %v4103, %v4551
        %v4616 = vmul.f32 %v4104, %v4552
        %v4617 = vmul.f32 %v4105, %v4553
        %v4618 = vmul.f32 %v4106, %v4554
        %v4619 = vmul.f32 %v4107, %v4555
        %v4620 = vmul.f32 %v4108, %v4556
        %v4621 = vmul.f32 %v4109, %v4557
        %v4622 = vmul.f32 %v4110, %v4558
        %v4623 = vmul.f32 %v4111, %v4559
        %v4624 = vmul.f32 %v4112, %v4560
        %v4625 = vmul.f32 %v4113, %v4561
        %v4626 = vpack.c.bf16 %v4566, %v4562
        %v4627 = vpack.c.bf16 %v4567, %v4563
        %v4628 = vpack.c.bf16 %v4568, %v4564
        %v4629 = vpack.c.bf16 %v4569, %v4565
        %v4630 = vpack.c.bf16 %v4574, %v4570
        %v4631 = vpack.c.bf16 %v4575, %v4571
        %v4632 = vpack.c.bf16 %v4576, %v4572
        %v4633 = vpack.c.bf16 %v4577, %v4573
        %v4634 = vpack.c.bf16 %v4582, %v4578
        %v4635 = vpack.c.bf16 %v4583, %v4579
        %v4636 = vpack.c.bf16 %v4584, %v4580
        %v4637 = vpack.c.bf16 %v4585, %v4581
        %v4638 = vpack.c.bf16 %v4590, %v4586
        %v4639 = vpack.c.bf16 %v4591, %v4587
        %v4640 = vpack.c.bf16 %v4592, %v4588
        %v4641 = vpack.c.bf16 %v4593, %v4589
        %v4642 = vpack.c.bf16 %v4598, %v4594
        %v4643 = vpack.c.bf16 %v4599, %v4595
        %v4644 = vpack.c.bf16 %v4600, %v4596
        %v4645 = vpack.c.bf16 %v4601, %v4597
        %v4646 = vpack.c.bf16 %v4606, %v4602
        %v4647 = vpack.c.bf16 %v4607, %v4603
        %v4648 = vpack.c.bf16 %v4608, %v4604
        %v4649 = vpack.c.bf16 %v4609, %v4605
        %v4650 = vpack.c.bf16 %v4614, %v4610
        %v4651 = vpack.c.bf16 %v4615, %v4611
        %v4652 = vpack.c.bf16 %v4616, %v4612
        %v4653 = vpack.c.bf16 %v4617, %v4613
        %v4654 = vpack.c.bf16 %v4622, %v4618
        %v4655 = vpack.c.bf16 %v4623, %v4619
        %v4656 = vpack.c.bf16 %v4624, %v4620
        %v4657 = vpack.c.bf16 %v4625, %v4621
        %v4658 = vld [vmem:[#allocation14] sm:$0xf]
        %v4659 = vld [vmem:[#allocation14 + $0x4] sm:$0xf]
        %v4660 = vld [vmem:[#allocation14 + $0x8] sm:$0xf]
        %v4661 = vld [vmem:[#allocation14 + $0xc] sm:$0xf]
        %v4662 = vld [vmem:[#allocation14 + $0x10] sm:$0xf]
        %v4663 = vld [vmem:[#allocation14 + $0x14] sm:$0xf]
        %v4664 = vld [vmem:[#allocation14 + $0x18] sm:$0xf]
        %v4665 = vld [vmem:[#allocation14 + $0x1c] sm:$0xf]
        %v4666 = vld [vmem:[#allocation14 + $0x20] sm:$0xf]
        %v4667 = vld [vmem:[#allocation14 + $0x24] sm:$0xf]
        %v4668 = vld [vmem:[#allocation14 + $0x28] sm:$0xf]
        %v4669 = vld [vmem:[#allocation14 + $0x2c] sm:$0xf]
        %v4670 = vld [vmem:[#allocation14 + $0x30] sm:$0xf]
        %v4671 = vld [vmem:[#allocation14 + $0x34] sm:$0xf]
        %v4672 = vld [vmem:[#allocation14 + $0x38] sm:$0xf]
        %v4673 = vld [vmem:[#allocation14 + $0x3c] sm:$0xf]
        %v4674 = vld [vmem:[#allocation14 + $0x40] sm:$0xf]
        %v4675 = vld [vmem:[#allocation14 + $0x44] sm:$0xf]
        %v4676 = vld [vmem:[#allocation14 + $0x48] sm:$0xf]
        %v4677 = vld [vmem:[#allocation14 + $0x4c] sm:$0xf]
        %v4678 = vld [vmem:[#allocation14 + $0x50] sm:$0xf]
        %v4679 = vld [vmem:[#allocation14 + $0x54] sm:$0xf]
        %v4680 = vld [vmem:[#allocation14 + $0x58] sm:$0xf]
        %v4681 = vld [vmem:[#allocation14 + $0x5c] sm:$0xf]
        %v4682 = vld [vmem:[#allocation14 + $0x60] sm:$0xf]
        %v4683 = vld [vmem:[#allocation14 + $0x64] sm:$0xf]
        %v4684 = vld [vmem:[#allocation14 + $0x68] sm:$0xf]
        %v4685 = vld [vmem:[#allocation14 + $0x6c] sm:$0xf]
        %v4686 = vld [vmem:[#allocation14 + $0x70] sm:$0xf]
        %v4687 = vld [vmem:[#allocation14 + $0x74] sm:$0xf]
        %v4688 = vld [vmem:[#allocation14 + $0x78] sm:$0xf]
        %v4689 = vld [vmem:[#allocation14 + $0x7c] sm:$0xf]
        %v4690 = vld [vmem:[#allocation14 + $0x80] sm:$0xf]
        %v4691 = vld [vmem:[#allocation14 + $0x84] sm:$0xf]
        %v4692 = vld [vmem:[#allocation14 + $0x88] sm:$0xf]
        %v4693 = vld [vmem:[#allocation14 + $0x8c] sm:$0xf]
        %v4694 = vld [vmem:[#allocation14 + $0x90] sm:$0xf]
        %v4695 = vld [vmem:[#allocation14 + $0x94] sm:$0xf]
        %v4696 = vld [vmem:[#allocation14 + $0x98] sm:$0xf]
        %v4697 = vld [vmem:[#allocation14 + $0x9c] sm:$0xf]
        %v4698 = vld [vmem:[#allocation14 + $0xa0] sm:$0xf]
        %v4699 = vld [vmem:[#allocation14 + $0xa4] sm:$0xf]
        %v4700 = vld [vmem:[#allocation14 + $0xa8] sm:$0xf]
        %v4701 = vld [vmem:[#allocation14 + $0xac] sm:$0xf]
        %v4702 = vld [vmem:[#allocation14 + $0xb0] sm:$0xf]
        %v4703 = vld [vmem:[#allocation14 + $0xb4] sm:$0xf]
        %v4704 = vld [vmem:[#allocation14 + $0xb8] sm:$0xf]
        %v4705 = vld [vmem:[#allocation14 + $0xbc] sm:$0xf]
        %v4706 = vld [vmem:[#allocation14 + $0xc0] sm:$0xf]
        %v4707 = vld [vmem:[#allocation14 + $0xc4] sm:$0xf]
        %v4708 = vld [vmem:[#allocation14 + $0xc8] sm:$0xf]
        %v4709 = vld [vmem:[#allocation14 + $0xcc] sm:$0xf]
        %v4710 = vld [vmem:[#allocation14 + $0xd0] sm:$0xf]
        %v4711 = vld [vmem:[#allocation14 + $0xd4] sm:$0xf]
        %v4712 = vld [vmem:[#allocation14 + $0xd8] sm:$0xf]
        %v4713 = vld [vmem:[#allocation14 + $0xdc] sm:$0xf]
        %v4714 = vld [vmem:[#allocation14 + $0xe0] sm:$0xf]
        %v4715 = vld [vmem:[#allocation14 + $0xe4] sm:$0xf]
        %v4716 = vld [vmem:[#allocation14 + $0xe8] sm:$0xf]
        %v4717 = vld [vmem:[#allocation14 + $0xec] sm:$0xf]
        %v4718 = vld [vmem:[#allocation14 + $0xf0] sm:$0xf]
        %v4719 = vld [vmem:[#allocation14 + $0xf4] sm:$0xf]
        %v4720 = vld [vmem:[#allocation14 + $0xf8] sm:$0xf]
        %v4721 = vld [vmem:[#allocation14 + $0xfc] sm:$0xf]
        %v4722 = vld [vmem:[%s12] sm:$0x1]
        %v4724 = vperm.slane %v4722, 0
        %v4790 = vunpack.c.l.b16 %v4658
        %v4791 = vunpack.c.l.b16 %v4659
        %v4792 = vunpack.c.l.b16 %v4660
        %v4793 = vunpack.c.l.b16 %v4661
        %v4794 = vunpack.c.l.b16 %v4662
        %v4795 = vunpack.c.l.b16 %v4663
        %v4796 = vunpack.c.l.b16 %v4664
        %v4797 = vunpack.c.l.b16 %v4665
        %v4798 = vunpack.c.l.b16 %v4666
        %v4799 = vunpack.c.l.b16 %v4667
        %v4800 = vunpack.c.l.b16 %v4668
        %v4801 = vunpack.c.l.b16 %v4669
        %v4802 = vunpack.c.l.b16 %v4670
        %v4803 = vunpack.c.l.b16 %v4671
        %v4804 = vunpack.c.l.b16 %v4672
        %v4805 = vunpack.c.l.b16 %v4673
        %v4806 = vunpack.c.l.b16 %v4674
        %v4807 = vunpack.c.l.b16 %v4675
        %v4808 = vunpack.c.l.b16 %v4676
        %v4809 = vunpack.c.l.b16 %v4677
        %v4810 = vunpack.c.l.b16 %v4678
        %v4811 = vunpack.c.l.b16 %v4679
        %v4812 = vunpack.c.l.b16 %v4680
        %v4813 = vunpack.c.l.b16 %v4681
        %v4814 = vunpack.c.l.b16 %v4682
        %v4815 = vunpack.c.l.b16 %v4683
        %v4816 = vunpack.c.l.b16 %v4684
        %v4817 = vunpack.c.l.b16 %v4685
        %v4818 = vunpack.c.l.b16 %v4686
        %v4819 = vunpack.c.l.b16 %v4687
        %v4820 = vunpack.c.l.b16 %v4688
        %v4821 = vunpack.c.l.b16 %v4689
        %v4822 = vunpack.c.l.b16 %v4690
        %v4823 = vunpack.c.l.b16 %v4691
        %v4824 = vunpack.c.l.b16 %v4692
        %v4825 = vunpack.c.l.b16 %v4693
        %v4826 = vunpack.c.l.b16 %v4694
        %v4827 = vunpack.c.l.b16 %v4695
        %v4828 = vunpack.c.l.b16 %v4696
        %v4829 = vunpack.c.l.b16 %v4697
        %v4830 = vunpack.c.l.b16 %v4698
        %v4831 = vunpack.c.l.b16 %v4699
        %v4832 = vunpack.c.l.b16 %v4700
        %v4833 = vunpack.c.l.b16 %v4701
        %v4834 = vunpack.c.l.b16 %v4702
        %v4835 = vunpack.c.l.b16 %v4703
        %v4836 = vunpack.c.l.b16 %v4704
        %v4837 = vunpack.c.l.b16 %v4705
        %v4838 = vunpack.c.l.b16 %v4706
        %v4839 = vunpack.c.l.b16 %v4707
        %v4840 = vunpack.c.l.b16 %v4708
        %v4841 = vunpack.c.l.b16 %v4709
        %v4842 = vunpack.c.l.b16 %v4710
        %v4843 = vunpack.c.l.b16 %v4711
        %v4844 = vunpack.c.l.b16 %v4712
        %v4845 = vunpack.c.l.b16 %v4713
        %v4846 = vunpack.c.l.b16 %v4714
        %v4847 = vunpack.c.l.b16 %v4715
        %v4848 = vunpack.c.l.b16 %v4716
        %v4849 = vunpack.c.l.b16 %v4717
        %v4850 = vunpack.c.l.b16 %v4718
        %v4851 = vunpack.c.l.b16 %v4719
        %v4852 = vunpack.c.l.b16 %v4720
        %v4853 = vunpack.c.l.b16 %v4721
        %v4854 = vpack.c.b16 %v4791, %v4790
        %v4855 = vpack.c.b16 %v4793, %v4792
        %v4856 = vpack.c.b16 %v4795, %v4794
        %v4857 = vpack.c.b16 %v4797, %v4796
        %v4858 = vpack.c.b16 %v4799, %v4798
        %v4859 = vpack.c.b16 %v4801, %v4800
        %v4860 = vpack.c.b16 %v4803, %v4802
        %v4861 = vpack.c.b16 %v4805, %v4804
        %v4862 = vpack.c.b16 %v4807, %v4806
        %v4863 = vpack.c.b16 %v4809, %v4808
        %v4864 = vpack.c.b16 %v4811, %v4810
        %v4865 = vpack.c.b16 %v4813, %v4812
        %v4866 = vpack.c.b16 %v4815, %v4814
        %v4867 = vpack.c.b16 %v4817, %v4816
        %v4868 = vpack.c.b16 %v4819, %v4818
        %v4869 = vpack.c.b16 %v4821, %v4820
        %v4870 = vpack.c.b16 %v4823, %v4822
        %v4871 = vpack.c.b16 %v4825, %v4824
        %v4872 = vpack.c.b16 %v4827, %v4826
        %v4873 = vpack.c.b16 %v4829, %v4828
        %v4874 = vpack.c.b16 %v4831, %v4830
        %v4875 = vpack.c.b16 %v4833, %v4832
        %v4876 = vpack.c.b16 %v4835, %v4834
        %v4877 = vpack.c.b16 %v4837, %v4836
        %v4878 = vpack.c.b16 %v4839, %v4838
        %v4879 = vpack.c.b16 %v4841, %v4840
        %v4880 = vpack.c.b16 %v4843, %v4842
        %v4881 = vpack.c.b16 %v4845, %v4844
        %v4882 = vpack.c.b16 %v4847, %v4846
        %v4883 = vpack.c.b16 %v4849, %v4848
        %v4884 = vpack.c.b16 %v4851, %v4850
        %v4885 = vpack.c.b16 %v4853, %v4852
        %4918 = vmatpush.bf16.msra.mxu0 %v4861
        %4919 = vmatpush.bf16.msra.mxu0 %v4860
        %4920 = vmatpush.bf16.msra.mxu0 %v4859
        %4921 = vmatpush.bf16.msra.mxu0 %v4858
        %4922 = vmatpush.bf16.msra.mxu0 %v4857
        %4923 = vmatpush.bf16.msra.mxu0 %v4856
        %4924 = vmatpush.bf16.msra.mxu0 %v4855
        %4925 = vmatpush.bf16.msra.mxu0 %v4854
        %4926 = vmatmul.bf16.gmra.mxu0 %v4626
        %v4927 = vpop.f32.mrf.mxu0
        %v4928 = vadd.f32 %v4724, %v4927
        %v4929 = vpop.f32.mrf.mxu0
        %v4930 = vadd.f32 %v4724, %v4929
        %4931 = vmatmul.bf16.gmra.mxu0 %v4630
        %v4932 = vpop.f32.mrf.mxu0
        %v4933 = vadd.f32 %v4724, %v4932
        %v4934 = vpop.f32.mrf.mxu0
        %v4935 = vadd.f32 %v4724, %v4934
        %4936 = vmatmul.bf16.gmra.mxu0 %v4634
        %v4937 = vpop.f32.mrf.mxu0
        %v4938 = vadd.f32 %v4724, %v4937
        %v4939 = vpop.f32.mrf.mxu0
        %v4940 = vadd.f32 %v4724, %v4939
        %4941 = vmatmul.bf16.gmra.mxu0 %v4638
        %v4942 = vpop.f32.mrf.mxu0
        %v4943 = vadd.f32 %v4724, %v4942
        %v4944 = vpop.f32.mrf.mxu0
        %v4945 = vadd.f32 %v4724, %v4944
        %4946 = vmatmul.bf16.gmra.mxu0 %v4642
        %v4947 = vpop.f32.mrf.mxu0
        %v4948 = vadd.f32 %v4724, %v4947
        %v4949 = vpop.f32.mrf.mxu0
        %v4950 = vadd.f32 %v4724, %v4949
        %4951 = vmatmul.bf16.gmra.mxu0 %v4646
        %v4952 = vpop.f32.mrf.mxu0
        %v4953 = vadd.f32 %v4724, %v4952
        %v4954 = vpop.f32.mrf.mxu0
        %v4955 = vadd.f32 %v4724, %v4954
        %4956 = vmatmul.bf16.gmra.mxu0 %v4650
        %v4957 = vpop.f32.mrf.mxu0
        %v4958 = vadd.f32 %v4724, %v4957
        %v4959 = vpop.f32.mrf.mxu0
        %v4960 = vadd.f32 %v4724, %v4959
        %4961 = vmatmul.bf16.gmra.mxu0 %v4654
        %v4962 = vpop.f32.mrf.mxu0
        %v4963 = vadd.f32 %v4724, %v4962
        %v4964 = vpop.f32.mrf.mxu0
        %v4965 = vadd.f32 %v4724, %v4964
        %4966 = vdwg.mxu0
        %4967 = vmatpush.bf16.msra.mxu0 %v4869
        %4968 = vmatpush.bf16.msra.mxu0 %v4868
        %4969 = vmatpush.bf16.msra.mxu0 %v4867
        %4970 = vmatpush.bf16.msra.mxu0 %v4866
        %4971 = vmatpush.bf16.msra.mxu0 %v4865
        %4972 = vmatpush.bf16.msra.mxu0 %v4864
        %4973 = vmatpush.bf16.msra.mxu0 %v4863
        %4974 = vmatpush.bf16.msra.mxu0 %v4862
        %4975 = vmatmul.bf16.gmra.mxu0 %v4627
        %v4976 = vpop.f32.mrf.mxu0
        %v4977 = vadd.f32 %v4928, %v4976
        %v4978 = vpop.f32.mrf.mxu0
        %v4979 = vadd.f32 %v4930, %v4978
        %4980 = vmatmul.bf16.gmra.mxu0 %v4631
        %v4981 = vpop.f32.mrf.mxu0
        %v4982 = vadd.f32 %v4933, %v4981
        %v4983 = vpop.f32.mrf.mxu0
        %v4984 = vadd.f32 %v4935, %v4983
        %4985 = vmatmul.bf16.gmra.mxu0 %v4635
        %v4986 = vpop.f32.mrf.mxu0
        %v4987 = vadd.f32 %v4938, %v4986
        %v4988 = vpop.f32.mrf.mxu0
        %v4989 = vadd.f32 %v4940, %v4988
        %4990 = vmatmul.bf16.gmra.mxu0 %v4639
        %v4991 = vpop.f32.mrf.mxu0
        %v4992 = vadd.f32 %v4943, %v4991
        %v4993 = vpop.f32.mrf.mxu0
        %v4994 = vadd.f32 %v4945, %v4993
        %4995 = vmatmul.bf16.gmra.mxu0 %v4643
        %v4996 = vpop.f32.mrf.mxu0
        %v4997 = vadd.f32 %v4948, %v4996
        %v4998 = vpop.f32.mrf.mxu0
        %v4999 = vadd.f32 %v4950, %v4998
        %5000 = vmatmul.bf16.gmra.mxu0 %v4647
        %v5001 = vpop.f32.mrf.mxu0
        %v5002 = vadd.f32 %v4953, %v5001
        %v5003 = vpop.f32.mrf.mxu0
        %v5004 = vadd.f32 %v4955, %v5003
        %5005 = vmatmul.bf16.gmra.mxu0 %v4651
        %v5006 = vpop.f32.mrf.mxu0
        %v5007 = vadd.f32 %v4958, %v5006
        %v5008 = vpop.f32.mrf.mxu0
        %v5009 = vadd.f32 %v4960, %v5008
        %5010 = vmatmul.bf16.gmra.mxu0 %v4655
        %v5011 = vpop.f32.mrf.mxu0
        %v5012 = vadd.f32 %v4963, %v5011
        %v5013 = vpop.f32.mrf.mxu0
        %v5014 = vadd.f32 %v4965, %v5013
        %5015 = vdwg.mxu0
        %5016 = vmatpush.bf16.msra.mxu0 %v4877
        %5017 = vmatpush.bf16.msra.mxu0 %v4876
        %5018 = vmatpush.bf16.msra.mxu0 %v4875
        %5019 = vmatpush.bf16.msra.mxu0 %v4874
        %5020 = vmatpush.bf16.msra.mxu0 %v4873
        %5021 = vmatpush.bf16.msra.mxu0 %v4872
        %5022 = vmatpush.bf16.msra.mxu0 %v4871
        %5023 = vmatpush.bf16.msra.mxu0 %v4870
        %5024 = vmatmul.bf16.gmra.mxu0 %v4628
        %v5025 = vpop.f32.mrf.mxu0
        %v5026 = vadd.f32 %v4977, %v5025
        %v5027 = vpop.f32.mrf.mxu0
        %v5028 = vadd.f32 %v4979, %v5027
        %5029 = vmatmul.bf16.gmra.mxu0 %v4632
        %v5030 = vpop.f32.mrf.mxu0
        %v5031 = vadd.f32 %v4982, %v5030
        %v5032 = vpop.f32.mrf.mxu0
        %v5033 = vadd.f32 %v4984, %v5032
        %5034 = vmatmul.bf16.gmra.mxu0 %v4636
        %v5035 = vpop.f32.mrf.mxu0
        %v5036 = vadd.f32 %v4987, %v5035
        %v5037 = vpop.f32.mrf.mxu0
        %v5038 = vadd.f32 %v4989, %v5037
        %5039 = vmatmul.bf16.gmra.mxu0 %v4640
        %v5040 = vpop.f32.mrf.mxu0
        %v5041 = vadd.f32 %v4992, %v5040
        %v5042 = vpop.f32.mrf.mxu0
        %v5043 = vadd.f32 %v4994, %v5042
        %5044 = vmatmul.bf16.gmra.mxu0 %v4644
        %v5045 = vpop.f32.mrf.mxu0
        %v5046 = vadd.f32 %v4997, %v5045
        %v5047 = vpop.f32.mrf.mxu0
        %v5048 = vadd.f32 %v4999, %v5047
        %5049 = vmatmul.bf16.gmra.mxu0 %v4648
        %v5050 = vpop.f32.mrf.mxu0
        %v5051 = vadd.f32 %v5002, %v5050
        %v5052 = vpop.f32.mrf.mxu0
        %v5053 = vadd.f32 %v5004, %v5052
        %5054 = vmatmul.bf16.gmra.mxu0 %v4652
        %v5055 = vpop.f32.mrf.mxu0
        %v5056 = vadd.f32 %v5007, %v5055
        %v5057 = vpop.f32.mrf.mxu0
        %v5058 = vadd.f32 %v5009, %v5057
        %5059 = vmatmul.bf16.gmra.mxu0 %v4656
        %v5060 = vpop.f32.mrf.mxu0
        %v5061 = vadd.f32 %v5012, %v5060
        %v5062 = vpop.f32.mrf.mxu0
        %v5063 = vadd.f32 %v5014, %v5062
        %5064 = vdwg.mxu0
        %5065 = vmatpush.bf16.msra.mxu0 %v4885
        %5066 = vmatpush.bf16.msra.mxu0 %v4884
        %5067 = vmatpush.bf16.msra.mxu0 %v4883
        %5068 = vmatpush.bf16.msra.mxu0 %v4882
        %5069 = vmatpush.bf16.msra.mxu0 %v4881
        %5070 = vmatpush.bf16.msra.mxu0 %v4880
        %5071 = vmatpush.bf16.msra.mxu0 %v4879
        %5072 = vmatpush.bf16.msra.mxu0 %v4878
        %5073 = vmatmul.bf16.gmra.mxu0 %v4629
        %v5074 = vpop.f32.mrf.mxu0
        %v5075 = vadd.f32 %v5026, %v5074
        %v5076 = vpop.f32.mrf.mxu0
        %v5077 = vadd.f32 %v5028, %v5076
        %5078 = vmatmul.bf16.gmra.mxu0 %v4633
        %v5079 = vpop.f32.mrf.mxu0
        %v5080 = vadd.f32 %v5031, %v5079
        %v5081 = vpop.f32.mrf.mxu0
        %v5082 = vadd.f32 %v5033, %v5081
        %5083 = vmatmul.bf16.gmra.mxu0 %v4637
        %v5084 = vpop.f32.mrf.mxu0
        %v5085 = vadd.f32 %v5036, %v5084
        %v5086 = vpop.f32.mrf.mxu0
        %v5087 = vadd.f32 %v5038, %v5086
        %5088 = vmatmul.bf16.gmra.mxu0 %v4641
        %v5089 = vpop.f32.mrf.mxu0
        %v5090 = vadd.f32 %v5041, %v5089
        %v5091 = vpop.f32.mrf.mxu0
        %v5092 = vadd.f32 %v5043, %v5091
        %5093 = vmatmul.bf16.gmra.mxu0 %v4645
        %v5094 = vpop.f32.mrf.mxu0
        %v5095 = vadd.f32 %v5046, %v5094
        %v5096 = vpop.f32.mrf.mxu0
        %v5097 = vadd.f32 %v5048, %v5096
        %5098 = vmatmul.bf16.gmra.mxu0 %v4649
        %v5099 = vpop.f32.mrf.mxu0
        %v5100 = vadd.f32 %v5051, %v5099
        %v5101 = vpop.f32.mrf.mxu0
        %v5102 = vadd.f32 %v5053, %v5101
        %5103 = vmatmul.bf16.gmra.mxu0 %v4653
        %v5104 = vpop.f32.mrf.mxu0
        %v5105 = vadd.f32 %v5056, %v5104
        %v5106 = vpop.f32.mrf.mxu0
        %v5107 = vadd.f32 %v5058, %v5106
        %5108 = vmatmul.bf16.gmra.mxu0 %v4657
        %v5109 = vpop.f32.mrf.mxu0
        %v5110 = vadd.f32 %v5061, %v5109
        %v5111 = vpop.f32.mrf.mxu0
        %v5112 = vadd.f32 %v5063, %v5111
        %5113 = vdwg.mxu0
        %v5114 = vadd.f32 %v3268, %v5075
        %v5115 = vadd.f32 %v3269, %v5077
        %v5116 = vadd.f32 %v3270, %v5080
        %v5117 = vadd.f32 %v3271, %v5082
        %v5118 = vadd.f32 %v3272, %v5085
        %v5119 = vadd.f32 %v3273, %v5087
        %v5120 = vadd.f32 %v3274, %v5090
        %v5121 = vadd.f32 %v3275, %v5092
        %v5122 = vadd.f32 %v3276, %v5095
        %v5123 = vadd.f32 %v3277, %v5097
        %v5124 = vadd.f32 %v3278, %v5100
        %v5125 = vadd.f32 %v3279, %v5102
        %v5126 = vadd.f32 %v3280, %v5105
        %v5127 = vadd.f32 %v3281, %v5107
        %v5128 = vadd.f32 %v3282, %v5110
        %v5129 = vadd.f32 %v3283, %v5112
        %5130 = vst [vmem:[%s573] sm:$0xff] %v5114
        %5131 = vst [vmem:[%s573 + $0x8] sm:$0xff] %v5115
        %5132 = vst [vmem:[%s573 + $0x10] sm:$0xff] %v5116
        %5133 = vst [vmem:[%s573 + $0x18] sm:$0xff] %v5117
        %5134 = vst [vmem:[%s573 + $0x20] sm:$0xff] %v5118
        %5135 = vst [vmem:[%s573 + $0x28] sm:$0xff] %v5119
        %5136 = vst [vmem:[%s573 + $0x30] sm:$0xff] %v5120
        %5137 = vst [vmem:[%s573 + $0x38] sm:$0xff] %v5121
        %5138 = vst [vmem:[%s573 + $0x40] sm:$0xff] %v5122
        %5139 = vst [vmem:[%s573 + $0x48] sm:$0xff] %v5123
        %5140 = vst [vmem:[%s573 + $0x50] sm:$0xff] %v5124
        %5141 = vst [vmem:[%s573 + $0x58] sm:$0xff] %v5125
        %5142 = vst [vmem:[%s573 + $0x60] sm:$0xff] %v5126
        %5143 = vst [vmem:[%s573 + $0x68] sm:$0xff] %v5127
        %5144 = vst [vmem:[%s573 + $0x70] sm:$0xff] %v5128
        %5145 = vst [vmem:[%s573 + $0x78] sm:$0xff] %v5129
        %s5146 = sand.u32 %s320, 1
        %s5147 = scalar_lea.sflag [#allocation4], %s5146
        %s5148 = sand.u32 %s320, 1
        %s5149 = smul.addr %s5148, 128
        %s5150 = scalar_lea.vmem [#allocation16], %s5149
        // Predicated region
        $region105: #{tpu_custom_call.1} parent=71 // pred_check
          %p5151 = pneg %p330
        $region106: #{tpu_custom_call.1} parent=71 // pred_check_branch
          %5153 = sbr.rel (%p5151) target = $region108
        $region107: #{tpu_custom_call.1} parent=71 // pred_region
          %s5154 = smul.u32 8, %s34
          %5156 = vsyncadd %s5147, 0
          %s5157 = smul.addr %s5154, 2
          %s5158 = smul.addr %s5157, 8
          %s5159 = scalar_lea.hbm %s13, %s5158
          %s5160 = sshll.u32 %s5150, 4
          %s5161 = int_to_ptr.vmem [resolvable:$true] %s5160
          %s5162 = sshll.u32 %s5159, 4
          %s5163 = int_to_ptr.hbm [resolvable:$true] %s5162
          %5168 = dma.vmem_to_hbm [thread:$0]  %s5161, 2048, %s5163, %s5147, 128, 128, 8
        $region108: #{tpu_custom_call.1} parent=71 // pred_fallthru
          _
      $region72: #{tpu_custom_call.1} parent=5 // pred_fallthru
        _
      %p5169 = scmp.le.s32.totalorder 2, %s29
      // Predicated region
      $region109: #{tpu_custom_call.1} parent=5 // pred_check
        %p5170 = pneg %p5169
      $region110: #{tpu_custom_call.1} parent=5 // pred_check_branch
        %5172 = sbr.rel (%p5170) target = $region112
      $region111: #{tpu_custom_call.1} parent=5 // pred_region
        %s5173 = ssub.s32 %s29, 2
        // Predicated region
        $region113: #{tpu_custom_call.1} parent=111 // pred_check
          %p5174 = pneg %p336
        $region114: #{tpu_custom_call.1} parent=111 // pred_check_branch
          %5176 = sbr.rel (%p5174) target = $region116
        $region115: #{tpu_custom_call.1} parent=111 // pred_region
          %s5177 = sand.u32 %s321, 1
          %s5178 = scalar_lea.sflag [#allocation4], %s5177
          %s5179 = sand.u32 %s321, 1
          %s5180 = smul.addr %s5179, 128
          %s5181 = scalar_lea.vmem [#allocation16], %s5180
          %5183 = dma.done %s5178, 2048
        $region116: #{tpu_custom_call.1} parent=111 // pred_fallthru
          _
      $region112: #{tpu_custom_call.1} parent=5 // pred_fallthru
        _
    $region6: #{tpu_custom_call.1} parent=1 // loop_footer
      %s33 = sadd.s32 1, %s29
    $region7: #{tpu_custom_call.1} parent=1 // loop_footer_branch
      %28 = sbr.rel target = $region3
    $region8: #{tpu_custom_call.1} parent=1 // loop_exit
      _
    %5184 = vsyncpa [#allocation3], 1
    %s5185 = scalar_lea.sflag [#allocation3], 1
    %5186 = vsyncpa %s5185, 1
    %5187 = vsyncpa [#allocation6], 1
    %5188 = vsyncpa [#allocation9], 1
    %5189 = vsyncpa [#allocation12], 1
    %5190 = vsyncpa [#allocation15], 1
    %5191 = vsyncpa [#allocation4], 1
    %s5192 = scalar_lea.sflag [#allocation4], 1
    %5193 = vsyncpa %s5192, 1

</llo_original>
